<compile_context>
chip_gen: v5e
topology: v5e:2x2
jax: 0.10.0
libtpu: 0.0.40
codegen_flags: <defaults>
</compile_context>

<pallas_src>
import math

import jax
import jax.numpy as jnp
from jax.experimental import pallas as pl
from jax.experimental.pallas import tpu as pltpu

LANE = 128   # TPU lane width (last-dim alignment target)


def _round_up(x, m):
    return ((x + m - 1) // m) * m


# ----------------------------------------------------------------------------
# _flat_to_shape equivalent (plain-JAX glue, same semantics as torchdiffeq)
# ----------------------------------------------------------------------------
def flat_to_shape(tensor, length, shapes):
    tensor_list = []
    total = 0
    for shape in shapes:
        numel = int(math.prod(shape)) if len(shape) > 0 else 1
        next_total = total + numel
        tensor_list.append(jnp.reshape(tensor[..., total:next_total], (*length, *shape)))
        total = next_total
    return tuple(tensor_list)


# ----------------------------------------------------------------------------
# Fused single-step Pallas kernel.
# refs = (t[SMEM], y[VMEM], W_0..W_{P-1}[VMEM], b_pack[VMEM], out[VMEM])
# For each piece i (static Python loop, unrolled at trace time):
#     acc_i = (y[:, off_i:off_i+n_i].bf16) @ W_i        (MXU, f32 accumulate)
#     out[:, off_i:off_i+n_i] = tanh(acc_i[:, :n_i] + t * b[:, off_i:off_i+n_i])
# ----------------------------------------------------------------------------
def _make_fused_kernel(num_pieces, offsets, ns):
    def kernel(*refs):
        t_ref, y_ref = refs[0], refs[1]
        w_refs = refs[2:2 + num_pieces]
        b_ref = refs[2 + num_pieces]
        o_ref = refs[3 + num_pieces]

        t = t_ref[0]
        for i in range(num_pieces):
            off, n = offsets[i], ns[i]
            y_i = y_ref[:, off:off + n].astype(jnp.bfloat16)              # (1, n)
            acc = jnp.dot(y_i, w_refs[i][...],
                          preferred_element_type=jnp.float32)             # (1, ncol_i) f32
            z = acc[:, :n] + t * b_ref[:, off:off + n]                    # f32 bias math
            o_ref[:, off:off + n] = jnp.tanh(z)                           # lane-aligned store
    return kernel


# ----------------------------------------------------------------------------
# base_func: fused linear+tanh dynamics over all tuple pieces, one launch.
# ----------------------------------------------------------------------------
class FusedLinearDynamics:
    def __init__(self, shapes, key):
        self.shapes = [tuple(s) for s in shapes]
        self.ns = [int(math.prod(s)) if len(s) > 0 else 1 for s in self.shapes]
        self.num_pieces = len(self.shapes)
        self.total = sum(self.ns)
        self.total_pad = _round_up(self.total, LANE)

        self.offsets = []
        off = 0
        for n in self.ns:
            self.offsets.append(off)
            off += n
        self.ncols = [_round_up(n, LANE) for n in self.ns]

        self.params = []          # original f32 (W_i, b_i), kept for reference checks
        self.w_list = []          # bf16 W_i, shape (n_i, round128(n_i)), zero-padded cols
        b_pack = jnp.zeros((1, self.total), jnp.float32)
        for i, (n, o, ncol) in enumerate(zip(self.ns, self.offsets, self.ncols)):
            kw, kb = jax.random.split(jax.random.fold_in(key, i))
            w = jax.random.normal(kw, (n, n), jnp.float32) * (1.0 / math.sqrt(n))
            b = jax.random.normal(kb, (n,), jnp.float32) * 0.1
            self.params.append((w, b))
            w_pad = jnp.zeros((n, ncol), jnp.float32).at[:, :n].set(w)
            self.w_list.append(w_pad.astype(jnp.bfloat16))
            b_pack = b_pack.at[0, o:o + n].set(b)
        self.b_pack = b_pack

        kernel = _make_fused_kernel(self.num_pieces, self.offsets, self.ns)
        num_vmem_inputs = 2 + self.num_pieces            # y, W_0..W_{P-1}, b_pack
        in_specs = ([pl.BlockSpec(memory_space=pltpu.MemorySpace.SMEM)]
                    + [pl.BlockSpec(memory_space=pltpu.MemorySpace.VMEM)] * num_vmem_inputs)
        out_specs = pl.BlockSpec(memory_space=pltpu.MemorySpace.VMEM)
        out_shape = jax.ShapeDtypeStruct((1, self.total_pad), jnp.float32)

        w_list, b_const, total = self.w_list, self.b_pack, self.total

        def flat_fn(t, y_flat):
            t_arr = jnp.asarray(t, jnp.float32).reshape(1)
            y2d = jnp.reshape(y_flat, (1, total)).astype(jnp.float32)
            out = pl.pallas_call(
                kernel,
                out_shape=out_shape,
                in_specs=in_specs,
                out_specs=out_specs,
            )(t_arr, y2d, *w_list, b_const)
            return out[0, :total]

        # jit so the single reshape-in / slice-out fuse with the pallas call.
        self.flat_call = jax.jit(flat_fn)

    def __call__(self, t, y_tuple):
        # Generic tuple API (matches the torchdiffeq base_func contract). The
        # pieces of a _TupleFunc state are contiguous slices of the flat y, so
        # this just round-trips through the fused flat kernel.
        y_flat = jnp.concatenate([jnp.reshape(y_i, (-1,)) for y_i in y_tuple])
        f_flat = self.flat_call(t, y_flat)
        return flat_to_shape(f_flat, (), self.shapes)


# ----------------------------------------------------------------------------
# _TupleFunc equivalent
# ----------------------------------------------------------------------------
class TupleFunc:
    """JAX equivalent of torchdiffeq._impl.misc._TupleFunc."""

    def __init__(self, base_func, shapes):
        self.base_func = base_func
        self.shapes = shapes

    def __call__(self, t, y):
        # Fast path: base_func exposes a fused flat evaluation (one Pallas
        # call, no split/concat round-trip). Semantically identical to the
        # generic split -> base_func -> concat path below.
        if hasattr(self.base_func, "flat_call"):
            return self.base_func.flat_call(t, y)
        f = self.base_func(t, flat_to_shape(y, (), self.shapes))
        return jnp.concatenate([jnp.reshape(f_, (-1,)) for f_ in f])


# ----------------------------------------------------------------------------
if __name__ == "__main__":
    key = jax.random.PRNGKey(0)
    k_y, k_p = jax.random.split(key)

    # Tuple-of-states shapes (conv-like feature map, a matrix, a vector)
    shapes = [(4, 16, 16), (8, 32), (64,)]
    total = sum(int(math.prod(s)) for s in shapes)   # 1024 + 256 + 64 = 1344

    y_flat = jax.random.normal(k_y, (total,), jnp.float32)
    t = jnp.float32(0.5)

    dyn = FusedLinearDynamics(shapes, k_p)
    tuple_func = TupleFunc(dyn, shapes)

    out = jax.block_until_ready(tuple_func(t, y_flat))
    assert out.shape == (total,), out.shape

    # Generic tuple path goes through the same fused kernel -> identical result.
    f_tuple = dyn(t, flat_to_shape(y_flat, (), shapes))
    out_generic = jnp.concatenate([jnp.reshape(f_, (-1,)) for f_ in f_tuple])
    assert jnp.allclose(out, out_generic), float(jnp.max(jnp.abs(out - out_generic)))

    # References.
    #  (1) same bf16-quantized y/W, f32 math -> tight check on kernel logic
    #  (2) full f32 math -> loose check on overall semantics (bf16 quant error;
    #      note this quantization perturbs an adaptive ODE solver's error
    #      estimator slightly -- accepted by design)
    ref_q_pieces, ref_f_pieces = [], []
    off = 0
    for (w, b), shape in zip(dyn.params, shapes):
        n = int(math.prod(shape))
        y_i = y_flat[off:off + n]
        y_q = y_i.astype(jnp.bfloat16).astype(jnp.float32)
        w_q = w.astype(jnp.bfloat16).astype(jnp.float32)
        ref_q_pieces.append(jnp.tanh(
            jnp.dot(y_q, w_q, precision=jax.lax.Precision.HIGHEST) + t * b))
        ref_f_pieces.append(jnp.tanh(
            jnp.dot(y_i, w, precision=jax.lax.Precision.HIGHEST) + t * b))
        off += n
    ref_q = jnp.concatenate(ref_q_pieces)
    ref_f = jnp.concatenate(ref_f_pieces)

    err_q = float(jnp.max(jnp.abs(out - ref_q)))
    err_f = float(jnp.max(jnp.abs(out - ref_f)))
    assert jnp.allclose(out, ref_q, atol=2e-3, rtol=2e-3), err_q
    assert jnp.allclose(out, ref_f, atol=3e-2, rtol=3e-2), err_f

    print("KERNEL_OK")
</pallas_src>

<mosaic_0001>
module attributes {stable_mosaic.version = 11 : i64} {
  func.func @kernel(%arg0: memref<1xf32, #tpu.memory_space<smem>>, %arg1: memref<1x1344xf32, #tpu.memory_space<vmem>>, %arg2: memref<1024x1024xbf16, #tpu.memory_space<vmem>>, %arg3: memref<256x256xbf16, #tpu.memory_space<vmem>>, %arg4: memref<64x128xbf16, #tpu.memory_space<vmem>>, %arg5: memref<1x1344xf32, #tpu.memory_space<vmem>>, %arg6: memref<1x1408xf32, #tpu.memory_space<vmem>>) attributes {dimension_semantics = [], scalar_prefetch = 0 : i64, scratch_operands = 0 : i64, tpu.core_type = #tpu.core_type<tc>} {
    %c0 = arith.constant 0 : index
    %0 = memref.load %arg0[%c0] : memref<1xf32, #tpu.memory_space<smem>>
    %c0_0 = arith.constant 0 : index
    %c0_1 = arith.constant 0 : index
    %1 = vector.load %arg1[%c0_0, %c0_1] : memref<1x1344xf32, #tpu.memory_space<vmem>>, vector<1x1024xf32>
    %2 = arith.truncf %1 : vector<1x1024xf32> to vector<1x1024xbf16>
    %c0_2 = arith.constant 0 : index
    %c0_3 = arith.constant 0 : index
    %3 = vector.load %arg2[%c0_2, %c0_3] : memref<1024x1024xbf16, #tpu.memory_space<vmem>>, vector<1024x1024xbf16>
    %cst = arith.constant dense<0.000000e+00> : vector<1x1024xf32>
    %4 = tpu.matmul %2, %3, %cst {dimension_numbers = #tpu.dot_dimension_numbers<[1], [0], [0], [1], [0, 0, 1, 1], [], []>} : vector<1x1024xbf16>, vector<1024x1024xbf16>, vector<1x1024xf32> -> vector<1x1024xf32>
    %c0_4 = arith.constant 0 : index
    %c0_5 = arith.constant 0 : index
    %5 = vector.load %arg5[%c0_4, %c0_5] : memref<1x1344xf32, #tpu.memory_space<vmem>>, vector<1x1024xf32>
    %6 = vector.broadcast %0 : f32 to vector<1x1024xf32>
    %7 = arith.mulf %6, %5 : vector<1x1024xf32>
    %8 = arith.addf %4, %7 : vector<1x1024xf32>
    %9 = math.tanh %8 : vector<1x1024xf32>
    %c0_6 = arith.constant 0 : index
    %c0_7 = arith.constant 0 : index
    %10 = vector.load %arg6[%c0_6, %c0_7] : memref<1x1408xf32, #tpu.memory_space<vmem>>, vector<1x1024xf32>
    tpu.vector_store %arg6[%c0_6, %c0_7], %9 {strides = array<i32>} : memref<1x1408xf32, #tpu.memory_space<vmem>>, vector<1x1024xf32>,
    %c0_8 = arith.constant 0 : index
    %c1024 = arith.constant 1024 : index
    %11 = vector.load %arg1[%c0_8, %c1024] : memref<1x1344xf32, #tpu.memory_space<vmem>>, vector<1x256xf32>
    %12 = arith.truncf %11 : vector<1x256xf32> to vector<1x256xbf16>
    %c0_9 = arith.constant 0 : index
    %c0_10 = arith.constant 0 : index
    %13 = vector.load %arg3[%c0_9, %c0_10] : memref<256x256xbf16, #tpu.memory_space<vmem>>, vector<256x256xbf16>
    %cst_11 = arith.constant dense<0.000000e+00> : vector<1x256xf32>
    %14 = tpu.matmul %12, %13, %cst_11 {dimension_numbers = #tpu.dot_dimension_numbers<[1], [0], [0], [1], [0, 0, 1, 1], [], []>} : vector<1x256xbf16>, vector<256x256xbf16>, vector<1x256xf32> -> vector<1x256xf32>
    %c0_12 = arith.constant 0 : index
    %c1024_13 = arith.constant 1024 : index
    %15 = vector.load %arg5[%c0_12, %c1024_13] : memref<1x1344xf32, #tpu.memory_space<vmem>>, vector<1x256xf32>
    %16 = vector.broadcast %0 : f32 to vector<1x256xf32>
    %17 = arith.mulf %16, %15 : vector<1x256xf32>
    %18 = arith.addf %14, %17 : vector<1x256xf32>
    %19 = math.tanh %18 : vector<1x256xf32>
    %c0_14 = arith.constant 0 : index
    %c1024_15 = arith.constant 1024 : index
    %20 = vector.load %arg6[%c0_14, %c1024_15] : memref<1x1408xf32, #tpu.memory_space<vmem>>, vector<1x256xf32>
    tpu.vector_store %arg6[%c0_14, %c1024_15], %19 {strides = array<i32>} : memref<1x1408xf32, #tpu.memory_space<vmem>>, vector<1x256xf32>,
    %c0_16 = arith.constant 0 : index
    %c1280 = arith.constant 1280 : index
    %21 = vector.load %arg1[%c0_16, %c1280] : memref<1x1344xf32, #tpu.memory_space<vmem>>, vector<1x64xf32>
    %22 = arith.truncf %21 : vector<1x64xf32> to vector<1x64xbf16>
    %c0_17 = arith.constant 0 : index
    %c0_18 = arith.constant 0 : index
    %23 = vector.load %arg4[%c0_17, %c0_18] : memref<64x128xbf16, #tpu.memory_space<vmem>>, vector<64x128xbf16>
    %cst_19 = arith.constant dense<0.000000e+00> : vector<1x128xf32>
    %24 = tpu.matmul %22, %23, %cst_19 {dimension_numbers = #tpu.dot_dimension_numbers<[1], [0], [0], [1], [0, 0, 1, 1], [], []>} : vector<1x64xbf16>, vector<64x128xbf16>, vector<1x128xf32> -> vector<1x128xf32>
    %25 = vector.extract_strided_slice %24 {offsets = [0, 0], sizes = [1, 64], strides = [1, 1]} : vector<1x128xf32> to vector<1x64xf32>
    %c0_20 = arith.constant 0 : index
    %c1280_21 = arith.constant 1280 : index
    %26 = vector.load %arg5[%c0_20, %c1280_21] : memref<1x1344xf32, #tpu.memory_space<vmem>>, vector<1x64xf32>
    %27 = vector.broadcast %0 : f32 to vector<1x64xf32>
    %28 = arith.mulf %27, %26 : vector<1x64xf32>
    %29 = arith.addf %25, %28 : vector<1x64xf32>
    %30 = math.tanh %29 : vector<1x64xf32>
    %c0_22 = arith.constant 0 : index
    %c1280_23 = arith.constant 1280 : index
    %31 = vector.load %arg6[%c0_22, %c1280_23] : memref<1x1408xf32, #tpu.memory_space<vmem>>, vector<1x64xf32>
    tpu.vector_store %arg6[%c0_22, %c1280_23], %30 {strides = array<i32>} : memref<1x1408xf32, #tpu.memory_space<vmem>>, vector<1x64xf32>,
    return
  }
}

</mosaic_0001>

<llo_original>
// kernel: flat_fn.1
$region0: #{flat_fn.1}
  #allocation0 [shape = 'u32[]', space=smem, size = 0x4, offset = 0x4, fixed_abs, tag = 'smem constant byte address 0x4 - core index']
  #allocation1 [shape = 'u32[72,128]{1,0:T(1,128)}', space=vmem, size = 0x9000, scoped, tag = 'internal scratch']
  #allocation2 [shape = 'f32[1]{0:T(128)S(6)}', space=smem, size = 0x200, scoped, tag = 'scoped memory for flat_fn.1']
  %s0 = inlined_call_operand.<no memory space> [shape: f32[1], index: 0, kind: input, shape index: {}]
  %s1 = inlined_call_operand.vmem [shape: f32[1,1344], index: 1, kind: input, shape index: {}]
  %s2 = inlined_call_operand.hbm [shape: bf16[1024,1024], index: 2, kind: input, shape index: {}]
  %s3 = inlined_call_operand.hbm [shape: bf16[256,256], index: 3, kind: input, shape index: {}]
  %s4 = inlined_call_operand.hbm [shape: bf16[64,128], index: 4, kind: input, shape index: {}]
  %s5 = inlined_call_operand.hbm [shape: f32[1,1344], index: 5, kind: input, shape index: {}]
  %s6 = inlined_call_operand.vmem [shape: f32[1,1408], index: 6, kind: output, shape index: {}]
  %s7 = sld [smem:[#allocation0]]
  $region50: #{flat_fn.1} parent=0
    _
  %s9 = ssub.s32 1, %s7
  %s10 = scalar_select 0, %s9, %s7
  %11 = sst [smem:[#allocation2]] %s0
  $region1: #{flat_fn.1} parent=0
    #allocation3 [shape = 'u8[2097152]{0}', space=vmem, size = 0x200000, scoped, tag = 'input window, operand 2, single buffered']
    #allocation4 [shape = 's32[1]{0}', space=sflag, size = 0x4, scoped, tag = 'scoped memory for flat_fn.1']
    #allocation5 [shape = 'u8[131072]{0}', space=vmem, size = 0x20000, scoped, tag = 'input window, operand 3, single buffered']
    #allocation6 [shape = 's32[1]{0}', space=sflag, size = 0x4, scoped, tag = 'scoped memory for flat_fn.1']
    #allocation7 [shape = 'u8[16384]{0}', space=vmem, size = 0x4000, scoped, tag = 'input window, operand 4, single buffered']
    #allocation8 [shape = 'u8[5632]{0}', space=vmem, size = 0x1800, scoped, tag = 'input window, operand 5, single buffered']
    #allocation9 [shape = 's32[1]{0}', space=sflag, size = 0x4, scoped, tag = 'scoped memory for flat_fn.1']
    %12 = vsyncpa [#allocation4], 0
    %13 = vsyncpa [#allocation6], 0
    %14 = vsyncpa [#allocation9], 0
    // Predicated region
    $region2: #{flat_fn.1} parent=1 // pred_check
      _
    $region3: #{flat_fn.1} parent=1 // pred_check_branch
      %16 = sbr.rel (0) target = $region5
    $region4: #{flat_fn.1} parent=1 // pred_region
      _
    $region5: #{flat_fn.1} parent=1 // pred_fallthru
      _
    // Predicated region
    $region6: #{flat_fn.1} parent=1 // pred_check
      _
    $region7: #{flat_fn.1} parent=1 // pred_check_branch
      %18 = sbr.rel (0) target = $region9
    $region8: #{flat_fn.1} parent=1 // pred_region
      _
    $region9: #{flat_fn.1} parent=1 // pred_fallthru
      _
    // Predicated region
    $region10: #{flat_fn.1} parent=1 // pred_check
      _
    $region11: #{flat_fn.1} parent=1 // pred_check_branch
      %20 = sbr.rel (0) target = $region13
    $region12: #{flat_fn.1} parent=1 // pred_region
      %22 = vsyncadd [#allocation4], 0
      %s23 = sshll.u32 %s2, 4
      %s24 = int_to_ptr.hbm [resolvable:$true] %s23
      %s25 = sshll.u32 [#allocation3], 4
      %s26 = int_to_ptr.vmem [resolvable:$true] %s25
      %31 = dma.hbm_to_vmem [thread:$0]  %s24, 65536, %s26, [#allocation4], 512, 512, 32
    $region13: #{flat_fn.1} parent=1 // pred_fallthru
      _
    // Predicated region
    $region14: #{flat_fn.1} parent=1 // pred_check
      _
    $region15: #{flat_fn.1} parent=1 // pred_check_branch
      %33 = sbr.rel (0) target = $region17
    $region16: #{flat_fn.1} parent=1 // pred_region
      %35 = vsyncadd [#allocation6], 0
      %s36 = sshll.u32 %s3, 4
      %s37 = int_to_ptr.hbm [resolvable:$true] %s36
      %s38 = sshll.u32 [#allocation5], 4
      %s39 = int_to_ptr.vmem [resolvable:$true] %s38
      %44 = dma.hbm_to_vmem [thread:$0]  %s37, 4096, %s39, [#allocation6], 128, 128, 8
    $region17: #{flat_fn.1} parent=1 // pred_fallthru
      _
    // Predicated region
    $region18: #{flat_fn.1} parent=1 // pred_check
      _
    $region19: #{flat_fn.1} parent=1 // pred_check_branch
      %46 = sbr.rel (0) target = $region21
    $region20: #{flat_fn.1} parent=1 // pred_region
      %48 = vsyncadd [#allocation6], 0
      %s49 = sshll.u32 %s4, 4
      %s50 = int_to_ptr.hbm [resolvable:$true] %s49
      %s51 = sshll.u32 [#allocation7], 4
      %s52 = int_to_ptr.vmem [resolvable:$true] %s51
      %57 = dma.hbm_to_vmem [thread:$0]  %s50, 512, %s52, [#allocation6], 64, 64, 4
    $region21: #{flat_fn.1} parent=1 // pred_fallthru
      _
    // Predicated region
    $region22: #{flat_fn.1} parent=1 // pred_check
      _
    $region23: #{flat_fn.1} parent=1 // pred_check_branch
      %59 = sbr.rel (0) target = $region25
    $region24: #{flat_fn.1} parent=1 // pred_region
      %61 = vsyncadd [#allocation9], 0
      %s63 = sshll.u32 %s5, 4
      %s64 = int_to_ptr.hbm [resolvable:$true] %s63
      %s65 = sshll.u32 [#allocation8], 4
      %s66 = int_to_ptr.vmem [resolvable:$true] %s65
      %68 = dma.hbm_to_vmem [thread:$0]  %s64, 176, %s66, [#allocation9]
    $region25: #{flat_fn.1} parent=1 // pred_fallthru
      _
    // Predicated region
    $region26: #{flat_fn.1} parent=1 // pred_check
      _
    $region27: #{flat_fn.1} parent=1 // pred_check_branch
      %70 = sbr.rel (0) target = $region29
    $region28: #{flat_fn.1} parent=1 // pred_region
      %72 = dma.done [#allocation4], 65536
    $region29: #{flat_fn.1} parent=1 // pred_fallthru
      _
    // Predicated region
    $region30: #{flat_fn.1} parent=1 // pred_check
      _
    $region31: #{flat_fn.1} parent=1 // pred_check_branch
      %74 = sbr.rel (0) target = $region33
    $region32: #{flat_fn.1} parent=1 // pred_region
      %76 = dma.done [#allocation6], 4096
    $region33: #{flat_fn.1} parent=1 // pred_fallthru
      _
    // Predicated region
    $region34: #{flat_fn.1} parent=1 // pred_check
      _
    $region35: #{flat_fn.1} parent=1 // pred_check_branch
      %78 = sbr.rel (0) target = $region37
    $region36: #{flat_fn.1} parent=1 // pred_region
      %80 = dma.done [#allocation6], 512
    $region37: #{flat_fn.1} parent=1 // pred_fallthru
      _
    // Predicated region
    $region38: #{flat_fn.1} parent=1 // pred_check
      _
    $region39: #{flat_fn.1} parent=1 // pred_check_branch
      %82 = sbr.rel (0) target = $region41
    $region40: #{flat_fn.1} parent=1 // pred_region
      %84 = dma.done [#allocation9], 176
    $region41: #{flat_fn.1} parent=1 // pred_fallthru
      _
    %s86 = sld [smem:[#allocation2]]
    %v87 = vld [vmem:[%s1] sm:$0xff]
    %v89 = vperm.slane %v87, 0
    %v90 = vperm.slane %v87, 1
    %v91 = vperm.slane %v87, 2
    %v92 = vperm.slane %v87, 3
    %v93 = vperm.slane %v87, 4
    %v94 = vperm.slane %v87, 5
    %v95 = vperm.slane %v87, 6
    %v96 = vperm.slane %v87, 7
    %v105 = vpack.c.bf16 %v89, %v89
    %v106 = vpack.c.bf16 %v90, %v90
    %v107 = vpack.c.bf16 %v91, %v91
    %v108 = vpack.c.bf16 %v92, %v92
    %v109 = vpack.c.bf16 %v93, %v93
    %v110 = vpack.c.bf16 %v94, %v94
    %v111 = vpack.c.bf16 %v95, %v95
    %v112 = vpack.c.bf16 %v96, %v96
    %v113 = vld [vmem:[#allocation3] sm:$0xff]
    %v114 = vld [vmem:[#allocation3 + $0x8] sm:$0xff]
    %v115 = vld [vmem:[#allocation3 + $0x10] sm:$0xff]
    %v116 = vld [vmem:[#allocation3 + $0x18] sm:$0xff]
    %v117 = vld [vmem:[#allocation3 + $0x20] sm:$0xff]
    %v118 = vld [vmem:[#allocation3 + $0x28] sm:$0xff]
    %v119 = vld [vmem:[#allocation3 + $0x30] sm:$0xff]
    %v120 = vld [vmem:[#allocation3 + $0x38] sm:$0xff]
    %v121 = vld [vmem:[#allocation3 + $0x40] sm:$0xff]
    %v122 = vld [vmem:[#allocation3 + $0x48] sm:$0xff]
    %v123 = vld [vmem:[#allocation3 + $0x50] sm:$0xff]
    %v124 = vld [vmem:[#allocation3 + $0x58] sm:$0xff]
    %v125 = vld [vmem:[#allocation3 + $0x60] sm:$0xff]
    %v126 = vld [vmem:[#allocation3 + $0x68] sm:$0xff]
    %v127 = vld [vmem:[#allocation3 + $0x70] sm:$0xff]
    %v128 = vld [vmem:[#allocation3 + $0x78] sm:$0xff]
    %v129 = vld [vmem:[#allocation3 + $0x80] sm:$0xff]
    %v130 = vld [vmem:[#allocation3 + $0x88] sm:$0xff]
    %v131 = vld [vmem:[#allocation3 + $0x90] sm:$0xff]
    %v132 = vld [vmem:[#allocation3 + $0x98] sm:$0xff]
    %v133 = vld [vmem:[#allocation3 + $0xa0] sm:$0xff]
    %v134 = vld [vmem:[#allocation3 + $0xa8] sm:$0xff]
    %v135 = vld [vmem:[#allocation3 + $0xb0] sm:$0xff]
    %v136 = vld [vmem:[#allocation3 + $0xb8] sm:$0xff]
    %v137 = vld [vmem:[#allocation3 + $0xc0] sm:$0xff]
    %v138 = vld [vmem:[#allocation3 + $0xc8] sm:$0xff]
    %v139 = vld [vmem:[#allocation3 + $0xd0] sm:$0xff]
    %v140 = vld [vmem:[#allocation3 + $0xd8] sm:$0xff]
    %v141 = vld [vmem:[#allocation3 + $0xe0] sm:$0xff]
    %v142 = vld [vmem:[#allocation3 + $0xe8] sm:$0xff]
    %v143 = vld [vmem:[#allocation3 + $0xf0] sm:$0xff]
    %v144 = vld [vmem:[#allocation3 + $0xf8] sm:$0xff]
    %v145 = vld [vmem:[#allocation3 + $0x100] sm:$0xff]
    %v146 = vld [vmem:[#allocation3 + $0x108] sm:$0xff]
    %v147 = vld [vmem:[#allocation3 + $0x110] sm:$0xff]
    %v148 = vld [vmem:[#allocation3 + $0x118] sm:$0xff]
    %v149 = vld [vmem:[#allocation3 + $0x120] sm:$0xff]
    %v150 = vld [vmem:[#allocation3 + $0x128] sm:$0xff]
    %v151 = vld [vmem:[#allocation3 + $0x130] sm:$0xff]
    %v152 = vld [vmem:[#allocation3 + $0x138] sm:$0xff]
    %v153 = vld [vmem:[#allocation3 + $0x140] sm:$0xff]
    %v154 = vld [vmem:[#allocation3 + $0x148] sm:$0xff]
    %v155 = vld [vmem:[#allocation3 + $0x150] sm:$0xff]
    %v156 = vld [vmem:[#allocation3 + $0x158] sm:$0xff]
    %v157 = vld [vmem:[#allocation3 + $0x160] sm:$0xff]
    %v158 = vld [vmem:[#allocation3 + $0x168] sm:$0xff]
    %v159 = vld [vmem:[#allocation3 + $0x170] sm:$0xff]
    %v160 = vld [vmem:[#allocation3 + $0x178] sm:$0xff]
    %v161 = vld [vmem:[#allocation3 + $0x180] sm:$0xff]
    %v162 = vld [vmem:[#allocation3 + $0x188] sm:$0xff]
    %v163 = vld [vmem:[#allocation3 + $0x190] sm:$0xff]
    %v164 = vld [vmem:[#allocation3 + $0x198] sm:$0xff]
    %v165 = vld [vmem:[#allocation3 + $0x1a0] sm:$0xff]
    %v166 = vld [vmem:[#allocation3 + $0x1a8] sm:$0xff]
    %v167 = vld [vmem:[#allocation3 + $0x1b0] sm:$0xff]
    %v168 = vld [vmem:[#allocation3 + $0x1b8] sm:$0xff]
    %v169 = vld [vmem:[#allocation3 + $0x1c0] sm:$0xff]
    %v170 = vld [vmem:[#allocation3 + $0x1c8] sm:$0xff]
    %v171 = vld [vmem:[#allocation3 + $0x1d0] sm:$0xff]
    %v172 = vld [vmem:[#allocation3 + $0x1d8] sm:$0xff]
    %v173 = vld [vmem:[#allocation3 + $0x1e0] sm:$0xff]
    %v174 = vld [vmem:[#allocation3 + $0x1e8] sm:$0xff]
    %v175 = vld [vmem:[#allocation3 + $0x1f0] sm:$0xff]
    %v176 = vld [vmem:[#allocation3 + $0x1f8] sm:$0xff]
    %v177 = vld [vmem:[#allocation3 + $0x200] sm:$0xff]
    %v178 = vld [vmem:[#allocation3 + $0x208] sm:$0xff]
    %v179 = vld [vmem:[#allocation3 + $0x210] sm:$0xff]
    %v180 = vld [vmem:[#allocation3 + $0x218] sm:$0xff]
    %v181 = vld [vmem:[#allocation3 + $0x220] sm:$0xff]
    %v182 = vld [vmem:[#allocation3 + $0x228] sm:$0xff]
    %v183 = vld [vmem:[#allocation3 + $0x230] sm:$0xff]
    %v184 = vld [vmem:[#allocation3 + $0x238] sm:$0xff]
    %v185 = vld [vmem:[#allocation3 + $0x240] sm:$0xff]
    %v186 = vld [vmem:[#allocation3 + $0x248] sm:$0xff]
    %v187 = vld [vmem:[#allocation3 + $0x250] sm:$0xff]
    %v188 = vld [vmem:[#allocation3 + $0x258] sm:$0xff]
    %v189 = vld [vmem:[#allocation3 + $0x260] sm:$0xff]
    %v190 = vld [vmem:[#allocation3 + $0x268] sm:$0xff]
    %v191 = vld [vmem:[#allocation3 + $0x270] sm:$0xff]
    %v192 = vld [vmem:[#allocation3 + $0x278] sm:$0xff]
    %v193 = vld [vmem:[#allocation3 + $0x280] sm:$0xff]
    %v194 = vld [vmem:[#allocation3 + $0x288] sm:$0xff]
    %v195 = vld [vmem:[#allocation3 + $0x290] sm:$0xff]
    %v196 = vld [vmem:[#allocation3 + $0x298] sm:$0xff]
    %v197 = vld [vmem:[#allocation3 + $0x2a0] sm:$0xff]
    %v198 = vld [vmem:[#allocation3 + $0x2a8] sm:$0xff]
    %v199 = vld [vmem:[#allocation3 + $0x2b0] sm:$0xff]
    %v200 = vld [vmem:[#allocation3 + $0x2b8] sm:$0xff]
    %v201 = vld [vmem:[#allocation3 + $0x2c0] sm:$0xff]
    %v202 = vld [vmem:[#allocation3 + $0x2c8] sm:$0xff]
    %v203 = vld [vmem:[#allocation3 + $0x2d0] sm:$0xff]
    %v204 = vld [vmem:[#allocation3 + $0x2d8] sm:$0xff]
    %v205 = vld [vmem:[#allocation3 + $0x2e0] sm:$0xff]
    %v206 = vld [vmem:[#allocation3 + $0x2e8] sm:$0xff]
    %v207 = vld [vmem:[#allocation3 + $0x2f0] sm:$0xff]
    %v208 = vld [vmem:[#allocation3 + $0x2f8] sm:$0xff]
    %v209 = vld [vmem:[#allocation3 + $0x300] sm:$0xff]
    %v210 = vld [vmem:[#allocation3 + $0x308] sm:$0xff]
    %v211 = vld [vmem:[#allocation3 + $0x310] sm:$0xff]
    %v212 = vld [vmem:[#allocation3 + $0x318] sm:$0xff]
    %v213 = vld [vmem:[#allocation3 + $0x320] sm:$0xff]
    %v214 = vld [vmem:[#allocation3 + $0x328] sm:$0xff]
    %v215 = vld [vmem:[#allocation3 + $0x330] sm:$0xff]
    %v216 = vld [vmem:[#allocation3 + $0x338] sm:$0xff]
    %v217 = vld [vmem:[#allocation3 + $0x340] sm:$0xff]
    %v218 = vld [vmem:[#allocation3 + $0x348] sm:$0xff]
    %v219 = vld [vmem:[#allocation3 + $0x350] sm:$0xff]
    %v220 = vld [vmem:[#allocation3 + $0x358] sm:$0xff]
    %v221 = vld [vmem:[#allocation3 + $0x360] sm:$0xff]
    %v222 = vld [vmem:[#allocation3 + $0x368] sm:$0xff]
    %v223 = vld [vmem:[#allocation3 + $0x370] sm:$0xff]
    %v224 = vld [vmem:[#allocation3 + $0x378] sm:$0xff]
    %v225 = vld [vmem:[#allocation3 + $0x380] sm:$0xff]
    %v226 = vld [vmem:[#allocation3 + $0x388] sm:$0xff]
    %v227 = vld [vmem:[#allocation3 + $0x390] sm:$0xff]
    %v228 = vld [vmem:[#allocation3 + $0x398] sm:$0xff]
    %v229 = vld [vmem:[#allocation3 + $0x3a0] sm:$0xff]
    %v230 = vld [vmem:[#allocation3 + $0x3a8] sm:$0xff]
    %v231 = vld [vmem:[#allocation3 + $0x3b0] sm:$0xff]
    %v232 = vld [vmem:[#allocation3 + $0x3b8] sm:$0xff]
    %v233 = vld [vmem:[#allocation3 + $0x3c0] sm:$0xff]
    %v234 = vld [vmem:[#allocation3 + $0x3c8] sm:$0xff]
    %v235 = vld [vmem:[#allocation3 + $0x3d0] sm:$0xff]
    %v236 = vld [vmem:[#allocation3 + $0x3d8] sm:$0xff]
    %v237 = vld [vmem:[#allocation3 + $0x3e0] sm:$0xff]
    %v238 = vld [vmem:[#allocation3 + $0x3e8] sm:$0xff]
    %v239 = vld [vmem:[#allocation3 + $0x3f0] sm:$0xff]
    %v240 = vld [vmem:[#allocation3 + $0x3f8] sm:$0xff]
    %v241 = vld [vmem:[#allocation3 + $0x400] sm:$0xff]
    %v242 = vld [vmem:[#allocation3 + $0x408] sm:$0xff]
    %v243 = vld [vmem:[#allocation3 + $0x410] sm:$0xff]
    %v244 = vld [vmem:[#allocation3 + $0x418] sm:$0xff]
    %v245 = vld [vmem:[#allocation3 + $0x420] sm:$0xff]
    %v246 = vld [vmem:[#allocation3 + $0x428] sm:$0xff]
    %v247 = vld [vmem:[#allocation3 + $0x430] sm:$0xff]
    %v248 = vld [vmem:[#allocation3 + $0x438] sm:$0xff]
    %v249 = vld [vmem:[#allocation3 + $0x440] sm:$0xff]
    %v250 = vld [vmem:[#allocation3 + $0x448] sm:$0xff]
    %v251 = vld [vmem:[#allocation3 + $0x450] sm:$0xff]
    %v252 = vld [vmem:[#allocation3 + $0x458] sm:$0xff]
    %v253 = vld [vmem:[#allocation3 + $0x460] sm:$0xff]
    %v254 = vld [vmem:[#allocation3 + $0x468] sm:$0xff]
    %v255 = vld [vmem:[#allocation3 + $0x470] sm:$0xff]
    %v256 = vld [vmem:[#allocation3 + $0x478] sm:$0xff]
    %v257 = vld [vmem:[#allocation3 + $0x480] sm:$0xff]
    %v258 = vld [vmem:[#allocation3 + $0x488] sm:$0xff]
    %v259 = vld [vmem:[#allocation3 + $0x490] sm:$0xff]
    %v260 = vld [vmem:[#allocation3 + $0x498] sm:$0xff]
    %v261 = vld [vmem:[#allocation3 + $0x4a0] sm:$0xff]
    %v262 = vld [vmem:[#allocation3 + $0x4a8] sm:$0xff]
    %v263 = vld [vmem:[#allocation3 + $0x4b0] sm:$0xff]
    %v264 = vld [vmem:[#allocation3 + $0x4b8] sm:$0xff]
    %v265 = vld [vmem:[#allocation3 + $0x4c0] sm:$0xff]
    %v266 = vld [vmem:[#allocation3 + $0x4c8] sm:$0xff]
    %v267 = vld [vmem:[#allocation3 + $0x4d0] sm:$0xff]
    %v268 = vld [vmem:[#allocation3 + $0x4d8] sm:$0xff]
    %v269 = vld [vmem:[#allocation3 + $0x4e0] sm:$0xff]
    %v270 = vld [vmem:[#allocation3 + $0x4e8] sm:$0xff]
    %v271 = vld [vmem:[#allocation3 + $0x4f0] sm:$0xff]
    %v272 = vld [vmem:[#allocation3 + $0x4f8] sm:$0xff]
    %v273 = vld [vmem:[#allocation3 + $0x500] sm:$0xff]
    %v274 = vld [vmem:[#allocation3 + $0x508] sm:$0xff]
    %v275 = vld [vmem:[#allocation3 + $0x510] sm:$0xff]
    %v276 = vld [vmem:[#allocation3 + $0x518] sm:$0xff]
    %v277 = vld [vmem:[#allocation3 + $0x520] sm:$0xff]
    %v278 = vld [vmem:[#allocation3 + $0x528] sm:$0xff]
    %v279 = vld [vmem:[#allocation3 + $0x530] sm:$0xff]
    %v280 = vld [vmem:[#allocation3 + $0x538] sm:$0xff]
    %v281 = vld [vmem:[#allocation3 + $0x540] sm:$0xff]
    %v282 = vld [vmem:[#allocation3 + $0x548] sm:$0xff]
    %v283 = vld [vmem:[#allocation3 + $0x550] sm:$0xff]
    %v284 = vld [vmem:[#allocation3 + $0x558] sm:$0xff]
    %v285 = vld [vmem:[#allocation3 + $0x560] sm:$0xff]
    %v286 = vld [vmem:[#allocation3 + $0x568] sm:$0xff]
    %v287 = vld [vmem:[#allocation3 + $0x570] sm:$0xff]
    %v288 = vld [vmem:[#allocation3 + $0x578] sm:$0xff]
    %v289 = vld [vmem:[#allocation3 + $0x580] sm:$0xff]
    %v290 = vld [vmem:[#allocation3 + $0x588] sm:$0xff]
    %v291 = vld [vmem:[#allocation3 + $0x590] sm:$0xff]
    %v292 = vld [vmem:[#allocation3 + $0x598] sm:$0xff]
    %v293 = vld [vmem:[#allocation3 + $0x5a0] sm:$0xff]
    %v294 = vld [vmem:[#allocation3 + $0x5a8] sm:$0xff]
    %v295 = vld [vmem:[#allocation3 + $0x5b0] sm:$0xff]
    %v296 = vld [vmem:[#allocation3 + $0x5b8] sm:$0xff]
    %v297 = vld [vmem:[#allocation3 + $0x5c0] sm:$0xff]
    %v298 = vld [vmem:[#allocation3 + $0x5c8] sm:$0xff]
    %v299 = vld [vmem:[#allocation3 + $0x5d0] sm:$0xff]
    %v300 = vld [vmem:[#allocation3 + $0x5d8] sm:$0xff]
    %v301 = vld [vmem:[#allocation3 + $0x5e0] sm:$0xff]
    %v302 = vld [vmem:[#allocation3 + $0x5e8] sm:$0xff]
    %v303 = vld [vmem:[#allocation3 + $0x5f0] sm:$0xff]
    %v304 = vld [vmem:[#allocation3 + $0x5f8] sm:$0xff]
    %v305 = vld [vmem:[#allocation3 + $0x600] sm:$0xff]
    %v306 = vld [vmem:[#allocation3 + $0x608] sm:$0xff]
    %v307 = vld [vmem:[#allocation3 + $0x610] sm:$0xff]
    %v308 = vld [vmem:[#allocation3 + $0x618] sm:$0xff]
    %v309 = vld [vmem:[#allocation3 + $0x620] sm:$0xff]
    %v310 = vld [vmem:[#allocation3 + $0x628] sm:$0xff]
    %v311 = vld [vmem:[#allocation3 + $0x630] sm:$0xff]
    %v312 = vld [vmem:[#allocation3 + $0x638] sm:$0xff]
    %v313 = vld [vmem:[#allocation3 + $0x640] sm:$0xff]
    %v314 = vld [vmem:[#allocation3 + $0x648] sm:$0xff]
    %v315 = vld [vmem:[#allocation3 + $0x650] sm:$0xff]
    %v316 = vld [vmem:[#allocation3 + $0x658] sm:$0xff]
    %v317 = vld [vmem:[#allocation3 + $0x660] sm:$0xff]
    %v318 = vld [vmem:[#allocation3 + $0x668] sm:$0xff]
    %v319 = vld [vmem:[#allocation3 + $0x670] sm:$0xff]
    %v320 = vld [vmem:[#allocation3 + $0x678] sm:$0xff]
    %v321 = vld [vmem:[#allocation3 + $0x680] sm:$0xff]
    %v322 = vld [vmem:[#allocation3 + $0x688] sm:$0xff]
    %v323 = vld [vmem:[#allocation3 + $0x690] sm:$0xff]
    %v324 = vld [vmem:[#allocation3 + $0x698] sm:$0xff]
    %v325 = vld [vmem:[#allocation3 + $0x6a0] sm:$0xff]
    %v326 = vld [vmem:[#allocation3 + $0x6a8] sm:$0xff]
    %v327 = vld [vmem:[#allocation3 + $0x6b0] sm:$0xff]
    %v328 = vld [vmem:[#allocation3 + $0x6b8] sm:$0xff]
    %v329 = vld [vmem:[#allocation3 + $0x6c0] sm:$0xff]
    %v330 = vld [vmem:[#allocation3 + $0x6c8] sm:$0xff]
    %v331 = vld [vmem:[#allocation3 + $0x6d0] sm:$0xff]
    %v332 = vld [vmem:[#allocation3 + $0x6d8] sm:$0xff]
    %v333 = vld [vmem:[#allocation3 + $0x6e0] sm:$0xff]
    %v334 = vld [vmem:[#allocation3 + $0x6e8] sm:$0xff]
    %v335 = vld [vmem:[#allocation3 + $0x6f0] sm:$0xff]
    %v336 = vld [vmem:[#allocation3 + $0x6f8] sm:$0xff]
    %v337 = vld [vmem:[#allocation3 + $0x700] sm:$0xff]
    %v338 = vld [vmem:[#allocation3 + $0x708] sm:$0xff]
    %v339 = vld [vmem:[#allocation3 + $0x710] sm:$0xff]
    %v340 = vld [vmem:[#allocation3 + $0x718] sm:$0xff]
    %v341 = vld [vmem:[#allocation3 + $0x720] sm:$0xff]
    %v342 = vld [vmem:[#allocation3 + $0x728] sm:$0xff]
    %v343 = vld [vmem:[#allocation3 + $0x730] sm:$0xff]
    %v344 = vld [vmem:[#allocation3 + $0x738] sm:$0xff]
    %v345 = vld [vmem:[#allocation3 + $0x740] sm:$0xff]
    %v346 = vld [vmem:[#allocation3 + $0x748] sm:$0xff]
    %v347 = vld [vmem:[#allocation3 + $0x750] sm:$0xff]
    %v348 = vld [vmem:[#allocation3 + $0x758] sm:$0xff]
    %v349 = vld [vmem:[#allocation3 + $0x760] sm:$0xff]
    %v350 = vld [vmem:[#allocation3 + $0x768] sm:$0xff]
    %v351 = vld [vmem:[#allocation3 + $0x770] sm:$0xff]
    %v352 = vld [vmem:[#allocation3 + $0x778] sm:$0xff]
    %v353 = vld [vmem:[#allocation3 + $0x780] sm:$0xff]
    %v354 = vld [vmem:[#allocation3 + $0x788] sm:$0xff]
    %v355 = vld [vmem:[#allocation3 + $0x790] sm:$0xff]
    %v356 = vld [vmem:[#allocation3 + $0x798] sm:$0xff]
    %v357 = vld [vmem:[#allocation3 + $0x7a0] sm:$0xff]
    %v358 = vld [vmem:[#allocation3 + $0x7a8] sm:$0xff]
    %v359 = vld [vmem:[#allocation3 + $0x7b0] sm:$0xff]
    %v360 = vld [vmem:[#allocation3 + $0x7b8] sm:$0xff]
    %v361 = vld [vmem:[#allocation3 + $0x7c0] sm:$0xff]
    %v362 = vld [vmem:[#allocation3 + $0x7c8] sm:$0xff]
    %v363 = vld [vmem:[#allocation3 + $0x7d0] sm:$0xff]
    %v364 = vld [vmem:[#allocation3 + $0x7d8] sm:$0xff]
    %v365 = vld [vmem:[#allocation3 + $0x7e0] sm:$0xff]
    %v366 = vld [vmem:[#allocation3 + $0x7e8] sm:$0xff]
    %v367 = vld [vmem:[#allocation3 + $0x7f0] sm:$0xff]
    %v368 = vld [vmem:[#allocation3 + $0x7f8] sm:$0xff]
    %v369 = vld [vmem:[#allocation3 + $0x800] sm:$0xff]
    %v370 = vld [vmem:[#allocation3 + $0x808] sm:$0xff]
    %v371 = vld [vmem:[#allocation3 + $0x810] sm:$0xff]
    %v372 = vld [vmem:[#allocation3 + $0x818] sm:$0xff]
    %v373 = vld [vmem:[#allocation3 + $0x820] sm:$0xff]
    %v374 = vld [vmem:[#allocation3 + $0x828] sm:$0xff]
    %v375 = vld [vmem:[#allocation3 + $0x830] sm:$0xff]
    %v376 = vld [vmem:[#allocation3 + $0x838] sm:$0xff]
    %v377 = vld [vmem:[#allocation3 + $0x840] sm:$0xff]
    %v378 = vld [vmem:[#allocation3 + $0x848] sm:$0xff]
    %v379 = vld [vmem:[#allocation3 + $0x850] sm:$0xff]
    %v380 = vld [vmem:[#allocation3 + $0x858] sm:$0xff]
    %v381 = vld [vmem:[#allocation3 + $0x860] sm:$0xff]
    %v382 = vld [vmem:[#allocation3 + $0x868] sm:$0xff]
    %v383 = vld [vmem:[#allocation3 + $0x870] sm:$0xff]
    %v384 = vld [vmem:[#allocation3 + $0x878] sm:$0xff]
    %v385 = vld [vmem:[#allocation3 + $0x880] sm:$0xff]
    %v386 = vld [vmem:[#allocation3 + $0x888] sm:$0xff]
    %v387 = vld [vmem:[#allocation3 + $0x890] sm:$0xff]
    %v388 = vld [vmem:[#allocation3 + $0x898] sm:$0xff]
    %v389 = vld [vmem:[#allocation3 + $0x8a0] sm:$0xff]
    %v390 = vld [vmem:[#allocation3 + $0x8a8] sm:$0xff]
    %v391 = vld [vmem:[#allocation3 + $0x8b0] sm:$0xff]
    %v392 = vld [vmem:[#allocation3 + $0x8b8] sm:$0xff]
    %v393 = vld [vmem:[#allocation3 + $0x8c0] sm:$0xff]
    %v394 = vld [vmem:[#allocation3 + $0x8c8] sm:$0xff]
    %v395 = vld [vmem:[#allocation3 + $0x8d0] sm:$0xff]
    %v396 = vld [vmem:[#allocation3 + $0x8d8] sm:$0xff]
    %v397 = vld [vmem:[#allocation3 + $0x8e0] sm:$0xff]
    %v398 = vld [vmem:[#allocation3 + $0x8e8] sm:$0xff]
    %v399 = vld [vmem:[#allocation3 + $0x8f0] sm:$0xff]
    %v400 = vld [vmem:[#allocation3 + $0x8f8] sm:$0xff]
    %v401 = vld [vmem:[#allocation3 + $0x900] sm:$0xff]
    %v402 = vld [vmem:[#allocation3 + $0x908] sm:$0xff]
    %v403 = vld [vmem:[#allocation3 + $0x910] sm:$0xff]
    %v404 = vld [vmem:[#allocation3 + $0x918] sm:$0xff]
    %v405 = vld [vmem:[#allocation3 + $0x920] sm:$0xff]
    %v406 = vld [vmem:[#allocation3 + $0x928] sm:$0xff]
    %v407 = vld [vmem:[#allocation3 + $0x930] sm:$0xff]
    %v408 = vld [vmem:[#allocation3 + $0x938] sm:$0xff]
    %v409 = vld [vmem:[#allocation3 + $0x940] sm:$0xff]
    %v410 = vld [vmem:[#allocation3 + $0x948] sm:$0xff]
    %v411 = vld [vmem:[#allocation3 + $0x950] sm:$0xff]
    %v412 = vld [vmem:[#allocation3 + $0x958] sm:$0xff]
    %v413 = vld [vmem:[#allocation3 + $0x960] sm:$0xff]
    %v414 = vld [vmem:[#allocation3 + $0x968] sm:$0xff]
    %v415 = vld [vmem:[#allocation3 + $0x970] sm:$0xff]
    %v416 = vld [vmem:[#allocation3 + $0x978] sm:$0xff]
    %v417 = vld [vmem:[#allocation3 + $0x980] sm:$0xff]
    %v418 = vld [vmem:[#allocation3 + $0x988] sm:$0xff]
    %v419 = vld [vmem:[#allocation3 + $0x990] sm:$0xff]
    %v420 = vld [vmem:[#allocation3 + $0x998] sm:$0xff]
    %v421 = vld [vmem:[#allocation3 + $0x9a0] sm:$0xff]
    %v422 = vld [vmem:[#allocation3 + $0x9a8] sm:$0xff]
    %v423 = vld [vmem:[#allocation3 + $0x9b0] sm:$0xff]
    %v424 = vld [vmem:[#allocation3 + $0x9b8] sm:$0xff]
    %v425 = vld [vmem:[#allocation3 + $0x9c0] sm:$0xff]
    %v426 = vld [vmem:[#allocation3 + $0x9c8] sm:$0xff]
    %v427 = vld [vmem:[#allocation3 + $0x9d0] sm:$0xff]
    %v428 = vld [vmem:[#allocation3 + $0x9d8] sm:$0xff]
    %v429 = vld [vmem:[#allocation3 + $0x9e0] sm:$0xff]
    %v430 = vld [vmem:[#allocation3 + $0x9e8] sm:$0xff]
    %v431 = vld [vmem:[#allocation3 + $0x9f0] sm:$0xff]
    %v432 = vld [vmem:[#allocation3 + $0x9f8] sm:$0xff]
    %v433 = vld [vmem:[#allocation3 + $0xa00] sm:$0xff]
    %v434 = vld [vmem:[#allocation3 + $0xa08] sm:$0xff]
    %v435 = vld [vmem:[#allocation3 + $0xa10] sm:$0xff]
    %v436 = vld [vmem:[#allocation3 + $0xa18] sm:$0xff]
    %v437 = vld [vmem:[#allocation3 + $0xa20] sm:$0xff]
    %v438 = vld [vmem:[#allocation3 + $0xa28] sm:$0xff]
    %v439 = vld [vmem:[#allocation3 + $0xa30] sm:$0xff]
    %v440 = vld [vmem:[#allocation3 + $0xa38] sm:$0xff]
    %v441 = vld [vmem:[#allocation3 + $0xa40] sm:$0xff]
    %v442 = vld [vmem:[#allocation3 + $0xa48] sm:$0xff]
    %v443 = vld [vmem:[#allocation3 + $0xa50] sm:$0xff]
    %v444 = vld [vmem:[#allocation3 + $0xa58] sm:$0xff]
    %v445 = vld [vmem:[#allocation3 + $0xa60] sm:$0xff]
    %v446 = vld [vmem:[#allocation3 + $0xa68] sm:$0xff]
    %v447 = vld [vmem:[#allocation3 + $0xa70] sm:$0xff]
    %v448 = vld [vmem:[#allocation3 + $0xa78] sm:$0xff]
    %v449 = vld [vmem:[#allocation3 + $0xa80] sm:$0xff]
    %v450 = vld [vmem:[#allocation3 + $0xa88] sm:$0xff]
    %v451 = vld [vmem:[#allocation3 + $0xa90] sm:$0xff]
    %v452 = vld [vmem:[#allocation3 + $0xa98] sm:$0xff]
    %v453 = vld [vmem:[#allocation3 + $0xaa0] sm:$0xff]
    %v454 = vld [vmem:[#allocation3 + $0xaa8] sm:$0xff]
    %v455 = vld [vmem:[#allocation3 + $0xab0] sm:$0xff]
    %v456 = vld [vmem:[#allocation3 + $0xab8] sm:$0xff]
    %v457 = vld [vmem:[#allocation3 + $0xac0] sm:$0xff]
    %v458 = vld [vmem:[#allocation3 + $0xac8] sm:$0xff]
    %v459 = vld [vmem:[#allocation3 + $0xad0] sm:$0xff]
    %v460 = vld [vmem:[#allocation3 + $0xad8] sm:$0xff]
    %v461 = vld [vmem:[#allocation3 + $0xae0] sm:$0xff]
    %v462 = vld [vmem:[#allocation3 + $0xae8] sm:$0xff]
    %v463 = vld [vmem:[#allocation3 + $0xaf0] sm:$0xff]
    %v464 = vld [vmem:[#allocation3 + $0xaf8] sm:$0xff]
    %v465 = vld [vmem:[#allocation3 + $0xb00] sm:$0xff]
    %v466 = vld [vmem:[#allocation3 + $0xb08] sm:$0xff]
    %v467 = vld [vmem:[#allocation3 + $0xb10] sm:$0xff]
    %v468 = vld [vmem:[#allocation3 + $0xb18] sm:$0xff]
    %v469 = vld [vmem:[#allocation3 + $0xb20] sm:$0xff]
    %v470 = vld [vmem:[#allocation3 + $0xb28] sm:$0xff]
    %v471 = vld [vmem:[#allocation3 + $0xb30] sm:$0xff]
    %v472 = vld [vmem:[#allocation3 + $0xb38] sm:$0xff]
    %v473 = vld [vmem:[#allocation3 + $0xb40] sm:$0xff]
    %v474 = vld [vmem:[#allocation3 + $0xb48] sm:$0xff]
    %v475 = vld [vmem:[#allocation3 + $0xb50] sm:$0xff]
    %v476 = vld [vmem:[#allocation3 + $0xb58] sm:$0xff]
    %v477 = vld [vmem:[#allocation3 + $0xb60] sm:$0xff]
    %v478 = vld [vmem:[#allocation3 + $0xb68] sm:$0xff]
    %v479 = vld [vmem:[#allocation3 + $0xb70] sm:$0xff]
    %v480 = vld [vmem:[#allocation3 + $0xb78] sm:$0xff]
    %v481 = vld [vmem:[#allocation3 + $0xb80] sm:$0xff]
    %v482 = vld [vmem:[#allocation3 + $0xb88] sm:$0xff]
    %v483 = vld [vmem:[#allocation3 + $0xb90] sm:$0xff]
    %v484 = vld [vmem:[#allocation3 + $0xb98] sm:$0xff]
    %v485 = vld [vmem:[#allocation3 + $0xba0] sm:$0xff]
    %v486 = vld [vmem:[#allocation3 + $0xba8] sm:$0xff]
    %v487 = vld [vmem:[#allocation3 + $0xbb0] sm:$0xff]
    %v488 = vld [vmem:[#allocation3 + $0xbb8] sm:$0xff]
    %v489 = vld [vmem:[#allocation3 + $0xbc0] sm:$0xff]
    %v490 = vld [vmem:[#allocation3 + $0xbc8] sm:$0xff]
    %v491 = vld [vmem:[#allocation3 + $0xbd0] sm:$0xff]
    %v492 = vld [vmem:[#allocation3 + $0xbd8] sm:$0xff]
    %v493 = vld [vmem:[#allocation3 + $0xbe0] sm:$0xff]
    %v494 = vld [vmem:[#allocation3 + $0xbe8] sm:$0xff]
    %v495 = vld [vmem:[#allocation3 + $0xbf0] sm:$0xff]
    %v496 = vld [vmem:[#allocation3 + $0xbf8] sm:$0xff]
    %v497 = vld [vmem:[#allocation3 + $0xc00] sm:$0xff]
    %v498 = vld [vmem:[#allocation3 + $0xc08] sm:$0xff]
    %v499 = vld [vmem:[#allocation3 + $0xc10] sm:$0xff]
    %v500 = vld [vmem:[#allocation3 + $0xc18] sm:$0xff]
    %v501 = vld [vmem:[#allocation3 + $0xc20] sm:$0xff]
    %v502 = vld [vmem:[#allocation3 + $0xc28] sm:$0xff]
    %v503 = vld [vmem:[#allocation3 + $0xc30] sm:$0xff]
    %v504 = vld [vmem:[#allocation3 + $0xc38] sm:$0xff]
    %v505 = vld [vmem:[#allocation3 + $0xc40] sm:$0xff]
    %v506 = vld [vmem:[#allocation3 + $0xc48] sm:$0xff]
    %v507 = vld [vmem:[#allocation3 + $0xc50] sm:$0xff]
    %v508 = vld [vmem:[#allocation3 + $0xc58] sm:$0xff]
    %v509 = vld [vmem:[#allocation3 + $0xc60] sm:$0xff]
    %v510 = vld [vmem:[#allocation3 + $0xc68] sm:$0xff]
    %v511 = vld [vmem:[#allocation3 + $0xc70] sm:$0xff]
    %v512 = vld [vmem:[#allocation3 + $0xc78] sm:$0xff]
    %v513 = vld [vmem:[#allocation3 + $0xc80] sm:$0xff]
    %v514 = vld [vmem:[#allocation3 + $0xc88] sm:$0xff]
    %v515 = vld [vmem:[#allocation3 + $0xc90] sm:$0xff]
    %v516 = vld [vmem:[#allocation3 + $0xc98] sm:$0xff]
    %v517 = vld [vmem:[#allocation3 + $0xca0] sm:$0xff]
    %v518 = vld [vmem:[#allocation3 + $0xca8] sm:$0xff]
    %v519 = vld [vmem:[#allocation3 + $0xcb0] sm:$0xff]
    %v520 = vld [vmem:[#allocation3 + $0xcb8] sm:$0xff]
    %v521 = vld [vmem:[#allocation3 + $0xcc0] sm:$0xff]
    %v522 = vld [vmem:[#allocation3 + $0xcc8] sm:$0xff]
    %v523 = vld [vmem:[#allocation3 + $0xcd0] sm:$0xff]
    %v524 = vld [vmem:[#allocation3 + $0xcd8] sm:$0xff]
    %v525 = vld [vmem:[#allocation3 + $0xce0] sm:$0xff]
    %v526 = vld [vmem:[#allocation3 + $0xce8] sm:$0xff]
    %v527 = vld [vmem:[#allocation3 + $0xcf0] sm:$0xff]
    %v528 = vld [vmem:[#allocation3 + $0xcf8] sm:$0xff]
    %v529 = vld [vmem:[#allocation3 + $0xd00] sm:$0xff]
    %v530 = vld [vmem:[#allocation3 + $0xd08] sm:$0xff]
    %v531 = vld [vmem:[#allocation3 + $0xd10] sm:$0xff]
    %v532 = vld [vmem:[#allocation3 + $0xd18] sm:$0xff]
    %v533 = vld [vmem:[#allocation3 + $0xd20] sm:$0xff]
    %v534 = vld [vmem:[#allocation3 + $0xd28] sm:$0xff]
    %v535 = vld [vmem:[#allocation3 + $0xd30] sm:$0xff]
    %v536 = vld [vmem:[#allocation3 + $0xd38] sm:$0xff]
    %v537 = vld [vmem:[#allocation3 + $0xd40] sm:$0xff]
    %v538 = vld [vmem:[#allocation3 + $0xd48] sm:$0xff]
    %v539 = vld [vmem:[#allocation3 + $0xd50] sm:$0xff]
    %v540 = vld [vmem:[#allocation3 + $0xd58] sm:$0xff]
    %v541 = vld [vmem:[#allocation3 + $0xd60] sm:$0xff]
    %v542 = vld [vmem:[#allocation3 + $0xd68] sm:$0xff]
    %v543 = vld [vmem:[#allocation3 + $0xd70] sm:$0xff]
    %v544 = vld [vmem:[#allocation3 + $0xd78] sm:$0xff]
    %v545 = vld [vmem:[#allocation3 + $0xd80] sm:$0xff]
    %v546 = vld [vmem:[#allocation3 + $0xd88] sm:$0xff]
    %v547 = vld [vmem:[#allocation3 + $0xd90] sm:$0xff]
    %v548 = vld [vmem:[#allocation3 + $0xd98] sm:$0xff]
    %v549 = vld [vmem:[#allocation3 + $0xda0] sm:$0xff]
    %v550 = vld [vmem:[#allocation3 + $0xda8] sm:$0xff]
    %v551 = vld [vmem:[#allocation3 + $0xdb0] sm:$0xff]
    %v552 = vld [vmem:[#allocation3 + $0xdb8] sm:$0xff]
    %v553 = vld [vmem:[#allocation3 + $0xdc0] sm:$0xff]
    %v554 = vld [vmem:[#allocation3 + $0xdc8] sm:$0xff]
    %v555 = vld [vmem:[#allocation3 + $0xdd0] sm:$0xff]
    %v556 = vld [vmem:[#allocation3 + $0xdd8] sm:$0xff]
    %v557 = vld [vmem:[#allocation3 + $0xde0] sm:$0xff]
    %v558 = vld [vmem:[#allocation3 + $0xde8] sm:$0xff]
    %v559 = vld [vmem:[#allocation3 + $0xdf0] sm:$0xff]
    %v560 = vld [vmem:[#allocation3 + $0xdf8] sm:$0xff]
    %v561 = vld [vmem:[#allocation3 + $0xe00] sm:$0xff]
    %v562 = vld [vmem:[#allocation3 + $0xe08] sm:$0xff]
    %v563 = vld [vmem:[#allocation3 + $0xe10] sm:$0xff]
    %v564 = vld [vmem:[#allocation3 + $0xe18] sm:$0xff]
    %v565 = vld [vmem:[#allocation3 + $0xe20] sm:$0xff]
    %v566 = vld [vmem:[#allocation3 + $0xe28] sm:$0xff]
    %v567 = vld [vmem:[#allocation3 + $0xe30] sm:$0xff]
    %v568 = vld [vmem:[#allocation3 + $0xe38] sm:$0xff]
    %v569 = vld [vmem:[#allocation3 + $0xe40] sm:$0xff]
    %v570 = vld [vmem:[#allocation3 + $0xe48] sm:$0xff]
    %v571 = vld [vmem:[#allocation3 + $0xe50] sm:$0xff]
    %v572 = vld [vmem:[#allocation3 + $0xe58] sm:$0xff]
    %v573 = vld [vmem:[#allocation3 + $0xe60] sm:$0xff]
    %v574 = vld [vmem:[#allocation3 + $0xe68] sm:$0xff]
    %v575 = vld [vmem:[#allocation3 + $0xe70] sm:$0xff]
    %v576 = vld [vmem:[#allocation3 + $0xe78] sm:$0xff]
    %v577 = vld [vmem:[#allocation3 + $0xe80] sm:$0xff]
    %v578 = vld [vmem:[#allocation3 + $0xe88] sm:$0xff]
    %v579 = vld [vmem:[#allocation3 + $0xe90] sm:$0xff]
    %v580 = vld [vmem:[#allocation3 + $0xe98] sm:$0xff]
    %v581 = vld [vmem:[#allocation3 + $0xea0] sm:$0xff]
    %v582 = vld [vmem:[#allocation3 + $0xea8] sm:$0xff]
    %v583 = vld [vmem:[#allocation3 + $0xeb0] sm:$0xff]
    %v584 = vld [vmem:[#allocation3 + $0xeb8] sm:$0xff]
    %v585 = vld [vmem:[#allocation3 + $0xec0] sm:$0xff]
    %v586 = vld [vmem:[#allocation3 + $0xec8] sm:$0xff]
    %v587 = vld [vmem:[#allocation3 + $0xed0] sm:$0xff]
    %v588 = vld [vmem:[#allocation3 + $0xed8] sm:$0xff]
    %v589 = vld [vmem:[#allocation3 + $0xee0] sm:$0xff]
    %v590 = vld [vmem:[#allocation3 + $0xee8] sm:$0xff]
    %v591 = vld [vmem:[#allocation3 + $0xef0] sm:$0xff]
    %v592 = vld [vmem:[#allocation3 + $0xef8] sm:$0xff]
    %v593 = vld [vmem:[#allocation3 + $0xf00] sm:$0xff]
    %v594 = vld [vmem:[#allocation3 + $0xf08] sm:$0xff]
    %v595 = vld [vmem:[#allocation3 + $0xf10] sm:$0xff]
    %v596 = vld [vmem:[#allocation3 + $0xf18] sm:$0xff]
    %v597 = vld [vmem:[#allocation3 + $0xf20] sm:$0xff]
    %v598 = vld [vmem:[#allocation3 + $0xf28] sm:$0xff]
    %v599 = vld [vmem:[#allocation3 + $0xf30] sm:$0xff]
    %v600 = vld [vmem:[#allocation3 + $0xf38] sm:$0xff]
    %v601 = vld [vmem:[#allocation3 + $0xf40] sm:$0xff]
    %v602 = vld [vmem:[#allocation3 + $0xf48] sm:$0xff]
    %v603 = vld [vmem:[#allocation3 + $0xf50] sm:$0xff]
    %v604 = vld [vmem:[#allocation3 + $0xf58] sm:$0xff]
    %v605 = vld [vmem:[#allocation3 + $0xf60] sm:$0xff]
    %v606 = vld [vmem:[#allocation3 + $0xf68] sm:$0xff]
    %v607 = vld [vmem:[#allocation3 + $0xf70] sm:$0xff]
    %v608 = vld [vmem:[#allocation3 + $0xf78] sm:$0xff]
    %v609 = vld [vmem:[#allocation3 + $0xf80] sm:$0xff]
    %v610 = vld [vmem:[#allocation3 + $0xf88] sm:$0xff]
    %v611 = vld [vmem:[#allocation3 + $0xf90] sm:$0xff]
    %v612 = vld [vmem:[#allocation3 + $0xf98] sm:$0xff]
    %v613 = vld [vmem:[#allocation3 + $0xfa0] sm:$0xff]
    %v614 = vld [vmem:[#allocation3 + $0xfa8] sm:$0xff]
    %v615 = vld [vmem:[#allocation3 + $0xfb0] sm:$0xff]
    %v616 = vld [vmem:[#allocation3 + $0xfb8] sm:$0xff]
    %v617 = vld [vmem:[#allocation3 + $0xfc0] sm:$0xff]
    %v618 = vld [vmem:[#allocation3 + $0xfc8] sm:$0xff]
    %v619 = vld [vmem:[#allocation3 + $0xfd0] sm:$0xff]
    %v620 = vld [vmem:[#allocation3 + $0xfd8] sm:$0xff]
    %v621 = vld [vmem:[#allocation3 + $0xfe0] sm:$0xff]
    %v622 = vld [vmem:[#allocation3 + $0xfe8] sm:$0xff]
    %v623 = vld [vmem:[#allocation3 + $0xff0] sm:$0xff]
    %v624 = vld [vmem:[#allocation3 + $0xff8] sm:$0xff]
    %v625 = vld [vmem:[#allocation8] sm:$0xff]
    %v626 = vstv %s86
    %v627 = vmul.f32 %v626, %v625
    %v1140 = vunpack.c.l.b16 %v113
    %v1141 = vunpack.c.h.b16 %v113
    %v1142 = vunpack.c.l.b16 %v114
    %v1143 = vunpack.c.h.b16 %v114
    %v1144 = vunpack.c.l.b16 %v115
    %v1145 = vunpack.c.h.b16 %v115
    %v1146 = vunpack.c.l.b16 %v116
    %v1147 = vunpack.c.h.b16 %v116
    %v1148 = vunpack.c.l.b16 %v117
    %v1149 = vunpack.c.h.b16 %v117
    %v1150 = vunpack.c.l.b16 %v118
    %v1151 = vunpack.c.h.b16 %v118
    %v1152 = vunpack.c.l.b16 %v119
    %v1153 = vunpack.c.h.b16 %v119
    %v1154 = vunpack.c.l.b16 %v120
    %v1155 = vunpack.c.h.b16 %v120
    %v1156 = vunpack.c.l.b16 %v121
    %v1157 = vunpack.c.h.b16 %v121
    %v1158 = vunpack.c.l.b16 %v122
    %v1159 = vunpack.c.h.b16 %v122
    %v1160 = vunpack.c.l.b16 %v123
    %v1161 = vunpack.c.h.b16 %v123
    %v1162 = vunpack.c.l.b16 %v124
    %v1163 = vunpack.c.h.b16 %v124
    %v1164 = vunpack.c.l.b16 %v125
    %v1165 = vunpack.c.h.b16 %v125
    %v1166 = vunpack.c.l.b16 %v126
    %v1167 = vunpack.c.h.b16 %v126
    %v1168 = vunpack.c.l.b16 %v127
    %v1169 = vunpack.c.h.b16 %v127
    %v1170 = vunpack.c.l.b16 %v128
    %v1171 = vunpack.c.h.b16 %v128
    %v1172 = vunpack.c.l.b16 %v129
    %v1173 = vunpack.c.h.b16 %v129
    %v1174 = vunpack.c.l.b16 %v130
    %v1175 = vunpack.c.h.b16 %v130
    %v1176 = vunpack.c.l.b16 %v131
    %v1177 = vunpack.c.h.b16 %v131
    %v1178 = vunpack.c.l.b16 %v132
    %v1179 = vunpack.c.h.b16 %v132
    %v1180 = vunpack.c.l.b16 %v133
    %v1181 = vunpack.c.h.b16 %v133
    %v1182 = vunpack.c.l.b16 %v134
    %v1183 = vunpack.c.h.b16 %v134
    %v1184 = vunpack.c.l.b16 %v135
    %v1185 = vunpack.c.h.b16 %v135
    %v1186 = vunpack.c.l.b16 %v136
    %v1187 = vunpack.c.h.b16 %v136
    %v1188 = vunpack.c.l.b16 %v137
    %v1189 = vunpack.c.h.b16 %v137
    %v1190 = vunpack.c.l.b16 %v138
    %v1191 = vunpack.c.h.b16 %v138
    %v1192 = vunpack.c.l.b16 %v139
    %v1193 = vunpack.c.h.b16 %v139
    %v1194 = vunpack.c.l.b16 %v140
    %v1195 = vunpack.c.h.b16 %v140
    %v1196 = vunpack.c.l.b16 %v141
    %v1197 = vunpack.c.h.b16 %v141
    %v1198 = vunpack.c.l.b16 %v142
    %v1199 = vunpack.c.h.b16 %v142
    %v1200 = vunpack.c.l.b16 %v143
    %v1201 = vunpack.c.h.b16 %v143
    %v1202 = vunpack.c.l.b16 %v144
    %v1203 = vunpack.c.h.b16 %v144
    %v1204 = vunpack.c.l.b16 %v145
    %v1205 = vunpack.c.h.b16 %v145
    %v1206 = vunpack.c.l.b16 %v146
    %v1207 = vunpack.c.h.b16 %v146
    %v1208 = vunpack.c.l.b16 %v147
    %v1209 = vunpack.c.h.b16 %v147
    %v1210 = vunpack.c.l.b16 %v148
    %v1211 = vunpack.c.h.b16 %v148
    %v1212 = vunpack.c.l.b16 %v149
    %v1213 = vunpack.c.h.b16 %v149
    %v1214 = vunpack.c.l.b16 %v150
    %v1215 = vunpack.c.h.b16 %v150
    %v1216 = vunpack.c.l.b16 %v151
    %v1217 = vunpack.c.h.b16 %v151
    %v1218 = vunpack.c.l.b16 %v152
    %v1219 = vunpack.c.h.b16 %v152
    %v1220 = vunpack.c.l.b16 %v153
    %v1221 = vunpack.c.h.b16 %v153
    %v1222 = vunpack.c.l.b16 %v154
    %v1223 = vunpack.c.h.b16 %v154
    %v1224 = vunpack.c.l.b16 %v155
    %v1225 = vunpack.c.h.b16 %v155
    %v1226 = vunpack.c.l.b16 %v156
    %v1227 = vunpack.c.h.b16 %v156
    %v1228 = vunpack.c.l.b16 %v157
    %v1229 = vunpack.c.h.b16 %v157
    %v1230 = vunpack.c.l.b16 %v158
    %v1231 = vunpack.c.h.b16 %v158
    %v1232 = vunpack.c.l.b16 %v159
    %v1233 = vunpack.c.h.b16 %v159
    %v1234 = vunpack.c.l.b16 %v160
    %v1235 = vunpack.c.h.b16 %v160
    %v1236 = vunpack.c.l.b16 %v161
    %v1237 = vunpack.c.h.b16 %v161
    %v1238 = vunpack.c.l.b16 %v162
    %v1239 = vunpack.c.h.b16 %v162
    %v1240 = vunpack.c.l.b16 %v163
    %v1241 = vunpack.c.h.b16 %v163
    %v1242 = vunpack.c.l.b16 %v164
    %v1243 = vunpack.c.h.b16 %v164
    %v1244 = vunpack.c.l.b16 %v165
    %v1245 = vunpack.c.h.b16 %v165
    %v1246 = vunpack.c.l.b16 %v166
    %v1247 = vunpack.c.h.b16 %v166
    %v1248 = vunpack.c.l.b16 %v167
    %v1249 = vunpack.c.h.b16 %v167
    %v1250 = vunpack.c.l.b16 %v168
    %v1251 = vunpack.c.h.b16 %v168
    %v1252 = vunpack.c.l.b16 %v169
    %v1253 = vunpack.c.h.b16 %v169
    %v1254 = vunpack.c.l.b16 %v170
    %v1255 = vunpack.c.h.b16 %v170
    %v1256 = vunpack.c.l.b16 %v171
    %v1257 = vunpack.c.h.b16 %v171
    %v1258 = vunpack.c.l.b16 %v172
    %v1259 = vunpack.c.h.b16 %v172
    %v1260 = vunpack.c.l.b16 %v173
    %v1261 = vunpack.c.h.b16 %v173
    %v1262 = vunpack.c.l.b16 %v174
    %v1263 = vunpack.c.h.b16 %v174
    %v1264 = vunpack.c.l.b16 %v175
    %v1265 = vunpack.c.h.b16 %v175
    %v1266 = vunpack.c.l.b16 %v176
    %v1267 = vunpack.c.h.b16 %v176
    %v1268 = vunpack.c.l.b16 %v177
    %v1269 = vunpack.c.h.b16 %v177
    %v1270 = vunpack.c.l.b16 %v178
    %v1271 = vunpack.c.h.b16 %v178
    %v1272 = vunpack.c.l.b16 %v179
    %v1273 = vunpack.c.h.b16 %v179
    %v1274 = vunpack.c.l.b16 %v180
    %v1275 = vunpack.c.h.b16 %v180
    %v1276 = vunpack.c.l.b16 %v181
    %v1277 = vunpack.c.h.b16 %v181
    %v1278 = vunpack.c.l.b16 %v182
    %v1279 = vunpack.c.h.b16 %v182
    %v1280 = vunpack.c.l.b16 %v183
    %v1281 = vunpack.c.h.b16 %v183
    %v1282 = vunpack.c.l.b16 %v184
    %v1283 = vunpack.c.h.b16 %v184
    %v1284 = vunpack.c.l.b16 %v185
    %v1285 = vunpack.c.h.b16 %v185
    %v1286 = vunpack.c.l.b16 %v186
    %v1287 = vunpack.c.h.b16 %v186
    %v1288 = vunpack.c.l.b16 %v187
    %v1289 = vunpack.c.h.b16 %v187
    %v1290 = vunpack.c.l.b16 %v188
    %v1291 = vunpack.c.h.b16 %v188
    %v1292 = vunpack.c.l.b16 %v189
    %v1293 = vunpack.c.h.b16 %v189
    %v1294 = vunpack.c.l.b16 %v190
    %v1295 = vunpack.c.h.b16 %v190
    %v1296 = vunpack.c.l.b16 %v191
    %v1297 = vunpack.c.h.b16 %v191
    %v1298 = vunpack.c.l.b16 %v192
    %v1299 = vunpack.c.h.b16 %v192
    %v1300 = vunpack.c.l.b16 %v193
    %v1301 = vunpack.c.h.b16 %v193
    %v1302 = vunpack.c.l.b16 %v194
    %v1303 = vunpack.c.h.b16 %v194
    %v1304 = vunpack.c.l.b16 %v195
    %v1305 = vunpack.c.h.b16 %v195
    %v1306 = vunpack.c.l.b16 %v196
    %v1307 = vunpack.c.h.b16 %v196
    %v1308 = vunpack.c.l.b16 %v197
    %v1309 = vunpack.c.h.b16 %v197
    %v1310 = vunpack.c.l.b16 %v198
    %v1311 = vunpack.c.h.b16 %v198
    %v1312 = vunpack.c.l.b16 %v199
    %v1313 = vunpack.c.h.b16 %v199
    %v1314 = vunpack.c.l.b16 %v200
    %v1315 = vunpack.c.h.b16 %v200
    %v1316 = vunpack.c.l.b16 %v201
    %v1317 = vunpack.c.h.b16 %v201
    %v1318 = vunpack.c.l.b16 %v202
    %v1319 = vunpack.c.h.b16 %v202
    %v1320 = vunpack.c.l.b16 %v203
    %v1321 = vunpack.c.h.b16 %v203
    %v1322 = vunpack.c.l.b16 %v204
    %v1323 = vunpack.c.h.b16 %v204
    %v1324 = vunpack.c.l.b16 %v205
    %v1325 = vunpack.c.h.b16 %v205
    %v1326 = vunpack.c.l.b16 %v206
    %v1327 = vunpack.c.h.b16 %v206
    %v1328 = vunpack.c.l.b16 %v207
    %v1329 = vunpack.c.h.b16 %v207
    %v1330 = vunpack.c.l.b16 %v208
    %v1331 = vunpack.c.h.b16 %v208
    %v1332 = vunpack.c.l.b16 %v209
    %v1333 = vunpack.c.h.b16 %v209
    %v1334 = vunpack.c.l.b16 %v210
    %v1335 = vunpack.c.h.b16 %v210
    %v1336 = vunpack.c.l.b16 %v211
    %v1337 = vunpack.c.h.b16 %v211
    %v1338 = vunpack.c.l.b16 %v212
    %v1339 = vunpack.c.h.b16 %v212
    %v1340 = vunpack.c.l.b16 %v213
    %v1341 = vunpack.c.h.b16 %v213
    %v1342 = vunpack.c.l.b16 %v214
    %v1343 = vunpack.c.h.b16 %v214
    %v1344 = vunpack.c.l.b16 %v215
    %v1345 = vunpack.c.h.b16 %v215
    %v1346 = vunpack.c.l.b16 %v216
    %v1347 = vunpack.c.h.b16 %v216
    %v1348 = vunpack.c.l.b16 %v217
    %v1349 = vunpack.c.h.b16 %v217
    %v1350 = vunpack.c.l.b16 %v218
    %v1351 = vunpack.c.h.b16 %v218
    %v1352 = vunpack.c.l.b16 %v219
    %v1353 = vunpack.c.h.b16 %v219
    %v1354 = vunpack.c.l.b16 %v220
    %v1355 = vunpack.c.h.b16 %v220
    %v1356 = vunpack.c.l.b16 %v221
    %v1357 = vunpack.c.h.b16 %v221
    %v1358 = vunpack.c.l.b16 %v222
    %v1359 = vunpack.c.h.b16 %v222
    %v1360 = vunpack.c.l.b16 %v223
    %v1361 = vunpack.c.h.b16 %v223
    %v1362 = vunpack.c.l.b16 %v224
    %v1363 = vunpack.c.h.b16 %v224
    %v1364 = vunpack.c.l.b16 %v225
    %v1365 = vunpack.c.h.b16 %v225
    %v1366 = vunpack.c.l.b16 %v226
    %v1367 = vunpack.c.h.b16 %v226
    %v1368 = vunpack.c.l.b16 %v227
    %v1369 = vunpack.c.h.b16 %v227
    %v1370 = vunpack.c.l.b16 %v228
    %v1371 = vunpack.c.h.b16 %v228
    %v1372 = vunpack.c.l.b16 %v229
    %v1373 = vunpack.c.h.b16 %v229
    %v1374 = vunpack.c.l.b16 %v230
    %v1375 = vunpack.c.h.b16 %v230
    %v1376 = vunpack.c.l.b16 %v231
    %v1377 = vunpack.c.h.b16 %v231
    %v1378 = vunpack.c.l.b16 %v232
    %v1379 = vunpack.c.h.b16 %v232
    %v1380 = vunpack.c.l.b16 %v233
    %v1381 = vunpack.c.h.b16 %v233
    %v1382 = vunpack.c.l.b16 %v234
    %v1383 = vunpack.c.h.b16 %v234
    %v1384 = vunpack.c.l.b16 %v235
    %v1385 = vunpack.c.h.b16 %v235
    %v1386 = vunpack.c.l.b16 %v236
    %v1387 = vunpack.c.h.b16 %v236
    %v1388 = vunpack.c.l.b16 %v237
    %v1389 = vunpack.c.h.b16 %v237
    %v1390 = vunpack.c.l.b16 %v238
    %v1391 = vunpack.c.h.b16 %v238
    %v1392 = vunpack.c.l.b16 %v239
    %v1393 = vunpack.c.h.b16 %v239
    %v1394 = vunpack.c.l.b16 %v240
    %v1395 = vunpack.c.h.b16 %v240
    %v1396 = vunpack.c.l.b16 %v241
    %v1397 = vunpack.c.h.b16 %v241
    %v1398 = vunpack.c.l.b16 %v242
    %v1399 = vunpack.c.h.b16 %v242
    %v1400 = vunpack.c.l.b16 %v243
    %v1401 = vunpack.c.h.b16 %v243
    %v1402 = vunpack.c.l.b16 %v244
    %v1403 = vunpack.c.h.b16 %v244
    %v1404 = vunpack.c.l.b16 %v245
    %v1405 = vunpack.c.h.b16 %v245
    %v1406 = vunpack.c.l.b16 %v246
    %v1407 = vunpack.c.h.b16 %v246
    %v1408 = vunpack.c.l.b16 %v247
    %v1409 = vunpack.c.h.b16 %v247
    %v1410 = vunpack.c.l.b16 %v248
    %v1411 = vunpack.c.h.b16 %v248
    %v1412 = vunpack.c.l.b16 %v249
    %v1413 = vunpack.c.h.b16 %v249
    %v1414 = vunpack.c.l.b16 %v250
    %v1415 = vunpack.c.h.b16 %v250
    %v1416 = vunpack.c.l.b16 %v251
    %v1417 = vunpack.c.h.b16 %v251
    %v1418 = vunpack.c.l.b16 %v252
    %v1419 = vunpack.c.h.b16 %v252
    %v1420 = vunpack.c.l.b16 %v253
    %v1421 = vunpack.c.h.b16 %v253
    %v1422 = vunpack.c.l.b16 %v254
    %v1423 = vunpack.c.h.b16 %v254
    %v1424 = vunpack.c.l.b16 %v255
    %v1425 = vunpack.c.h.b16 %v255
    %v1426 = vunpack.c.l.b16 %v256
    %v1427 = vunpack.c.h.b16 %v256
    %v1428 = vunpack.c.l.b16 %v257
    %v1429 = vunpack.c.h.b16 %v257
    %v1430 = vunpack.c.l.b16 %v258
    %v1431 = vunpack.c.h.b16 %v258
    %v1432 = vunpack.c.l.b16 %v259
    %v1433 = vunpack.c.h.b16 %v259
    %v1434 = vunpack.c.l.b16 %v260
    %v1435 = vunpack.c.h.b16 %v260
    %v1436 = vunpack.c.l.b16 %v261
    %v1437 = vunpack.c.h.b16 %v261
    %v1438 = vunpack.c.l.b16 %v262
    %v1439 = vunpack.c.h.b16 %v262
    %v1440 = vunpack.c.l.b16 %v263
    %v1441 = vunpack.c.h.b16 %v263
    %v1442 = vunpack.c.l.b16 %v264
    %v1443 = vunpack.c.h.b16 %v264
    %v1444 = vunpack.c.l.b16 %v265
    %v1445 = vunpack.c.h.b16 %v265
    %v1446 = vunpack.c.l.b16 %v266
    %v1447 = vunpack.c.h.b16 %v266
    %v1448 = vunpack.c.l.b16 %v267
    %v1449 = vunpack.c.h.b16 %v267
    %v1450 = vunpack.c.l.b16 %v268
    %v1451 = vunpack.c.h.b16 %v268
    %v1452 = vunpack.c.l.b16 %v269
    %v1453 = vunpack.c.h.b16 %v269
    %v1454 = vunpack.c.l.b16 %v270
    %v1455 = vunpack.c.h.b16 %v270
    %v1456 = vunpack.c.l.b16 %v271
    %v1457 = vunpack.c.h.b16 %v271
    %v1458 = vunpack.c.l.b16 %v272
    %v1459 = vunpack.c.h.b16 %v272
    %v1460 = vunpack.c.l.b16 %v273
    %v1461 = vunpack.c.h.b16 %v273
    %v1462 = vunpack.c.l.b16 %v274
    %v1463 = vunpack.c.h.b16 %v274
    %v1464 = vunpack.c.l.b16 %v275
    %v1465 = vunpack.c.h.b16 %v275
    %v1466 = vunpack.c.l.b16 %v276
    %v1467 = vunpack.c.h.b16 %v276
    %v1468 = vunpack.c.l.b16 %v277
    %v1469 = vunpack.c.h.b16 %v277
    %v1470 = vunpack.c.l.b16 %v278
    %v1471 = vunpack.c.h.b16 %v278
    %v1472 = vunpack.c.l.b16 %v279
    %v1473 = vunpack.c.h.b16 %v279
    %v1474 = vunpack.c.l.b16 %v280
    %v1475 = vunpack.c.h.b16 %v280
    %v1476 = vunpack.c.l.b16 %v281
    %v1477 = vunpack.c.h.b16 %v281
    %v1478 = vunpack.c.l.b16 %v282
    %v1479 = vunpack.c.h.b16 %v282
    %v1480 = vunpack.c.l.b16 %v283
    %v1481 = vunpack.c.h.b16 %v283
    %v1482 = vunpack.c.l.b16 %v284
    %v1483 = vunpack.c.h.b16 %v284
    %v1484 = vunpack.c.l.b16 %v285
    %v1485 = vunpack.c.h.b16 %v285
    %v1486 = vunpack.c.l.b16 %v286
    %v1487 = vunpack.c.h.b16 %v286
    %v1488 = vunpack.c.l.b16 %v287
    %v1489 = vunpack.c.h.b16 %v287
    %v1490 = vunpack.c.l.b16 %v288
    %v1491 = vunpack.c.h.b16 %v288
    %v1492 = vunpack.c.l.b16 %v289
    %v1493 = vunpack.c.h.b16 %v289
    %v1494 = vunpack.c.l.b16 %v290
    %v1495 = vunpack.c.h.b16 %v290
    %v1496 = vunpack.c.l.b16 %v291
    %v1497 = vunpack.c.h.b16 %v291
    %v1498 = vunpack.c.l.b16 %v292
    %v1499 = vunpack.c.h.b16 %v292
    %v1500 = vunpack.c.l.b16 %v293
    %v1501 = vunpack.c.h.b16 %v293
    %v1502 = vunpack.c.l.b16 %v294
    %v1503 = vunpack.c.h.b16 %v294
    %v1504 = vunpack.c.l.b16 %v295
    %v1505 = vunpack.c.h.b16 %v295
    %v1506 = vunpack.c.l.b16 %v296
    %v1507 = vunpack.c.h.b16 %v296
    %v1508 = vunpack.c.l.b16 %v297
    %v1509 = vunpack.c.h.b16 %v297
    %v1510 = vunpack.c.l.b16 %v298
    %v1511 = vunpack.c.h.b16 %v298
    %v1512 = vunpack.c.l.b16 %v299
    %v1513 = vunpack.c.h.b16 %v299
    %v1514 = vunpack.c.l.b16 %v300
    %v1515 = vunpack.c.h.b16 %v300
    %v1516 = vunpack.c.l.b16 %v301
    %v1517 = vunpack.c.h.b16 %v301
    %v1518 = vunpack.c.l.b16 %v302
    %v1519 = vunpack.c.h.b16 %v302
    %v1520 = vunpack.c.l.b16 %v303
    %v1521 = vunpack.c.h.b16 %v303
    %v1522 = vunpack.c.l.b16 %v304
    %v1523 = vunpack.c.h.b16 %v304
    %v1524 = vunpack.c.l.b16 %v305
    %v1525 = vunpack.c.h.b16 %v305
    %v1526 = vunpack.c.l.b16 %v306
    %v1527 = vunpack.c.h.b16 %v306
    %v1528 = vunpack.c.l.b16 %v307
    %v1529 = vunpack.c.h.b16 %v307
    %v1530 = vunpack.c.l.b16 %v308
    %v1531 = vunpack.c.h.b16 %v308
    %v1532 = vunpack.c.l.b16 %v309
    %v1533 = vunpack.c.h.b16 %v309
    %v1534 = vunpack.c.l.b16 %v310
    %v1535 = vunpack.c.h.b16 %v310
    %v1536 = vunpack.c.l.b16 %v311
    %v1537 = vunpack.c.h.b16 %v311
    %v1538 = vunpack.c.l.b16 %v312
    %v1539 = vunpack.c.h.b16 %v312
    %v1540 = vunpack.c.l.b16 %v313
    %v1541 = vunpack.c.h.b16 %v313
    %v1542 = vunpack.c.l.b16 %v314
    %v1543 = vunpack.c.h.b16 %v314
    %v1544 = vunpack.c.l.b16 %v315
    %v1545 = vunpack.c.h.b16 %v315
    %v1546 = vunpack.c.l.b16 %v316
    %v1547 = vunpack.c.h.b16 %v316
    %v1548 = vunpack.c.l.b16 %v317
    %v1549 = vunpack.c.h.b16 %v317
    %v1550 = vunpack.c.l.b16 %v318
    %v1551 = vunpack.c.h.b16 %v318
    %v1552 = vunpack.c.l.b16 %v319
    %v1553 = vunpack.c.h.b16 %v319
    %v1554 = vunpack.c.l.b16 %v320
    %v1555 = vunpack.c.h.b16 %v320
    %v1556 = vunpack.c.l.b16 %v321
    %v1557 = vunpack.c.h.b16 %v321
    %v1558 = vunpack.c.l.b16 %v322
    %v1559 = vunpack.c.h.b16 %v322
    %v1560 = vunpack.c.l.b16 %v323
    %v1561 = vunpack.c.h.b16 %v323
    %v1562 = vunpack.c.l.b16 %v324
    %v1563 = vunpack.c.h.b16 %v324
    %v1564 = vunpack.c.l.b16 %v325
    %v1565 = vunpack.c.h.b16 %v325
    %v1566 = vunpack.c.l.b16 %v326
    %v1567 = vunpack.c.h.b16 %v326
    %v1568 = vunpack.c.l.b16 %v327
    %v1569 = vunpack.c.h.b16 %v327
    %v1570 = vunpack.c.l.b16 %v328
    %v1571 = vunpack.c.h.b16 %v328
    %v1572 = vunpack.c.l.b16 %v329
    %v1573 = vunpack.c.h.b16 %v329
    %v1574 = vunpack.c.l.b16 %v330
    %v1575 = vunpack.c.h.b16 %v330
    %v1576 = vunpack.c.l.b16 %v331
    %v1577 = vunpack.c.h.b16 %v331
    %v1578 = vunpack.c.l.b16 %v332
    %v1579 = vunpack.c.h.b16 %v332
    %v1580 = vunpack.c.l.b16 %v333
    %v1581 = vunpack.c.h.b16 %v333
    %v1582 = vunpack.c.l.b16 %v334
    %v1583 = vunpack.c.h.b16 %v334
    %v1584 = vunpack.c.l.b16 %v335
    %v1585 = vunpack.c.h.b16 %v335
    %v1586 = vunpack.c.l.b16 %v336
    %v1587 = vunpack.c.h.b16 %v336
    %v1588 = vunpack.c.l.b16 %v337
    %v1589 = vunpack.c.h.b16 %v337
    %v1590 = vunpack.c.l.b16 %v338
    %v1591 = vunpack.c.h.b16 %v338
    %v1592 = vunpack.c.l.b16 %v339
    %v1593 = vunpack.c.h.b16 %v339
    %v1594 = vunpack.c.l.b16 %v340
    %v1595 = vunpack.c.h.b16 %v340
    %v1596 = vunpack.c.l.b16 %v341
    %v1597 = vunpack.c.h.b16 %v341
    %v1598 = vunpack.c.l.b16 %v342
    %v1599 = vunpack.c.h.b16 %v342
    %v1600 = vunpack.c.l.b16 %v343
    %v1601 = vunpack.c.h.b16 %v343
    %v1602 = vunpack.c.l.b16 %v344
    %v1603 = vunpack.c.h.b16 %v344
    %v1604 = vunpack.c.l.b16 %v345
    %v1605 = vunpack.c.h.b16 %v345
    %v1606 = vunpack.c.l.b16 %v346
    %v1607 = vunpack.c.h.b16 %v346
    %v1608 = vunpack.c.l.b16 %v347
    %v1609 = vunpack.c.h.b16 %v347
    %v1610 = vunpack.c.l.b16 %v348
    %v1611 = vunpack.c.h.b16 %v348
    %v1612 = vunpack.c.l.b16 %v349
    %v1613 = vunpack.c.h.b16 %v349
    %v1614 = vunpack.c.l.b16 %v350
    %v1615 = vunpack.c.h.b16 %v350
    %v1616 = vunpack.c.l.b16 %v351
    %v1617 = vunpack.c.h.b16 %v351
    %v1618 = vunpack.c.l.b16 %v352
    %v1619 = vunpack.c.h.b16 %v352
    %v1620 = vunpack.c.l.b16 %v353
    %v1621 = vunpack.c.h.b16 %v353
    %v1622 = vunpack.c.l.b16 %v354
    %v1623 = vunpack.c.h.b16 %v354
    %v1624 = vunpack.c.l.b16 %v355
    %v1625 = vunpack.c.h.b16 %v355
    %v1626 = vunpack.c.l.b16 %v356
    %v1627 = vunpack.c.h.b16 %v356
    %v1628 = vunpack.c.l.b16 %v357
    %v1629 = vunpack.c.h.b16 %v357
    %v1630 = vunpack.c.l.b16 %v358
    %v1631 = vunpack.c.h.b16 %v358
    %v1632 = vunpack.c.l.b16 %v359
    %v1633 = vunpack.c.h.b16 %v359
    %v1634 = vunpack.c.l.b16 %v360
    %v1635 = vunpack.c.h.b16 %v360
    %v1636 = vunpack.c.l.b16 %v361
    %v1637 = vunpack.c.h.b16 %v361
    %v1638 = vunpack.c.l.b16 %v362
    %v1639 = vunpack.c.h.b16 %v362
    %v1640 = vunpack.c.l.b16 %v363
    %v1641 = vunpack.c.h.b16 %v363
    %v1642 = vunpack.c.l.b16 %v364
    %v1643 = vunpack.c.h.b16 %v364
    %v1644 = vunpack.c.l.b16 %v365
    %v1645 = vunpack.c.h.b16 %v365
    %v1646 = vunpack.c.l.b16 %v366
    %v1647 = vunpack.c.h.b16 %v366
    %v1648 = vunpack.c.l.b16 %v367
    %v1649 = vunpack.c.h.b16 %v367
    %v1650 = vunpack.c.l.b16 %v368
    %v1651 = vunpack.c.h.b16 %v368
    %v1652 = vunpack.c.l.b16 %v369
    %v1653 = vunpack.c.h.b16 %v369
    %v1654 = vunpack.c.l.b16 %v370
    %v1655 = vunpack.c.h.b16 %v370
    %v1656 = vunpack.c.l.b16 %v371
    %v1657 = vunpack.c.h.b16 %v371
    %v1658 = vunpack.c.l.b16 %v372
    %v1659 = vunpack.c.h.b16 %v372
    %v1660 = vunpack.c.l.b16 %v373
    %v1661 = vunpack.c.h.b16 %v373
    %v1662 = vunpack.c.l.b16 %v374
    %v1663 = vunpack.c.h.b16 %v374
    %v1664 = vunpack.c.l.b16 %v375
    %v1665 = vunpack.c.h.b16 %v375
    %v1666 = vunpack.c.l.b16 %v376
    %v1667 = vunpack.c.h.b16 %v376
    %v1668 = vunpack.c.l.b16 %v377
    %v1669 = vunpack.c.h.b16 %v377
    %v1670 = vunpack.c.l.b16 %v378
    %v1671 = vunpack.c.h.b16 %v378
    %v1672 = vunpack.c.l.b16 %v379
    %v1673 = vunpack.c.h.b16 %v379
    %v1674 = vunpack.c.l.b16 %v380
    %v1675 = vunpack.c.h.b16 %v380
    %v1676 = vunpack.c.l.b16 %v381
    %v1677 = vunpack.c.h.b16 %v381
    %v1678 = vunpack.c.l.b16 %v382
    %v1679 = vunpack.c.h.b16 %v382
    %v1680 = vunpack.c.l.b16 %v383
    %v1681 = vunpack.c.h.b16 %v383
    %v1682 = vunpack.c.l.b16 %v384
    %v1683 = vunpack.c.h.b16 %v384
    %v1684 = vunpack.c.l.b16 %v385
    %v1685 = vunpack.c.h.b16 %v385
    %v1686 = vunpack.c.l.b16 %v386
    %v1687 = vunpack.c.h.b16 %v386
    %v1688 = vunpack.c.l.b16 %v387
    %v1689 = vunpack.c.h.b16 %v387
    %v1690 = vunpack.c.l.b16 %v388
    %v1691 = vunpack.c.h.b16 %v388
    %v1692 = vunpack.c.l.b16 %v389
    %v1693 = vunpack.c.h.b16 %v389
    %v1694 = vunpack.c.l.b16 %v390
    %v1695 = vunpack.c.h.b16 %v390
    %v1696 = vunpack.c.l.b16 %v391
    %v1697 = vunpack.c.h.b16 %v391
    %v1698 = vunpack.c.l.b16 %v392
    %v1699 = vunpack.c.h.b16 %v392
    %v1700 = vunpack.c.l.b16 %v393
    %v1701 = vunpack.c.h.b16 %v393
    %v1702 = vunpack.c.l.b16 %v394
    %v1703 = vunpack.c.h.b16 %v394
    %v1704 = vunpack.c.l.b16 %v395
    %v1705 = vunpack.c.h.b16 %v395
    %v1706 = vunpack.c.l.b16 %v396
    %v1707 = vunpack.c.h.b16 %v396
    %v1708 = vunpack.c.l.b16 %v397
    %v1709 = vunpack.c.h.b16 %v397
    %v1710 = vunpack.c.l.b16 %v398
    %v1711 = vunpack.c.h.b16 %v398
    %v1712 = vunpack.c.l.b16 %v399
    %v1713 = vunpack.c.h.b16 %v399
    %v1714 = vunpack.c.l.b16 %v400
    %v1715 = vunpack.c.h.b16 %v400
    %v1716 = vunpack.c.l.b16 %v401
    %v1717 = vunpack.c.h.b16 %v401
    %v1718 = vunpack.c.l.b16 %v402
    %v1719 = vunpack.c.h.b16 %v402
    %v1720 = vunpack.c.l.b16 %v403
    %v1721 = vunpack.c.h.b16 %v403
    %v1722 = vunpack.c.l.b16 %v404
    %v1723 = vunpack.c.h.b16 %v404
    %v1724 = vunpack.c.l.b16 %v405
    %v1725 = vunpack.c.h.b16 %v405
    %v1726 = vunpack.c.l.b16 %v406
    %v1727 = vunpack.c.h.b16 %v406
    %v1728 = vunpack.c.l.b16 %v407
    %v1729 = vunpack.c.h.b16 %v407
    %v1730 = vunpack.c.l.b16 %v408
    %v1731 = vunpack.c.h.b16 %v408
    %v1732 = vunpack.c.l.b16 %v409
    %v1733 = vunpack.c.h.b16 %v409
    %v1734 = vunpack.c.l.b16 %v410
    %v1735 = vunpack.c.h.b16 %v410
    %v1736 = vunpack.c.l.b16 %v411
    %v1737 = vunpack.c.h.b16 %v411
    %v1738 = vunpack.c.l.b16 %v412
    %v1739 = vunpack.c.h.b16 %v412
    %v1740 = vunpack.c.l.b16 %v413
    %v1741 = vunpack.c.h.b16 %v413
    %v1742 = vunpack.c.l.b16 %v414
    %v1743 = vunpack.c.h.b16 %v414
    %v1744 = vunpack.c.l.b16 %v415
    %v1745 = vunpack.c.h.b16 %v415
    %v1746 = vunpack.c.l.b16 %v416
    %v1747 = vunpack.c.h.b16 %v416
    %v1748 = vunpack.c.l.b16 %v417
    %v1749 = vunpack.c.h.b16 %v417
    %v1750 = vunpack.c.l.b16 %v418
    %v1751 = vunpack.c.h.b16 %v418
    %v1752 = vunpack.c.l.b16 %v419
    %v1753 = vunpack.c.h.b16 %v419
    %v1754 = vunpack.c.l.b16 %v420
    %v1755 = vunpack.c.h.b16 %v420
    %v1756 = vunpack.c.l.b16 %v421
    %v1757 = vunpack.c.h.b16 %v421
    %v1758 = vunpack.c.l.b16 %v422
    %v1759 = vunpack.c.h.b16 %v422
    %v1760 = vunpack.c.l.b16 %v423
    %v1761 = vunpack.c.h.b16 %v423
    %v1762 = vunpack.c.l.b16 %v424
    %v1763 = vunpack.c.h.b16 %v424
    %v1764 = vunpack.c.l.b16 %v425
    %v1765 = vunpack.c.h.b16 %v425
    %v1766 = vunpack.c.l.b16 %v426
    %v1767 = vunpack.c.h.b16 %v426
    %v1768 = vunpack.c.l.b16 %v427
    %v1769 = vunpack.c.h.b16 %v427
    %v1770 = vunpack.c.l.b16 %v428
    %v1771 = vunpack.c.h.b16 %v428
    %v1772 = vunpack.c.l.b16 %v429
    %v1773 = vunpack.c.h.b16 %v429
    %v1774 = vunpack.c.l.b16 %v430
    %v1775 = vunpack.c.h.b16 %v430
    %v1776 = vunpack.c.l.b16 %v431
    %v1777 = vunpack.c.h.b16 %v431
    %v1778 = vunpack.c.l.b16 %v432
    %v1779 = vunpack.c.h.b16 %v432
    %v1780 = vunpack.c.l.b16 %v433
    %v1781 = vunpack.c.h.b16 %v433
    %v1782 = vunpack.c.l.b16 %v434
    %v1783 = vunpack.c.h.b16 %v434
    %v1784 = vunpack.c.l.b16 %v435
    %v1785 = vunpack.c.h.b16 %v435
    %v1786 = vunpack.c.l.b16 %v436
    %v1787 = vunpack.c.h.b16 %v436
    %v1788 = vunpack.c.l.b16 %v437
    %v1789 = vunpack.c.h.b16 %v437
    %v1790 = vunpack.c.l.b16 %v438
    %v1791 = vunpack.c.h.b16 %v438
    %v1792 = vunpack.c.l.b16 %v439
    %v1793 = vunpack.c.h.b16 %v439
    %v1794 = vunpack.c.l.b16 %v440
    %v1795 = vunpack.c.h.b16 %v440
    %v1796 = vunpack.c.l.b16 %v441
    %v1797 = vunpack.c.h.b16 %v441
    %v1798 = vunpack.c.l.b16 %v442
    %v1799 = vunpack.c.h.b16 %v442
    %v1800 = vunpack.c.l.b16 %v443
    %v1801 = vunpack.c.h.b16 %v443
    %v1802 = vunpack.c.l.b16 %v444
    %v1803 = vunpack.c.h.b16 %v444
    %v1804 = vunpack.c.l.b16 %v445
    %v1805 = vunpack.c.h.b16 %v445
    %v1806 = vunpack.c.l.b16 %v446
    %v1807 = vunpack.c.h.b16 %v446
    %v1808 = vunpack.c.l.b16 %v447
    %v1809 = vunpack.c.h.b16 %v447
    %v1810 = vunpack.c.l.b16 %v448
    %v1811 = vunpack.c.h.b16 %v448
    %v1812 = vunpack.c.l.b16 %v449
    %v1813 = vunpack.c.h.b16 %v449
    %v1814 = vunpack.c.l.b16 %v450
    %v1815 = vunpack.c.h.b16 %v450
    %v1816 = vunpack.c.l.b16 %v451
    %v1817 = vunpack.c.h.b16 %v451
    %v1818 = vunpack.c.l.b16 %v452
    %v1819 = vunpack.c.h.b16 %v452
    %v1820 = vunpack.c.l.b16 %v453
    %v1821 = vunpack.c.h.b16 %v453
    %v1822 = vunpack.c.l.b16 %v454
    %v1823 = vunpack.c.h.b16 %v454
    %v1824 = vunpack.c.l.b16 %v455
    %v1825 = vunpack.c.h.b16 %v455
    %v1826 = vunpack.c.l.b16 %v456
    %v1827 = vunpack.c.h.b16 %v456
    %v1828 = vunpack.c.l.b16 %v457
    %v1829 = vunpack.c.h.b16 %v457
    %v1830 = vunpack.c.l.b16 %v458
    %v1831 = vunpack.c.h.b16 %v458
    %v1832 = vunpack.c.l.b16 %v459
    %v1833 = vunpack.c.h.b16 %v459
    %v1834 = vunpack.c.l.b16 %v460
    %v1835 = vunpack.c.h.b16 %v460
    %v1836 = vunpack.c.l.b16 %v461
    %v1837 = vunpack.c.h.b16 %v461
    %v1838 = vunpack.c.l.b16 %v462
    %v1839 = vunpack.c.h.b16 %v462
    %v1840 = vunpack.c.l.b16 %v463
    %v1841 = vunpack.c.h.b16 %v463
    %v1842 = vunpack.c.l.b16 %v464
    %v1843 = vunpack.c.h.b16 %v464
    %v1844 = vunpack.c.l.b16 %v465
    %v1845 = vunpack.c.h.b16 %v465
    %v1846 = vunpack.c.l.b16 %v466
    %v1847 = vunpack.c.h.b16 %v466
    %v1848 = vunpack.c.l.b16 %v467
    %v1849 = vunpack.c.h.b16 %v467
    %v1850 = vunpack.c.l.b16 %v468
    %v1851 = vunpack.c.h.b16 %v468
    %v1852 = vunpack.c.l.b16 %v469
    %v1853 = vunpack.c.h.b16 %v469
    %v1854 = vunpack.c.l.b16 %v470
    %v1855 = vunpack.c.h.b16 %v470
    %v1856 = vunpack.c.l.b16 %v471
    %v1857 = vunpack.c.h.b16 %v471
    %v1858 = vunpack.c.l.b16 %v472
    %v1859 = vunpack.c.h.b16 %v472
    %v1860 = vunpack.c.l.b16 %v473
    %v1861 = vunpack.c.h.b16 %v473
    %v1862 = vunpack.c.l.b16 %v474
    %v1863 = vunpack.c.h.b16 %v474
    %v1864 = vunpack.c.l.b16 %v475
    %v1865 = vunpack.c.h.b16 %v475
    %v1866 = vunpack.c.l.b16 %v476
    %v1867 = vunpack.c.h.b16 %v476
    %v1868 = vunpack.c.l.b16 %v477
    %v1869 = vunpack.c.h.b16 %v477
    %v1870 = vunpack.c.l.b16 %v478
    %v1871 = vunpack.c.h.b16 %v478
    %v1872 = vunpack.c.l.b16 %v479
    %v1873 = vunpack.c.h.b16 %v479
    %v1874 = vunpack.c.l.b16 %v480
    %v1875 = vunpack.c.h.b16 %v480
    %v1876 = vunpack.c.l.b16 %v481
    %v1877 = vunpack.c.h.b16 %v481
    %v1878 = vunpack.c.l.b16 %v482
    %v1879 = vunpack.c.h.b16 %v482
    %v1880 = vunpack.c.l.b16 %v483
    %v1881 = vunpack.c.h.b16 %v483
    %v1882 = vunpack.c.l.b16 %v484
    %v1883 = vunpack.c.h.b16 %v484
    %v1884 = vunpack.c.l.b16 %v485
    %v1885 = vunpack.c.h.b16 %v485
    %v1886 = vunpack.c.l.b16 %v486
    %v1887 = vunpack.c.h.b16 %v486
    %v1888 = vunpack.c.l.b16 %v487
    %v1889 = vunpack.c.h.b16 %v487
    %v1890 = vunpack.c.l.b16 %v488
    %v1891 = vunpack.c.h.b16 %v488
    %v1892 = vunpack.c.l.b16 %v489
    %v1893 = vunpack.c.h.b16 %v489
    %v1894 = vunpack.c.l.b16 %v490
    %v1895 = vunpack.c.h.b16 %v490
    %v1896 = vunpack.c.l.b16 %v491
    %v1897 = vunpack.c.h.b16 %v491
    %v1898 = vunpack.c.l.b16 %v492
    %v1899 = vunpack.c.h.b16 %v492
    %v1900 = vunpack.c.l.b16 %v493
    %v1901 = vunpack.c.h.b16 %v493
    %v1902 = vunpack.c.l.b16 %v494
    %v1903 = vunpack.c.h.b16 %v494
    %v1904 = vunpack.c.l.b16 %v495
    %v1905 = vunpack.c.h.b16 %v495
    %v1906 = vunpack.c.l.b16 %v496
    %v1907 = vunpack.c.h.b16 %v496
    %v1908 = vunpack.c.l.b16 %v497
    %v1909 = vunpack.c.h.b16 %v497
    %v1910 = vunpack.c.l.b16 %v498
    %v1911 = vunpack.c.h.b16 %v498
    %v1912 = vunpack.c.l.b16 %v499
    %v1913 = vunpack.c.h.b16 %v499
    %v1914 = vunpack.c.l.b16 %v500
    %v1915 = vunpack.c.h.b16 %v500
    %v1916 = vunpack.c.l.b16 %v501
    %v1917 = vunpack.c.h.b16 %v501
    %v1918 = vunpack.c.l.b16 %v502
    %v1919 = vunpack.c.h.b16 %v502
    %v1920 = vunpack.c.l.b16 %v503
    %v1921 = vunpack.c.h.b16 %v503
    %v1922 = vunpack.c.l.b16 %v504
    %v1923 = vunpack.c.h.b16 %v504
    %v1924 = vunpack.c.l.b16 %v505
    %v1925 = vunpack.c.h.b16 %v505
    %v1926 = vunpack.c.l.b16 %v506
    %v1927 = vunpack.c.h.b16 %v506
    %v1928 = vunpack.c.l.b16 %v507
    %v1929 = vunpack.c.h.b16 %v507
    %v1930 = vunpack.c.l.b16 %v508
    %v1931 = vunpack.c.h.b16 %v508
    %v1932 = vunpack.c.l.b16 %v509
    %v1933 = vunpack.c.h.b16 %v509
    %v1934 = vunpack.c.l.b16 %v510
    %v1935 = vunpack.c.h.b16 %v510
    %v1936 = vunpack.c.l.b16 %v511
    %v1937 = vunpack.c.h.b16 %v511
    %v1938 = vunpack.c.l.b16 %v512
    %v1939 = vunpack.c.h.b16 %v512
    %v1940 = vunpack.c.l.b16 %v513
    %v1941 = vunpack.c.h.b16 %v513
    %v1942 = vunpack.c.l.b16 %v514
    %v1943 = vunpack.c.h.b16 %v514
    %v1944 = vunpack.c.l.b16 %v515
    %v1945 = vunpack.c.h.b16 %v515
    %v1946 = vunpack.c.l.b16 %v516
    %v1947 = vunpack.c.h.b16 %v516
    %v1948 = vunpack.c.l.b16 %v517
    %v1949 = vunpack.c.h.b16 %v517
    %v1950 = vunpack.c.l.b16 %v518
    %v1951 = vunpack.c.h.b16 %v518
    %v1952 = vunpack.c.l.b16 %v519
    %v1953 = vunpack.c.h.b16 %v519
    %v1954 = vunpack.c.l.b16 %v520
    %v1955 = vunpack.c.h.b16 %v520
    %v1956 = vunpack.c.l.b16 %v521
    %v1957 = vunpack.c.h.b16 %v521
    %v1958 = vunpack.c.l.b16 %v522
    %v1959 = vunpack.c.h.b16 %v522
    %v1960 = vunpack.c.l.b16 %v523
    %v1961 = vunpack.c.h.b16 %v523
    %v1962 = vunpack.c.l.b16 %v524
    %v1963 = vunpack.c.h.b16 %v524
    %v1964 = vunpack.c.l.b16 %v525
    %v1965 = vunpack.c.h.b16 %v525
    %v1966 = vunpack.c.l.b16 %v526
    %v1967 = vunpack.c.h.b16 %v526
    %v1968 = vunpack.c.l.b16 %v527
    %v1969 = vunpack.c.h.b16 %v527
    %v1970 = vunpack.c.l.b16 %v528
    %v1971 = vunpack.c.h.b16 %v528
    %v1972 = vunpack.c.l.b16 %v529
    %v1973 = vunpack.c.h.b16 %v529
    %v1974 = vunpack.c.l.b16 %v530
    %v1975 = vunpack.c.h.b16 %v530
    %v1976 = vunpack.c.l.b16 %v531
    %v1977 = vunpack.c.h.b16 %v531
    %v1978 = vunpack.c.l.b16 %v532
    %v1979 = vunpack.c.h.b16 %v532
    %v1980 = vunpack.c.l.b16 %v533
    %v1981 = vunpack.c.h.b16 %v533
    %v1982 = vunpack.c.l.b16 %v534
    %v1983 = vunpack.c.h.b16 %v534
    %v1984 = vunpack.c.l.b16 %v535
    %v1985 = vunpack.c.h.b16 %v535
    %v1986 = vunpack.c.l.b16 %v536
    %v1987 = vunpack.c.h.b16 %v536
    %v1988 = vunpack.c.l.b16 %v537
    %v1989 = vunpack.c.h.b16 %v537
    %v1990 = vunpack.c.l.b16 %v538
    %v1991 = vunpack.c.h.b16 %v538
    %v1992 = vunpack.c.l.b16 %v539
    %v1993 = vunpack.c.h.b16 %v539
    %v1994 = vunpack.c.l.b16 %v540
    %v1995 = vunpack.c.h.b16 %v540
    %v1996 = vunpack.c.l.b16 %v541
    %v1997 = vunpack.c.h.b16 %v541
    %v1998 = vunpack.c.l.b16 %v542
    %v1999 = vunpack.c.h.b16 %v542
    %v2000 = vunpack.c.l.b16 %v543
    %v2001 = vunpack.c.h.b16 %v543
    %v2002 = vunpack.c.l.b16 %v544
    %v2003 = vunpack.c.h.b16 %v544
    %v2004 = vunpack.c.l.b16 %v545
    %v2005 = vunpack.c.h.b16 %v545
    %v2006 = vunpack.c.l.b16 %v546
    %v2007 = vunpack.c.h.b16 %v546
    %v2008 = vunpack.c.l.b16 %v547
    %v2009 = vunpack.c.h.b16 %v547
    %v2010 = vunpack.c.l.b16 %v548
    %v2011 = vunpack.c.h.b16 %v548
    %v2012 = vunpack.c.l.b16 %v549
    %v2013 = vunpack.c.h.b16 %v549
    %v2014 = vunpack.c.l.b16 %v550
    %v2015 = vunpack.c.h.b16 %v550
    %v2016 = vunpack.c.l.b16 %v551
    %v2017 = vunpack.c.h.b16 %v551
    %v2018 = vunpack.c.l.b16 %v552
    %v2019 = vunpack.c.h.b16 %v552
    %v2020 = vunpack.c.l.b16 %v553
    %v2021 = vunpack.c.h.b16 %v553
    %v2022 = vunpack.c.l.b16 %v554
    %v2023 = vunpack.c.h.b16 %v554
    %v2024 = vunpack.c.l.b16 %v555
    %v2025 = vunpack.c.h.b16 %v555
    %v2026 = vunpack.c.l.b16 %v556
    %v2027 = vunpack.c.h.b16 %v556
    %v2028 = vunpack.c.l.b16 %v557
    %v2029 = vunpack.c.h.b16 %v557
    %v2030 = vunpack.c.l.b16 %v558
    %v2031 = vunpack.c.h.b16 %v558
    %v2032 = vunpack.c.l.b16 %v559
    %v2033 = vunpack.c.h.b16 %v559
    %v2034 = vunpack.c.l.b16 %v560
    %v2035 = vunpack.c.h.b16 %v560
    %v2036 = vunpack.c.l.b16 %v561
    %v2037 = vunpack.c.h.b16 %v561
    %v2038 = vunpack.c.l.b16 %v562
    %v2039 = vunpack.c.h.b16 %v562
    %v2040 = vunpack.c.l.b16 %v563
    %v2041 = vunpack.c.h.b16 %v563
    %v2042 = vunpack.c.l.b16 %v564
    %v2043 = vunpack.c.h.b16 %v564
    %v2044 = vunpack.c.l.b16 %v565
    %v2045 = vunpack.c.h.b16 %v565
    %v2046 = vunpack.c.l.b16 %v566
    %v2047 = vunpack.c.h.b16 %v566
    %v2048 = vunpack.c.l.b16 %v567
    %v2049 = vunpack.c.h.b16 %v567
    %v2050 = vunpack.c.l.b16 %v568
    %v2051 = vunpack.c.h.b16 %v568
    %v2052 = vunpack.c.l.b16 %v569
    %v2053 = vunpack.c.h.b16 %v569
    %v2054 = vunpack.c.l.b16 %v570
    %v2055 = vunpack.c.h.b16 %v570
    %v2056 = vunpack.c.l.b16 %v571
    %v2057 = vunpack.c.h.b16 %v571
    %v2058 = vunpack.c.l.b16 %v572
    %v2059 = vunpack.c.h.b16 %v572
    %v2060 = vunpack.c.l.b16 %v573
    %v2061 = vunpack.c.h.b16 %v573
    %v2062 = vunpack.c.l.b16 %v574
    %v2063 = vunpack.c.h.b16 %v574
    %v2064 = vunpack.c.l.b16 %v575
    %v2065 = vunpack.c.h.b16 %v575
    %v2066 = vunpack.c.l.b16 %v576
    %v2067 = vunpack.c.h.b16 %v576
    %v2068 = vunpack.c.l.b16 %v577
    %v2069 = vunpack.c.h.b16 %v577
    %v2070 = vunpack.c.l.b16 %v578
    %v2071 = vunpack.c.h.b16 %v578
    %v2072 = vunpack.c.l.b16 %v579
    %v2073 = vunpack.c.h.b16 %v579
    %v2074 = vunpack.c.l.b16 %v580
    %v2075 = vunpack.c.h.b16 %v580
    %v2076 = vunpack.c.l.b16 %v581
    %v2077 = vunpack.c.h.b16 %v581
    %v2078 = vunpack.c.l.b16 %v582
    %v2079 = vunpack.c.h.b16 %v582
    %v2080 = vunpack.c.l.b16 %v583
    %v2081 = vunpack.c.h.b16 %v583
    %v2082 = vunpack.c.l.b16 %v584
    %v2083 = vunpack.c.h.b16 %v584
    %v2084 = vunpack.c.l.b16 %v585
    %v2085 = vunpack.c.h.b16 %v585
    %v2086 = vunpack.c.l.b16 %v586
    %v2087 = vunpack.c.h.b16 %v586
    %v2088 = vunpack.c.l.b16 %v587
    %v2089 = vunpack.c.h.b16 %v587
    %v2090 = vunpack.c.l.b16 %v588
    %v2091 = vunpack.c.h.b16 %v588
    %v2092 = vunpack.c.l.b16 %v589
    %v2093 = vunpack.c.h.b16 %v589
    %v2094 = vunpack.c.l.b16 %v590
    %v2095 = vunpack.c.h.b16 %v590
    %v2096 = vunpack.c.l.b16 %v591
    %v2097 = vunpack.c.h.b16 %v591
    %v2098 = vunpack.c.l.b16 %v592
    %v2099 = vunpack.c.h.b16 %v592
    %v2100 = vunpack.c.l.b16 %v593
    %v2101 = vunpack.c.h.b16 %v593
    %v2102 = vunpack.c.l.b16 %v594
    %v2103 = vunpack.c.h.b16 %v594
    %v2104 = vunpack.c.l.b16 %v595
    %v2105 = vunpack.c.h.b16 %v595
    %v2106 = vunpack.c.l.b16 %v596
    %v2107 = vunpack.c.h.b16 %v596
    %v2108 = vunpack.c.l.b16 %v597
    %v2109 = vunpack.c.h.b16 %v597
    %v2110 = vunpack.c.l.b16 %v598
    %v2111 = vunpack.c.h.b16 %v598
    %v2112 = vunpack.c.l.b16 %v599
    %v2113 = vunpack.c.h.b16 %v599
    %v2114 = vunpack.c.l.b16 %v600
    %v2115 = vunpack.c.h.b16 %v600
    %v2116 = vunpack.c.l.b16 %v601
    %v2117 = vunpack.c.h.b16 %v601
    %v2118 = vunpack.c.l.b16 %v602
    %v2119 = vunpack.c.h.b16 %v602
    %v2120 = vunpack.c.l.b16 %v603
    %v2121 = vunpack.c.h.b16 %v603
    %v2122 = vunpack.c.l.b16 %v604
    %v2123 = vunpack.c.h.b16 %v604
    %v2124 = vunpack.c.l.b16 %v605
    %v2125 = vunpack.c.h.b16 %v605
    %v2126 = vunpack.c.l.b16 %v606
    %v2127 = vunpack.c.h.b16 %v606
    %v2128 = vunpack.c.l.b16 %v607
    %v2129 = vunpack.c.h.b16 %v607
    %v2130 = vunpack.c.l.b16 %v608
    %v2131 = vunpack.c.h.b16 %v608
    %v2132 = vunpack.c.l.b16 %v609
    %v2133 = vunpack.c.h.b16 %v609
    %v2134 = vunpack.c.l.b16 %v610
    %v2135 = vunpack.c.h.b16 %v610
    %v2136 = vunpack.c.l.b16 %v611
    %v2137 = vunpack.c.h.b16 %v611
    %v2138 = vunpack.c.l.b16 %v612
    %v2139 = vunpack.c.h.b16 %v612
    %v2140 = vunpack.c.l.b16 %v613
    %v2141 = vunpack.c.h.b16 %v613
    %v2142 = vunpack.c.l.b16 %v614
    %v2143 = vunpack.c.h.b16 %v614
    %v2144 = vunpack.c.l.b16 %v615
    %v2145 = vunpack.c.h.b16 %v615
    %v2146 = vunpack.c.l.b16 %v616
    %v2147 = vunpack.c.h.b16 %v616
    %v2148 = vunpack.c.l.b16 %v617
    %v2149 = vunpack.c.h.b16 %v617
    %v2150 = vunpack.c.l.b16 %v618
    %v2151 = vunpack.c.h.b16 %v618
    %v2152 = vunpack.c.l.b16 %v619
    %v2153 = vunpack.c.h.b16 %v619
    %v2154 = vunpack.c.l.b16 %v620
    %v2155 = vunpack.c.h.b16 %v620
    %v2156 = vunpack.c.l.b16 %v621
    %v2157 = vunpack.c.h.b16 %v621
    %v2158 = vunpack.c.l.b16 %v622
    %v2159 = vunpack.c.h.b16 %v622
    %v2160 = vunpack.c.l.b16 %v623
    %v2161 = vunpack.c.h.b16 %v623
    %v2162 = vunpack.c.l.b16 %v624
    %v2163 = vunpack.c.h.b16 %v624
    %v2164 = vpack.c.b16 %v1148, %v1140
    %v2165 = vpack.c.b16 %v1149, %v1141
    %v2166 = vpack.c.b16 %v1150, %v1142
    %v2167 = vpack.c.b16 %v1151, %v1143
    %v2168 = vpack.c.b16 %v1152, %v1144
    %v2169 = vpack.c.b16 %v1153, %v1145
    %v2170 = vpack.c.b16 %v1154, %v1146
    %v2171 = vpack.c.b16 %v1155, %v1147
    %v2172 = vpack.c.b16 %v1164, %v1156
    %v2173 = vpack.c.b16 %v1165, %v1157
    %v2174 = vpack.c.b16 %v1166, %v1158
    %v2175 = vpack.c.b16 %v1167, %v1159
    %v2176 = vpack.c.b16 %v1168, %v1160
    %v2177 = vpack.c.b16 %v1169, %v1161
    %v2178 = vpack.c.b16 %v1170, %v1162
    %v2179 = vpack.c.b16 %v1171, %v1163
    %v2180 = vpack.c.b16 %v1180, %v1172
    %v2181 = vpack.c.b16 %v1181, %v1173
    %v2182 = vpack.c.b16 %v1182, %v1174
    %v2183 = vpack.c.b16 %v1183, %v1175
    %v2184 = vpack.c.b16 %v1184, %v1176
    %v2185 = vpack.c.b16 %v1185, %v1177
    %v2186 = vpack.c.b16 %v1186, %v1178
    %v2187 = vpack.c.b16 %v1187, %v1179
    %v2188 = vpack.c.b16 %v1196, %v1188
    %v2189 = vpack.c.b16 %v1197, %v1189
    %v2190 = vpack.c.b16 %v1198, %v1190
    %v2191 = vpack.c.b16 %v1199, %v1191
    %v2192 = vpack.c.b16 %v1200, %v1192
    %v2193 = vpack.c.b16 %v1201, %v1193
    %v2194 = vpack.c.b16 %v1202, %v1194
    %v2195 = vpack.c.b16 %v1203, %v1195
    %v2196 = vpack.c.b16 %v1212, %v1204
    %v2197 = vpack.c.b16 %v1213, %v1205
    %v2198 = vpack.c.b16 %v1214, %v1206
    %v2199 = vpack.c.b16 %v1215, %v1207
    %v2200 = vpack.c.b16 %v1216, %v1208
    %v2201 = vpack.c.b16 %v1217, %v1209
    %v2202 = vpack.c.b16 %v1218, %v1210
    %v2203 = vpack.c.b16 %v1219, %v1211
    %v2204 = vpack.c.b16 %v1228, %v1220
    %v2205 = vpack.c.b16 %v1229, %v1221
    %v2206 = vpack.c.b16 %v1230, %v1222
    %v2207 = vpack.c.b16 %v1231, %v1223
    %v2208 = vpack.c.b16 %v1232, %v1224
    %v2209 = vpack.c.b16 %v1233, %v1225
    %v2210 = vpack.c.b16 %v1234, %v1226
    %v2211 = vpack.c.b16 %v1235, %v1227
    %v2212 = vpack.c.b16 %v1244, %v1236
    %v2213 = vpack.c.b16 %v1245, %v1237
    %v2214 = vpack.c.b16 %v1246, %v1238
    %v2215 = vpack.c.b16 %v1247, %v1239
    %v2216 = vpack.c.b16 %v1248, %v1240
    %v2217 = vpack.c.b16 %v1249, %v1241
    %v2218 = vpack.c.b16 %v1250, %v1242
    %v2219 = vpack.c.b16 %v1251, %v1243
    %v2220 = vpack.c.b16 %v1260, %v1252
    %v2221 = vpack.c.b16 %v1261, %v1253
    %v2222 = vpack.c.b16 %v1262, %v1254
    %v2223 = vpack.c.b16 %v1263, %v1255
    %v2224 = vpack.c.b16 %v1264, %v1256
    %v2225 = vpack.c.b16 %v1265, %v1257
    %v2226 = vpack.c.b16 %v1266, %v1258
    %v2227 = vpack.c.b16 %v1267, %v1259
    %v2228 = vpack.c.b16 %v1276, %v1268
    %v2229 = vpack.c.b16 %v1277, %v1269
    %v2230 = vpack.c.b16 %v1278, %v1270
    %v2231 = vpack.c.b16 %v1279, %v1271
    %v2232 = vpack.c.b16 %v1280, %v1272
    %v2233 = vpack.c.b16 %v1281, %v1273
    %v2234 = vpack.c.b16 %v1282, %v1274
    %v2235 = vpack.c.b16 %v1283, %v1275
    %v2236 = vpack.c.b16 %v1292, %v1284
    %v2237 = vpack.c.b16 %v1293, %v1285
    %v2238 = vpack.c.b16 %v1294, %v1286
    %v2239 = vpack.c.b16 %v1295, %v1287
    %v2240 = vpack.c.b16 %v1296, %v1288
    %v2241 = vpack.c.b16 %v1297, %v1289
    %v2242 = vpack.c.b16 %v1298, %v1290
    %v2243 = vpack.c.b16 %v1299, %v1291
    %v2244 = vpack.c.b16 %v1308, %v1300
    %v2245 = vpack.c.b16 %v1309, %v1301
    %v2246 = vpack.c.b16 %v1310, %v1302
    %v2247 = vpack.c.b16 %v1311, %v1303
    %v2248 = vpack.c.b16 %v1312, %v1304
    %v2249 = vpack.c.b16 %v1313, %v1305
    %v2250 = vpack.c.b16 %v1314, %v1306
    %v2251 = vpack.c.b16 %v1315, %v1307
    %v2252 = vpack.c.b16 %v1324, %v1316
    %v2253 = vpack.c.b16 %v1325, %v1317
    %v2254 = vpack.c.b16 %v1326, %v1318
    %v2255 = vpack.c.b16 %v1327, %v1319
    %v2256 = vpack.c.b16 %v1328, %v1320
    %v2257 = vpack.c.b16 %v1329, %v1321
    %v2258 = vpack.c.b16 %v1330, %v1322
    %v2259 = vpack.c.b16 %v1331, %v1323
    %v2260 = vpack.c.b16 %v1340, %v1332
    %v2261 = vpack.c.b16 %v1341, %v1333
    %v2262 = vpack.c.b16 %v1342, %v1334
    %v2263 = vpack.c.b16 %v1343, %v1335
    %v2264 = vpack.c.b16 %v1344, %v1336
    %v2265 = vpack.c.b16 %v1345, %v1337
    %v2266 = vpack.c.b16 %v1346, %v1338
    %v2267 = vpack.c.b16 %v1347, %v1339
    %v2268 = vpack.c.b16 %v1356, %v1348
    %v2269 = vpack.c.b16 %v1357, %v1349
    %v2270 = vpack.c.b16 %v1358, %v1350
    %v2271 = vpack.c.b16 %v1359, %v1351
    %v2272 = vpack.c.b16 %v1360, %v1352
    %v2273 = vpack.c.b16 %v1361, %v1353
    %v2274 = vpack.c.b16 %v1362, %v1354
    %v2275 = vpack.c.b16 %v1363, %v1355
    %v2276 = vpack.c.b16 %v1372, %v1364
    %v2277 = vpack.c.b16 %v1373, %v1365
    %v2278 = vpack.c.b16 %v1374, %v1366
    %v2279 = vpack.c.b16 %v1375, %v1367
    %v2280 = vpack.c.b16 %v1376, %v1368
    %v2281 = vpack.c.b16 %v1377, %v1369
    %v2282 = vpack.c.b16 %v1378, %v1370
    %v2283 = vpack.c.b16 %v1379, %v1371
    %v2284 = vpack.c.b16 %v1388, %v1380
    %v2285 = vpack.c.b16 %v1389, %v1381
    %v2286 = vpack.c.b16 %v1390, %v1382
    %v2287 = vpack.c.b16 %v1391, %v1383
    %v2288 = vpack.c.b16 %v1392, %v1384
    %v2289 = vpack.c.b16 %v1393, %v1385
    %v2290 = vpack.c.b16 %v1394, %v1386
    %v2291 = vpack.c.b16 %v1395, %v1387
    %v2292 = vpack.c.b16 %v1404, %v1396
    %v2293 = vpack.c.b16 %v1405, %v1397
    %v2294 = vpack.c.b16 %v1406, %v1398
    %v2295 = vpack.c.b16 %v1407, %v1399
    %v2296 = vpack.c.b16 %v1408, %v1400
    %v2297 = vpack.c.b16 %v1409, %v1401
    %v2298 = vpack.c.b16 %v1410, %v1402
    %v2299 = vpack.c.b16 %v1411, %v1403
    %v2300 = vpack.c.b16 %v1420, %v1412
    %v2301 = vpack.c.b16 %v1421, %v1413
    %v2302 = vpack.c.b16 %v1422, %v1414
    %v2303 = vpack.c.b16 %v1423, %v1415
    %v2304 = vpack.c.b16 %v1424, %v1416
    %v2305 = vpack.c.b16 %v1425, %v1417
    %v2306 = vpack.c.b16 %v1426, %v1418
    %v2307 = vpack.c.b16 %v1427, %v1419
    %v2308 = vpack.c.b16 %v1436, %v1428
    %v2309 = vpack.c.b16 %v1437, %v1429
    %v2310 = vpack.c.b16 %v1438, %v1430
    %v2311 = vpack.c.b16 %v1439, %v1431
    %v2312 = vpack.c.b16 %v1440, %v1432
    %v2313 = vpack.c.b16 %v1441, %v1433
    %v2314 = vpack.c.b16 %v1442, %v1434
    %v2315 = vpack.c.b16 %v1443, %v1435
    %v2316 = vpack.c.b16 %v1452, %v1444
    %v2317 = vpack.c.b16 %v1453, %v1445
    %v2318 = vpack.c.b16 %v1454, %v1446
    %v2319 = vpack.c.b16 %v1455, %v1447
    %v2320 = vpack.c.b16 %v1456, %v1448
    %v2321 = vpack.c.b16 %v1457, %v1449
    %v2322 = vpack.c.b16 %v1458, %v1450
    %v2323 = vpack.c.b16 %v1459, %v1451
    %v2324 = vpack.c.b16 %v1468, %v1460
    %v2325 = vpack.c.b16 %v1469, %v1461
    %v2326 = vpack.c.b16 %v1470, %v1462
    %v2327 = vpack.c.b16 %v1471, %v1463
    %v2328 = vpack.c.b16 %v1472, %v1464
    %v2329 = vpack.c.b16 %v1473, %v1465
    %v2330 = vpack.c.b16 %v1474, %v1466
    %v2331 = vpack.c.b16 %v1475, %v1467
    %v2332 = vpack.c.b16 %v1484, %v1476
    %v2333 = vpack.c.b16 %v1485, %v1477
    %v2334 = vpack.c.b16 %v1486, %v1478
    %v2335 = vpack.c.b16 %v1487, %v1479
    %v2336 = vpack.c.b16 %v1488, %v1480
    %v2337 = vpack.c.b16 %v1489, %v1481
    %v2338 = vpack.c.b16 %v1490, %v1482
    %v2339 = vpack.c.b16 %v1491, %v1483
    %v2340 = vpack.c.b16 %v1500, %v1492
    %v2341 = vpack.c.b16 %v1501, %v1493
    %v2342 = vpack.c.b16 %v1502, %v1494
    %v2343 = vpack.c.b16 %v1503, %v1495
    %v2344 = vpack.c.b16 %v1504, %v1496
    %v2345 = vpack.c.b16 %v1505, %v1497
    %v2346 = vpack.c.b16 %v1506, %v1498
    %v2347 = vpack.c.b16 %v1507, %v1499
    %v2348 = vpack.c.b16 %v1516, %v1508
    %v2349 = vpack.c.b16 %v1517, %v1509
    %v2350 = vpack.c.b16 %v1518, %v1510
    %v2351 = vpack.c.b16 %v1519, %v1511
    %v2352 = vpack.c.b16 %v1520, %v1512
    %v2353 = vpack.c.b16 %v1521, %v1513
    %v2354 = vpack.c.b16 %v1522, %v1514
    %v2355 = vpack.c.b16 %v1523, %v1515
    %v2356 = vpack.c.b16 %v1532, %v1524
    %v2357 = vpack.c.b16 %v1533, %v1525
    %v2358 = vpack.c.b16 %v1534, %v1526
    %v2359 = vpack.c.b16 %v1535, %v1527
    %v2360 = vpack.c.b16 %v1536, %v1528
    %v2361 = vpack.c.b16 %v1537, %v1529
    %v2362 = vpack.c.b16 %v1538, %v1530
    %v2363 = vpack.c.b16 %v1539, %v1531
    %v2364 = vpack.c.b16 %v1548, %v1540
    %v2365 = vpack.c.b16 %v1549, %v1541
    %v2366 = vpack.c.b16 %v1550, %v1542
    %v2367 = vpack.c.b16 %v1551, %v1543
    %v2368 = vpack.c.b16 %v1552, %v1544
    %v2369 = vpack.c.b16 %v1553, %v1545
    %v2370 = vpack.c.b16 %v1554, %v1546
    %v2371 = vpack.c.b16 %v1555, %v1547
    %v2372 = vpack.c.b16 %v1564, %v1556
    %v2373 = vpack.c.b16 %v1565, %v1557
    %v2374 = vpack.c.b16 %v1566, %v1558
    %v2375 = vpack.c.b16 %v1567, %v1559
    %v2376 = vpack.c.b16 %v1568, %v1560
    %v2377 = vpack.c.b16 %v1569, %v1561
    %v2378 = vpack.c.b16 %v1570, %v1562
    %v2379 = vpack.c.b16 %v1571, %v1563
    %v2380 = vpack.c.b16 %v1580, %v1572
    %v2381 = vpack.c.b16 %v1581, %v1573
    %v2382 = vpack.c.b16 %v1582, %v1574
    %v2383 = vpack.c.b16 %v1583, %v1575
    %v2384 = vpack.c.b16 %v1584, %v1576
    %v2385 = vpack.c.b16 %v1585, %v1577
    %v2386 = vpack.c.b16 %v1586, %v1578
    %v2387 = vpack.c.b16 %v1587, %v1579
    %v2388 = vpack.c.b16 %v1596, %v1588
    %v2389 = vpack.c.b16 %v1597, %v1589
    %v2390 = vpack.c.b16 %v1598, %v1590
    %v2391 = vpack.c.b16 %v1599, %v1591
    %v2392 = vpack.c.b16 %v1600, %v1592
    %v2393 = vpack.c.b16 %v1601, %v1593
    %v2394 = vpack.c.b16 %v1602, %v1594
    %v2395 = vpack.c.b16 %v1603, %v1595
    %v2396 = vpack.c.b16 %v1612, %v1604
    %v2397 = vpack.c.b16 %v1613, %v1605
    %v2398 = vpack.c.b16 %v1614, %v1606
    %v2399 = vpack.c.b16 %v1615, %v1607
    %v2400 = vpack.c.b16 %v1616, %v1608
    %v2401 = vpack.c.b16 %v1617, %v1609
    %v2402 = vpack.c.b16 %v1618, %v1610
    %v2403 = vpack.c.b16 %v1619, %v1611
    %v2404 = vpack.c.b16 %v1628, %v1620
    %v2405 = vpack.c.b16 %v1629, %v1621
    %v2406 = vpack.c.b16 %v1630, %v1622
    %v2407 = vpack.c.b16 %v1631, %v1623
    %v2408 = vpack.c.b16 %v1632, %v1624
    %v2409 = vpack.c.b16 %v1633, %v1625
    %v2410 = vpack.c.b16 %v1634, %v1626
    %v2411 = vpack.c.b16 %v1635, %v1627
    %v2412 = vpack.c.b16 %v1644, %v1636
    %v2413 = vpack.c.b16 %v1645, %v1637
    %v2414 = vpack.c.b16 %v1646, %v1638
    %v2415 = vpack.c.b16 %v1647, %v1639
    %v2416 = vpack.c.b16 %v1648, %v1640
    %v2417 = vpack.c.b16 %v1649, %v1641
    %v2418 = vpack.c.b16 %v1650, %v1642
    %v2419 = vpack.c.b16 %v1651, %v1643
    %v2420 = vpack.c.b16 %v1660, %v1652
    %v2421 = vpack.c.b16 %v1661, %v1653
    %v2422 = vpack.c.b16 %v1662, %v1654
    %v2423 = vpack.c.b16 %v1663, %v1655
    %v2424 = vpack.c.b16 %v1664, %v1656
    %v2425 = vpack.c.b16 %v1665, %v1657
    %v2426 = vpack.c.b16 %v1666, %v1658
    %v2427 = vpack.c.b16 %v1667, %v1659
    %v2428 = vpack.c.b16 %v1676, %v1668
    %v2429 = vpack.c.b16 %v1677, %v1669
    %v2430 = vpack.c.b16 %v1678, %v1670
    %v2431 = vpack.c.b16 %v1679, %v1671
    %v2432 = vpack.c.b16 %v1680, %v1672
    %v2433 = vpack.c.b16 %v1681, %v1673
    %v2434 = vpack.c.b16 %v1682, %v1674
    %v2435 = vpack.c.b16 %v1683, %v1675
    %v2436 = vpack.c.b16 %v1692, %v1684
    %v2437 = vpack.c.b16 %v1693, %v1685
    %v2438 = vpack.c.b16 %v1694, %v1686
    %v2439 = vpack.c.b16 %v1695, %v1687
    %v2440 = vpack.c.b16 %v1696, %v1688
    %v2441 = vpack.c.b16 %v1697, %v1689
    %v2442 = vpack.c.b16 %v1698, %v1690
    %v2443 = vpack.c.b16 %v1699, %v1691
    %v2444 = vpack.c.b16 %v1708, %v1700
    %v2445 = vpack.c.b16 %v1709, %v1701
    %v2446 = vpack.c.b16 %v1710, %v1702
    %v2447 = vpack.c.b16 %v1711, %v1703
    %v2448 = vpack.c.b16 %v1712, %v1704
    %v2449 = vpack.c.b16 %v1713, %v1705
    %v2450 = vpack.c.b16 %v1714, %v1706
    %v2451 = vpack.c.b16 %v1715, %v1707
    %v2452 = vpack.c.b16 %v1724, %v1716
    %v2453 = vpack.c.b16 %v1725, %v1717
    %v2454 = vpack.c.b16 %v1726, %v1718
    %v2455 = vpack.c.b16 %v1727, %v1719
    %v2456 = vpack.c.b16 %v1728, %v1720
    %v2457 = vpack.c.b16 %v1729, %v1721
    %v2458 = vpack.c.b16 %v1730, %v1722
    %v2459 = vpack.c.b16 %v1731, %v1723
    %v2460 = vpack.c.b16 %v1740, %v1732
    %v2461 = vpack.c.b16 %v1741, %v1733
    %v2462 = vpack.c.b16 %v1742, %v1734
    %v2463 = vpack.c.b16 %v1743, %v1735
    %v2464 = vpack.c.b16 %v1744, %v1736
    %v2465 = vpack.c.b16 %v1745, %v1737
    %v2466 = vpack.c.b16 %v1746, %v1738
    %v2467 = vpack.c.b16 %v1747, %v1739
    %v2468 = vpack.c.b16 %v1756, %v1748
    %v2469 = vpack.c.b16 %v1757, %v1749
    %v2470 = vpack.c.b16 %v1758, %v1750
    %v2471 = vpack.c.b16 %v1759, %v1751
    %v2472 = vpack.c.b16 %v1760, %v1752
    %v2473 = vpack.c.b16 %v1761, %v1753
    %v2474 = vpack.c.b16 %v1762, %v1754
    %v2475 = vpack.c.b16 %v1763, %v1755
    %v2476 = vpack.c.b16 %v1772, %v1764
    %v2477 = vpack.c.b16 %v1773, %v1765
    %v2478 = vpack.c.b16 %v1774, %v1766
    %v2479 = vpack.c.b16 %v1775, %v1767
    %v2480 = vpack.c.b16 %v1776, %v1768
    %v2481 = vpack.c.b16 %v1777, %v1769
    %v2482 = vpack.c.b16 %v1778, %v1770
    %v2483 = vpack.c.b16 %v1779, %v1771
    %v2484 = vpack.c.b16 %v1788, %v1780
    %v2485 = vpack.c.b16 %v1789, %v1781
    %v2486 = vpack.c.b16 %v1790, %v1782
    %v2487 = vpack.c.b16 %v1791, %v1783
    %v2488 = vpack.c.b16 %v1792, %v1784
    %v2489 = vpack.c.b16 %v1793, %v1785
    %v2490 = vpack.c.b16 %v1794, %v1786
    %v2491 = vpack.c.b16 %v1795, %v1787
    %v2492 = vpack.c.b16 %v1804, %v1796
    %v2493 = vpack.c.b16 %v1805, %v1797
    %v2494 = vpack.c.b16 %v1806, %v1798
    %v2495 = vpack.c.b16 %v1807, %v1799
    %v2496 = vpack.c.b16 %v1808, %v1800
    %v2497 = vpack.c.b16 %v1809, %v1801
    %v2498 = vpack.c.b16 %v1810, %v1802
    %v2499 = vpack.c.b16 %v1811, %v1803
    %v2500 = vpack.c.b16 %v1820, %v1812
    %v2501 = vpack.c.b16 %v1821, %v1813
    %v2502 = vpack.c.b16 %v1822, %v1814
    %v2503 = vpack.c.b16 %v1823, %v1815
    %v2504 = vpack.c.b16 %v1824, %v1816
    %v2505 = vpack.c.b16 %v1825, %v1817
    %v2506 = vpack.c.b16 %v1826, %v1818
    %v2507 = vpack.c.b16 %v1827, %v1819
    %v2508 = vpack.c.b16 %v1836, %v1828
    %v2509 = vpack.c.b16 %v1837, %v1829
    %v2510 = vpack.c.b16 %v1838, %v1830
    %v2511 = vpack.c.b16 %v1839, %v1831
    %v2512 = vpack.c.b16 %v1840, %v1832
    %v2513 = vpack.c.b16 %v1841, %v1833
    %v2514 = vpack.c.b16 %v1842, %v1834
    %v2515 = vpack.c.b16 %v1843, %v1835
    %v2516 = vpack.c.b16 %v1852, %v1844
    %v2517 = vpack.c.b16 %v1853, %v1845
    %v2518 = vpack.c.b16 %v1854, %v1846
    %v2519 = vpack.c.b16 %v1855, %v1847
    %v2520 = vpack.c.b16 %v1856, %v1848
    %v2521 = vpack.c.b16 %v1857, %v1849
    %v2522 = vpack.c.b16 %v1858, %v1850
    %v2523 = vpack.c.b16 %v1859, %v1851
    %v2524 = vpack.c.b16 %v1868, %v1860
    %v2525 = vpack.c.b16 %v1869, %v1861
    %v2526 = vpack.c.b16 %v1870, %v1862
    %v2527 = vpack.c.b16 %v1871, %v1863
    %v2528 = vpack.c.b16 %v1872, %v1864
    %v2529 = vpack.c.b16 %v1873, %v1865
    %v2530 = vpack.c.b16 %v1874, %v1866
    %v2531 = vpack.c.b16 %v1875, %v1867
    %v2532 = vpack.c.b16 %v1884, %v1876
    %v2533 = vpack.c.b16 %v1885, %v1877
    %v2534 = vpack.c.b16 %v1886, %v1878
    %v2535 = vpack.c.b16 %v1887, %v1879
    %v2536 = vpack.c.b16 %v1888, %v1880
    %v2537 = vpack.c.b16 %v1889, %v1881
    %v2538 = vpack.c.b16 %v1890, %v1882
    %v2539 = vpack.c.b16 %v1891, %v1883
    %v2540 = vpack.c.b16 %v1900, %v1892
    %v2541 = vpack.c.b16 %v1901, %v1893
    %v2542 = vpack.c.b16 %v1902, %v1894
    %v2543 = vpack.c.b16 %v1903, %v1895
    %v2544 = vpack.c.b16 %v1904, %v1896
    %v2545 = vpack.c.b16 %v1905, %v1897
    %v2546 = vpack.c.b16 %v1906, %v1898
    %v2547 = vpack.c.b16 %v1907, %v1899
    %v2548 = vpack.c.b16 %v1916, %v1908
    %v2549 = vpack.c.b16 %v1917, %v1909
    %v2550 = vpack.c.b16 %v1918, %v1910
    %v2551 = vpack.c.b16 %v1919, %v1911
    %v2552 = vpack.c.b16 %v1920, %v1912
    %v2553 = vpack.c.b16 %v1921, %v1913
    %v2554 = vpack.c.b16 %v1922, %v1914
    %v2555 = vpack.c.b16 %v1923, %v1915
    %v2556 = vpack.c.b16 %v1932, %v1924
    %v2557 = vpack.c.b16 %v1933, %v1925
    %v2558 = vpack.c.b16 %v1934, %v1926
    %v2559 = vpack.c.b16 %v1935, %v1927
    %v2560 = vpack.c.b16 %v1936, %v1928
    %v2561 = vpack.c.b16 %v1937, %v1929
    %v2562 = vpack.c.b16 %v1938, %v1930
    %v2563 = vpack.c.b16 %v1939, %v1931
    %v2564 = vpack.c.b16 %v1948, %v1940
    %v2565 = vpack.c.b16 %v1949, %v1941
    %v2566 = vpack.c.b16 %v1950, %v1942
    %v2567 = vpack.c.b16 %v1951, %v1943
    %v2568 = vpack.c.b16 %v1952, %v1944
    %v2569 = vpack.c.b16 %v1953, %v1945
    %v2570 = vpack.c.b16 %v1954, %v1946
    %v2571 = vpack.c.b16 %v1955, %v1947
    %v2572 = vpack.c.b16 %v1964, %v1956
    %v2573 = vpack.c.b16 %v1965, %v1957
    %v2574 = vpack.c.b16 %v1966, %v1958
    %v2575 = vpack.c.b16 %v1967, %v1959
    %v2576 = vpack.c.b16 %v1968, %v1960
    %v2577 = vpack.c.b16 %v1969, %v1961
    %v2578 = vpack.c.b16 %v1970, %v1962
    %v2579 = vpack.c.b16 %v1971, %v1963
    %v2580 = vpack.c.b16 %v1980, %v1972
    %v2581 = vpack.c.b16 %v1981, %v1973
    %v2582 = vpack.c.b16 %v1982, %v1974
    %v2583 = vpack.c.b16 %v1983, %v1975
    %v2584 = vpack.c.b16 %v1984, %v1976
    %v2585 = vpack.c.b16 %v1985, %v1977
    %v2586 = vpack.c.b16 %v1986, %v1978
    %v2587 = vpack.c.b16 %v1987, %v1979
    %v2588 = vpack.c.b16 %v1996, %v1988
    %v2589 = vpack.c.b16 %v1997, %v1989
    %v2590 = vpack.c.b16 %v1998, %v1990
    %v2591 = vpack.c.b16 %v1999, %v1991
    %v2592 = vpack.c.b16 %v2000, %v1992
    %v2593 = vpack.c.b16 %v2001, %v1993
    %v2594 = vpack.c.b16 %v2002, %v1994
    %v2595 = vpack.c.b16 %v2003, %v1995
    %v2596 = vpack.c.b16 %v2012, %v2004
    %v2597 = vpack.c.b16 %v2013, %v2005
    %v2598 = vpack.c.b16 %v2014, %v2006
    %v2599 = vpack.c.b16 %v2015, %v2007
    %v2600 = vpack.c.b16 %v2016, %v2008
    %v2601 = vpack.c.b16 %v2017, %v2009
    %v2602 = vpack.c.b16 %v2018, %v2010
    %v2603 = vpack.c.b16 %v2019, %v2011
    %v2604 = vpack.c.b16 %v2028, %v2020
    %v2605 = vpack.c.b16 %v2029, %v2021
    %v2606 = vpack.c.b16 %v2030, %v2022
    %v2607 = vpack.c.b16 %v2031, %v2023
    %v2608 = vpack.c.b16 %v2032, %v2024
    %v2609 = vpack.c.b16 %v2033, %v2025
    %v2610 = vpack.c.b16 %v2034, %v2026
    %v2611 = vpack.c.b16 %v2035, %v2027
    %v2612 = vpack.c.b16 %v2044, %v2036
    %v2613 = vpack.c.b16 %v2045, %v2037
    %v2614 = vpack.c.b16 %v2046, %v2038
    %v2615 = vpack.c.b16 %v2047, %v2039
    %v2616 = vpack.c.b16 %v2048, %v2040
    %v2617 = vpack.c.b16 %v2049, %v2041
    %v2618 = vpack.c.b16 %v2050, %v2042
    %v2619 = vpack.c.b16 %v2051, %v2043
    %v2620 = vpack.c.b16 %v2060, %v2052
    %v2621 = vpack.c.b16 %v2061, %v2053
    %v2622 = vpack.c.b16 %v2062, %v2054
    %v2623 = vpack.c.b16 %v2063, %v2055
    %v2624 = vpack.c.b16 %v2064, %v2056
    %v2625 = vpack.c.b16 %v2065, %v2057
    %v2626 = vpack.c.b16 %v2066, %v2058
    %v2627 = vpack.c.b16 %v2067, %v2059
    %v2628 = vpack.c.b16 %v2076, %v2068
    %v2629 = vpack.c.b16 %v2077, %v2069
    %v2630 = vpack.c.b16 %v2078, %v2070
    %v2631 = vpack.c.b16 %v2079, %v2071
    %v2632 = vpack.c.b16 %v2080, %v2072
    %v2633 = vpack.c.b16 %v2081, %v2073
    %v2634 = vpack.c.b16 %v2082, %v2074
    %v2635 = vpack.c.b16 %v2083, %v2075
    %v2636 = vpack.c.b16 %v2092, %v2084
    %v2637 = vpack.c.b16 %v2093, %v2085
    %v2638 = vpack.c.b16 %v2094, %v2086
    %v2639 = vpack.c.b16 %v2095, %v2087
    %v2640 = vpack.c.b16 %v2096, %v2088
    %v2641 = vpack.c.b16 %v2097, %v2089
    %v2642 = vpack.c.b16 %v2098, %v2090
    %v2643 = vpack.c.b16 %v2099, %v2091
    %v2644 = vpack.c.b16 %v2108, %v2100
    %v2645 = vpack.c.b16 %v2109, %v2101
    %v2646 = vpack.c.b16 %v2110, %v2102
    %v2647 = vpack.c.b16 %v2111, %v2103
    %v2648 = vpack.c.b16 %v2112, %v2104
    %v2649 = vpack.c.b16 %v2113, %v2105
    %v2650 = vpack.c.b16 %v2114, %v2106
    %v2651 = vpack.c.b16 %v2115, %v2107
    %v2652 = vpack.c.b16 %v2124, %v2116
    %v2653 = vpack.c.b16 %v2125, %v2117
    %v2654 = vpack.c.b16 %v2126, %v2118
    %v2655 = vpack.c.b16 %v2127, %v2119
    %v2656 = vpack.c.b16 %v2128, %v2120
    %v2657 = vpack.c.b16 %v2129, %v2121
    %v2658 = vpack.c.b16 %v2130, %v2122
    %v2659 = vpack.c.b16 %v2131, %v2123
    %v2660 = vpack.c.b16 %v2140, %v2132
    %v2661 = vpack.c.b16 %v2141, %v2133
    %v2662 = vpack.c.b16 %v2142, %v2134
    %v2663 = vpack.c.b16 %v2143, %v2135
    %v2664 = vpack.c.b16 %v2144, %v2136
    %v2665 = vpack.c.b16 %v2145, %v2137
    %v2666 = vpack.c.b16 %v2146, %v2138
    %v2667 = vpack.c.b16 %v2147, %v2139
    %v2668 = vpack.c.b16 %v2156, %v2148
    %v2669 = vpack.c.b16 %v2157, %v2149
    %v2670 = vpack.c.b16 %v2158, %v2150
    %v2671 = vpack.c.b16 %v2159, %v2151
    %v2672 = vpack.c.b16 %v2160, %v2152
    %v2673 = vpack.c.b16 %v2161, %v2153
    %v2674 = vpack.c.b16 %v2162, %v2154
    %v2675 = vpack.c.b16 %v2163, %v2155
    %v3189 = vperm.slane %v627, 0
    %v3190 = vperm.slane %v627, 1
    %v3191 = vperm.slane %v627, 2
    %v3192 = vperm.slane %v627, 3
    %v3193 = vperm.slane %v627, 4
    %v3194 = vperm.slane %v627, 5
    %v3195 = vperm.slane %v627, 6
    %v3196 = vperm.slane %v627, 7
    %3205 = vmatpush.bf16.msra.mxu0 %v2220
    %3206 = vmatpush.bf16.msra.mxu0 %v2212
    %3207 = vmatpush.bf16.msra.mxu0 %v2204
    %3208 = vmatpush.bf16.msra.mxu0 %v2196
    %3209 = vmatpush.bf16.msra.mxu0 %v2188
    %3210 = vmatpush.bf16.msra.mxu0 %v2180
    %3211 = vmatpush.bf16.msra.mxu0 %v2172
    %3212 = vmatpush.bf16.msra.mxu0 %v2164
    %3213 = vmatmul.bf16.gmra.mxu0 %v105
    %v3214 = vpop.f32.mrf.mxu0
    %v3215 = vadd.f32 %v3189, %v3214
    %v3216 = vpop.f32.mrf.mxu0
    %3217 = vdwg.mxu0
    %3218 = vmatpush.bf16.msra.mxu0 %v2284
    %3219 = vmatpush.bf16.msra.mxu0 %v2276
    %3220 = vmatpush.bf16.msra.mxu0 %v2268
    %3221 = vmatpush.bf16.msra.mxu0 %v2260
    %3222 = vmatpush.bf16.msra.mxu0 %v2252
    %3223 = vmatpush.bf16.msra.mxu0 %v2244
    %3224 = vmatpush.bf16.msra.mxu0 %v2236
    %3225 = vmatpush.bf16.msra.mxu0 %v2228
    %3226 = vmatmul.bf16.gmra.mxu0 %v106
    %v3227 = vpop.f32.mrf.mxu0
    %v3228 = vadd.f32 %v3215, %v3227
    %v3229 = vpop.f32.mrf.mxu0
    %3230 = vdwg.mxu0
    %3231 = vmatpush.bf16.msra.mxu0 %v2348
    %3232 = vmatpush.bf16.msra.mxu0 %v2340
    %3233 = vmatpush.bf16.msra.mxu0 %v2332
    %3234 = vmatpush.bf16.msra.mxu0 %v2324
    %3235 = vmatpush.bf16.msra.mxu0 %v2316
    %3236 = vmatpush.bf16.msra.mxu0 %v2308
    %3237 = vmatpush.bf16.msra.mxu0 %v2300
    %3238 = vmatpush.bf16.msra.mxu0 %v2292
    %3239 = vmatmul.bf16.gmra.mxu0 %v107
    %v3240 = vpop.f32.mrf.mxu0
    %v3241 = vadd.f32 %v3228, %v3240
    %v3242 = vpop.f32.mrf.mxu0
    %3243 = vdwg.mxu0
    %3244 = vmatpush.bf16.msra.mxu0 %v2412
    %3245 = vmatpush.bf16.msra.mxu0 %v2404
    %3246 = vmatpush.bf16.msra.mxu0 %v2396
    %3247 = vmatpush.bf16.msra.mxu0 %v2388
    %3248 = vmatpush.bf16.msra.mxu0 %v2380
    %3249 = vmatpush.bf16.msra.mxu0 %v2372
    %3250 = vmatpush.bf16.msra.mxu0 %v2364
    %3251 = vmatpush.bf16.msra.mxu0 %v2356
    %3252 = vmatmul.bf16.gmra.mxu0 %v108
    %v3253 = vpop.f32.mrf.mxu0
    %v3254 = vadd.f32 %v3241, %v3253
    %v3255 = vpop.f32.mrf.mxu0
    %3256 = vdwg.mxu0
    %3257 = vmatpush.bf16.msra.mxu0 %v2476
    %3258 = vmatpush.bf16.msra.mxu0 %v2468
    %3259 = vmatpush.bf16.msra.mxu0 %v2460
    %3260 = vmatpush.bf16.msra.mxu0 %v2452
    %3261 = vmatpush.bf16.msra.mxu0 %v2444
    %3262 = vmatpush.bf16.msra.mxu0 %v2436
    %3263 = vmatpush.bf16.msra.mxu0 %v2428
    %3264 = vmatpush.bf16.msra.mxu0 %v2420
    %3265 = vmatmul.bf16.gmra.mxu0 %v109
    %v3266 = vpop.f32.mrf.mxu0
    %v3267 = vadd.f32 %v3254, %v3266
    %v3268 = vpop.f32.mrf.mxu0
    %3269 = vdwg.mxu0
    %3270 = vmatpush.bf16.msra.mxu0 %v2540
    %3271 = vmatpush.bf16.msra.mxu0 %v2532
    %3272 = vmatpush.bf16.msra.mxu0 %v2524
    %3273 = vmatpush.bf16.msra.mxu0 %v2516
    %3274 = vmatpush.bf16.msra.mxu0 %v2508
    %3275 = vmatpush.bf16.msra.mxu0 %v2500
    %3276 = vmatpush.bf16.msra.mxu0 %v2492
    %3277 = vmatpush.bf16.msra.mxu0 %v2484
    %3278 = vmatmul.bf16.gmra.mxu0 %v110
    %v3279 = vpop.f32.mrf.mxu0
    %v3280 = vadd.f32 %v3267, %v3279
    %v3281 = vpop.f32.mrf.mxu0
    %3282 = vdwg.mxu0
    %3283 = vmatpush.bf16.msra.mxu0 %v2604
    %3284 = vmatpush.bf16.msra.mxu0 %v2596
    %3285 = vmatpush.bf16.msra.mxu0 %v2588
    %3286 = vmatpush.bf16.msra.mxu0 %v2580
    %3287 = vmatpush.bf16.msra.mxu0 %v2572
    %3288 = vmatpush.bf16.msra.mxu0 %v2564
    %3289 = vmatpush.bf16.msra.mxu0 %v2556
    %3290 = vmatpush.bf16.msra.mxu0 %v2548
    %3291 = vmatmul.bf16.gmra.mxu0 %v111
    %v3292 = vpop.f32.mrf.mxu0
    %v3293 = vadd.f32 %v3280, %v3292
    %v3294 = vpop.f32.mrf.mxu0
    %3295 = vdwg.mxu0
    %3296 = vmatpush.bf16.msra.mxu0 %v2668
    %3297 = vmatpush.bf16.msra.mxu0 %v2660
    %3298 = vmatpush.bf16.msra.mxu0 %v2652
    %3299 = vmatpush.bf16.msra.mxu0 %v2644
    %3300 = vmatpush.bf16.msra.mxu0 %v2636
    %3301 = vmatpush.bf16.msra.mxu0 %v2628
    %3302 = vmatpush.bf16.msra.mxu0 %v2620
    %3303 = vmatpush.bf16.msra.mxu0 %v2612
    %3304 = vmatmul.bf16.gmra.mxu0 %v112
    %v3305 = vpop.f32.mrf.mxu0
    %v3306 = vadd.f32 %v3293, %v3305
    %v3307 = vpop.f32.mrf.mxu0
    %3308 = vdwg.mxu0
    %3309 = vmatpush.bf16.msra.mxu0 %v2221
    %3310 = vmatpush.bf16.msra.mxu0 %v2213
    %3311 = vmatpush.bf16.msra.mxu0 %v2205
    %3312 = vmatpush.bf16.msra.mxu0 %v2197
    %3313 = vmatpush.bf16.msra.mxu0 %v2189
    %3314 = vmatpush.bf16.msra.mxu0 %v2181
    %3315 = vmatpush.bf16.msra.mxu0 %v2173
    %3316 = vmatpush.bf16.msra.mxu0 %v2165
    %3317 = vmatmul.bf16.gmra.mxu0 %v105
    %v3318 = vpop.f32.mrf.mxu0
    %v3319 = vadd.f32 %v3190, %v3318
    %v3320 = vpop.f32.mrf.mxu0
    %3321 = vdwg.mxu0
    %3322 = vmatpush.bf16.msra.mxu0 %v2285
    %3323 = vmatpush.bf16.msra.mxu0 %v2277
    %3324 = vmatpush.bf16.msra.mxu0 %v2269
    %3325 = vmatpush.bf16.msra.mxu0 %v2261
    %3326 = vmatpush.bf16.msra.mxu0 %v2253
    %3327 = vmatpush.bf16.msra.mxu0 %v2245
    %3328 = vmatpush.bf16.msra.mxu0 %v2237
    %3329 = vmatpush.bf16.msra.mxu0 %v2229
    %3330 = vmatmul.bf16.gmra.mxu0 %v106
    %v3331 = vpop.f32.mrf.mxu0
    %v3332 = vadd.f32 %v3319, %v3331
    %v3333 = vpop.f32.mrf.mxu0
    %3334 = vdwg.mxu0
    %3335 = vmatpush.bf16.msra.mxu0 %v2349
    %3336 = vmatpush.bf16.msra.mxu0 %v2341
    %3337 = vmatpush.bf16.msra.mxu0 %v2333
    %3338 = vmatpush.bf16.msra.mxu0 %v2325
    %3339 = vmatpush.bf16.msra.mxu0 %v2317
    %3340 = vmatpush.bf16.msra.mxu0 %v2309
    %3341 = vmatpush.bf16.msra.mxu0 %v2301
    %3342 = vmatpush.bf16.msra.mxu0 %v2293
    %3343 = vmatmul.bf16.gmra.mxu0 %v107
    %v3344 = vpop.f32.mrf.mxu0
    %v3345 = vadd.f32 %v3332, %v3344
    %v3346 = vpop.f32.mrf.mxu0
    %3347 = vdwg.mxu0
    %3348 = vmatpush.bf16.msra.mxu0 %v2413
    %3349 = vmatpush.bf16.msra.mxu0 %v2405
    %3350 = vmatpush.bf16.msra.mxu0 %v2397
    %3351 = vmatpush.bf16.msra.mxu0 %v2389
    %3352 = vmatpush.bf16.msra.mxu0 %v2381
    %3353 = vmatpush.bf16.msra.mxu0 %v2373
    %3354 = vmatpush.bf16.msra.mxu0 %v2365
    %3355 = vmatpush.bf16.msra.mxu0 %v2357
    %3356 = vmatmul.bf16.gmra.mxu0 %v108
    %v3357 = vpop.f32.mrf.mxu0
    %v3358 = vadd.f32 %v3345, %v3357
    %v3359 = vpop.f32.mrf.mxu0
    %3360 = vdwg.mxu0
    %3361 = vmatpush.bf16.msra.mxu0 %v2477
    %3362 = vmatpush.bf16.msra.mxu0 %v2469
    %3363 = vmatpush.bf16.msra.mxu0 %v2461
    %3364 = vmatpush.bf16.msra.mxu0 %v2453
    %3365 = vmatpush.bf16.msra.mxu0 %v2445
    %3366 = vmatpush.bf16.msra.mxu0 %v2437
    %3367 = vmatpush.bf16.msra.mxu0 %v2429
    %3368 = vmatpush.bf16.msra.mxu0 %v2421
    %3369 = vmatmul.bf16.gmra.mxu0 %v109
    %v3370 = vpop.f32.mrf.mxu0
    %v3371 = vadd.f32 %v3358, %v3370
    %v3372 = vpop.f32.mrf.mxu0
    %3373 = vdwg.mxu0
    %3374 = vmatpush.bf16.msra.mxu0 %v2541
    %3375 = vmatpush.bf16.msra.mxu0 %v2533
    %3376 = vmatpush.bf16.msra.mxu0 %v2525
    %3377 = vmatpush.bf16.msra.mxu0 %v2517
    %3378 = vmatpush.bf16.msra.mxu0 %v2509
    %3379 = vmatpush.bf16.msra.mxu0 %v2501
    %3380 = vmatpush.bf16.msra.mxu0 %v2493
    %3381 = vmatpush.bf16.msra.mxu0 %v2485
    %3382 = vmatmul.bf16.gmra.mxu0 %v110
    %v3383 = vpop.f32.mrf.mxu0
    %v3384 = vadd.f32 %v3371, %v3383
    %v3385 = vpop.f32.mrf.mxu0
    %3386 = vdwg.mxu0
    %3387 = vmatpush.bf16.msra.mxu0 %v2605
    %3388 = vmatpush.bf16.msra.mxu0 %v2597
    %3389 = vmatpush.bf16.msra.mxu0 %v2589
    %3390 = vmatpush.bf16.msra.mxu0 %v2581
    %3391 = vmatpush.bf16.msra.mxu0 %v2573
    %3392 = vmatpush.bf16.msra.mxu0 %v2565
    %3393 = vmatpush.bf16.msra.mxu0 %v2557
    %3394 = vmatpush.bf16.msra.mxu0 %v2549
    %3395 = vmatmul.bf16.gmra.mxu0 %v111
    %v3396 = vpop.f32.mrf.mxu0
    %v3397 = vadd.f32 %v3384, %v3396
    %v3398 = vpop.f32.mrf.mxu0
    %3399 = vdwg.mxu0
    %3400 = vmatpush.bf16.msra.mxu0 %v2669
    %3401 = vmatpush.bf16.msra.mxu0 %v2661
    %3402 = vmatpush.bf16.msra.mxu0 %v2653
    %3403 = vmatpush.bf16.msra.mxu0 %v2645
    %3404 = vmatpush.bf16.msra.mxu0 %v2637
    %3405 = vmatpush.bf16.msra.mxu0 %v2629
    %3406 = vmatpush.bf16.msra.mxu0 %v2621
    %3407 = vmatpush.bf16.msra.mxu0 %v2613
    %3408 = vmatmul.bf16.gmra.mxu0 %v112
    %v3409 = vpop.f32.mrf.mxu0
    %v3410 = vadd.f32 %v3397, %v3409
    %v3411 = vpop.f32.mrf.mxu0
    %3412 = vdwg.mxu0
    %3413 = vmatpush.bf16.msra.mxu0 %v2222
    %3414 = vmatpush.bf16.msra.mxu0 %v2214
    %3415 = vmatpush.bf16.msra.mxu0 %v2206
    %3416 = vmatpush.bf16.msra.mxu0 %v2198
    %3417 = vmatpush.bf16.msra.mxu0 %v2190
    %3418 = vmatpush.bf16.msra.mxu0 %v2182
    %3419 = vmatpush.bf16.msra.mxu0 %v2174
    %3420 = vmatpush.bf16.msra.mxu0 %v2166
    %3421 = vmatmul.bf16.gmra.mxu0 %v105
    %v3422 = vpop.f32.mrf.mxu0
    %v3423 = vadd.f32 %v3191, %v3422
    %v3424 = vpop.f32.mrf.mxu0
    %3425 = vdwg.mxu0
    %3426 = vmatpush.bf16.msra.mxu0 %v2286
    %3427 = vmatpush.bf16.msra.mxu0 %v2278
    %3428 = vmatpush.bf16.msra.mxu0 %v2270
    %3429 = vmatpush.bf16.msra.mxu0 %v2262
    %3430 = vmatpush.bf16.msra.mxu0 %v2254
    %3431 = vmatpush.bf16.msra.mxu0 %v2246
    %3432 = vmatpush.bf16.msra.mxu0 %v2238
    %3433 = vmatpush.bf16.msra.mxu0 %v2230
    %3434 = vmatmul.bf16.gmra.mxu0 %v106
    %v3435 = vpop.f32.mrf.mxu0
    %v3436 = vadd.f32 %v3423, %v3435
    %v3437 = vpop.f32.mrf.mxu0
    %3438 = vdwg.mxu0
    %3439 = vmatpush.bf16.msra.mxu0 %v2350
    %3440 = vmatpush.bf16.msra.mxu0 %v2342
    %3441 = vmatpush.bf16.msra.mxu0 %v2334
    %3442 = vmatpush.bf16.msra.mxu0 %v2326
    %3443 = vmatpush.bf16.msra.mxu0 %v2318
    %3444 = vmatpush.bf16.msra.mxu0 %v2310
    %3445 = vmatpush.bf16.msra.mxu0 %v2302
    %3446 = vmatpush.bf16.msra.mxu0 %v2294
    %3447 = vmatmul.bf16.gmra.mxu0 %v107
    %v3448 = vpop.f32.mrf.mxu0
    %v3449 = vadd.f32 %v3436, %v3448
    %v3450 = vpop.f32.mrf.mxu0
    %3451 = vdwg.mxu0
    %3452 = vmatpush.bf16.msra.mxu0 %v2414
    %3453 = vmatpush.bf16.msra.mxu0 %v2406
    %3454 = vmatpush.bf16.msra.mxu0 %v2398
    %3455 = vmatpush.bf16.msra.mxu0 %v2390
    %3456 = vmatpush.bf16.msra.mxu0 %v2382
    %3457 = vmatpush.bf16.msra.mxu0 %v2374
    %3458 = vmatpush.bf16.msra.mxu0 %v2366
    %3459 = vmatpush.bf16.msra.mxu0 %v2358
    %3460 = vmatmul.bf16.gmra.mxu0 %v108
    %v3461 = vpop.f32.mrf.mxu0
    %v3462 = vadd.f32 %v3449, %v3461
    %v3463 = vpop.f32.mrf.mxu0
    %3464 = vdwg.mxu0
    %3465 = vmatpush.bf16.msra.mxu0 %v2478
    %3466 = vmatpush.bf16.msra.mxu0 %v2470
    %3467 = vmatpush.bf16.msra.mxu0 %v2462
    %3468 = vmatpush.bf16.msra.mxu0 %v2454
    %3469 = vmatpush.bf16.msra.mxu0 %v2446
    %3470 = vmatpush.bf16.msra.mxu0 %v2438
    %3471 = vmatpush.bf16.msra.mxu0 %v2430
    %3472 = vmatpush.bf16.msra.mxu0 %v2422
    %3473 = vmatmul.bf16.gmra.mxu0 %v109
    %v3474 = vpop.f32.mrf.mxu0
    %v3475 = vadd.f32 %v3462, %v3474
    %v3476 = vpop.f32.mrf.mxu0
    %3477 = vdwg.mxu0
    %3478 = vmatpush.bf16.msra.mxu0 %v2542
    %3479 = vmatpush.bf16.msra.mxu0 %v2534
    %3480 = vmatpush.bf16.msra.mxu0 %v2526
    %3481 = vmatpush.bf16.msra.mxu0 %v2518
    %3482 = vmatpush.bf16.msra.mxu0 %v2510
    %3483 = vmatpush.bf16.msra.mxu0 %v2502
    %3484 = vmatpush.bf16.msra.mxu0 %v2494
    %3485 = vmatpush.bf16.msra.mxu0 %v2486
    %3486 = vmatmul.bf16.gmra.mxu0 %v110
    %v3487 = vpop.f32.mrf.mxu0
    %v3488 = vadd.f32 %v3475, %v3487
    %v3489 = vpop.f32.mrf.mxu0
    %3490 = vdwg.mxu0
    %3491 = vmatpush.bf16.msra.mxu0 %v2606
    %3492 = vmatpush.bf16.msra.mxu0 %v2598
    %3493 = vmatpush.bf16.msra.mxu0 %v2590
    %3494 = vmatpush.bf16.msra.mxu0 %v2582
    %3495 = vmatpush.bf16.msra.mxu0 %v2574
    %3496 = vmatpush.bf16.msra.mxu0 %v2566
    %3497 = vmatpush.bf16.msra.mxu0 %v2558
    %3498 = vmatpush.bf16.msra.mxu0 %v2550
    %3499 = vmatmul.bf16.gmra.mxu0 %v111
    %v3500 = vpop.f32.mrf.mxu0
    %v3501 = vadd.f32 %v3488, %v3500
    %v3502 = vpop.f32.mrf.mxu0
    %3503 = vdwg.mxu0
    %3504 = vmatpush.bf16.msra.mxu0 %v2670
    %3505 = vmatpush.bf16.msra.mxu0 %v2662
    %3506 = vmatpush.bf16.msra.mxu0 %v2654
    %3507 = vmatpush.bf16.msra.mxu0 %v2646
    %3508 = vmatpush.bf16.msra.mxu0 %v2638
    %3509 = vmatpush.bf16.msra.mxu0 %v2630
    %3510 = vmatpush.bf16.msra.mxu0 %v2622
    %3511 = vmatpush.bf16.msra.mxu0 %v2614
    %3512 = vmatmul.bf16.gmra.mxu0 %v112
    %v3513 = vpop.f32.mrf.mxu0
    %v3514 = vadd.f32 %v3501, %v3513
    %v3515 = vpop.f32.mrf.mxu0
    %3516 = vdwg.mxu0
    %3517 = vmatpush.bf16.msra.mxu0 %v2223
    %3518 = vmatpush.bf16.msra.mxu0 %v2215
    %3519 = vmatpush.bf16.msra.mxu0 %v2207
    %3520 = vmatpush.bf16.msra.mxu0 %v2199
    %3521 = vmatpush.bf16.msra.mxu0 %v2191
    %3522 = vmatpush.bf16.msra.mxu0 %v2183
    %3523 = vmatpush.bf16.msra.mxu0 %v2175
    %3524 = vmatpush.bf16.msra.mxu0 %v2167
    %3525 = vmatmul.bf16.gmra.mxu0 %v105
    %v3526 = vpop.f32.mrf.mxu0
    %v3527 = vadd.f32 %v3192, %v3526
    %v3528 = vpop.f32.mrf.mxu0
    %3529 = vdwg.mxu0
    %3530 = vmatpush.bf16.msra.mxu0 %v2287
    %3531 = vmatpush.bf16.msra.mxu0 %v2279
    %3532 = vmatpush.bf16.msra.mxu0 %v2271
    %3533 = vmatpush.bf16.msra.mxu0 %v2263
    %3534 = vmatpush.bf16.msra.mxu0 %v2255
    %3535 = vmatpush.bf16.msra.mxu0 %v2247
    %3536 = vmatpush.bf16.msra.mxu0 %v2239
    %3537 = vmatpush.bf16.msra.mxu0 %v2231
    %3538 = vmatmul.bf16.gmra.mxu0 %v106
    %v3539 = vpop.f32.mrf.mxu0
    %v3540 = vadd.f32 %v3527, %v3539
    %v3541 = vpop.f32.mrf.mxu0
    %3542 = vdwg.mxu0
    %3543 = vmatpush.bf16.msra.mxu0 %v2351
    %3544 = vmatpush.bf16.msra.mxu0 %v2343
    %3545 = vmatpush.bf16.msra.mxu0 %v2335
    %3546 = vmatpush.bf16.msra.mxu0 %v2327
    %3547 = vmatpush.bf16.msra.mxu0 %v2319
    %3548 = vmatpush.bf16.msra.mxu0 %v2311
    %3549 = vmatpush.bf16.msra.mxu0 %v2303
    %3550 = vmatpush.bf16.msra.mxu0 %v2295
    %3551 = vmatmul.bf16.gmra.mxu0 %v107
    %v3552 = vpop.f32.mrf.mxu0
    %v3553 = vadd.f32 %v3540, %v3552
    %v3554 = vpop.f32.mrf.mxu0
    %3555 = vdwg.mxu0
    %3556 = vmatpush.bf16.msra.mxu0 %v2415
    %3557 = vmatpush.bf16.msra.mxu0 %v2407
    %3558 = vmatpush.bf16.msra.mxu0 %v2399
    %3559 = vmatpush.bf16.msra.mxu0 %v2391
    %3560 = vmatpush.bf16.msra.mxu0 %v2383
    %3561 = vmatpush.bf16.msra.mxu0 %v2375
    %3562 = vmatpush.bf16.msra.mxu0 %v2367
    %3563 = vmatpush.bf16.msra.mxu0 %v2359
    %3564 = vmatmul.bf16.gmra.mxu0 %v108
    %v3565 = vpop.f32.mrf.mxu0
    %v3566 = vadd.f32 %v3553, %v3565
    %v3567 = vpop.f32.mrf.mxu0
    %3568 = vdwg.mxu0
    %3569 = vmatpush.bf16.msra.mxu0 %v2479
    %3570 = vmatpush.bf16.msra.mxu0 %v2471
    %3571 = vmatpush.bf16.msra.mxu0 %v2463
    %3572 = vmatpush.bf16.msra.mxu0 %v2455
    %3573 = vmatpush.bf16.msra.mxu0 %v2447
    %3574 = vmatpush.bf16.msra.mxu0 %v2439
    %3575 = vmatpush.bf16.msra.mxu0 %v2431
    %3576 = vmatpush.bf16.msra.mxu0 %v2423
    %3577 = vmatmul.bf16.gmra.mxu0 %v109
    %v3578 = vpop.f32.mrf.mxu0
    %v3579 = vadd.f32 %v3566, %v3578
    %v3580 = vpop.f32.mrf.mxu0
    %3581 = vdwg.mxu0
    %3582 = vmatpush.bf16.msra.mxu0 %v2543
    %3583 = vmatpush.bf16.msra.mxu0 %v2535
    %3584 = vmatpush.bf16.msra.mxu0 %v2527
    %3585 = vmatpush.bf16.msra.mxu0 %v2519
    %3586 = vmatpush.bf16.msra.mxu0 %v2511
    %3587 = vmatpush.bf16.msra.mxu0 %v2503
    %3588 = vmatpush.bf16.msra.mxu0 %v2495
    %3589 = vmatpush.bf16.msra.mxu0 %v2487
    %3590 = vmatmul.bf16.gmra.mxu0 %v110
    %v3591 = vpop.f32.mrf.mxu0
    %v3592 = vadd.f32 %v3579, %v3591
    %v3593 = vpop.f32.mrf.mxu0
    %3594 = vdwg.mxu0
    %3595 = vmatpush.bf16.msra.mxu0 %v2607
    %3596 = vmatpush.bf16.msra.mxu0 %v2599
    %3597 = vmatpush.bf16.msra.mxu0 %v2591
    %3598 = vmatpush.bf16.msra.mxu0 %v2583
    %3599 = vmatpush.bf16.msra.mxu0 %v2575
    %3600 = vmatpush.bf16.msra.mxu0 %v2567
    %3601 = vmatpush.bf16.msra.mxu0 %v2559
    %3602 = vmatpush.bf16.msra.mxu0 %v2551
    %3603 = vmatmul.bf16.gmra.mxu0 %v111
    %v3604 = vpop.f32.mrf.mxu0
    %v3605 = vadd.f32 %v3592, %v3604
    %v3606 = vpop.f32.mrf.mxu0
    %3607 = vdwg.mxu0
    %3608 = vmatpush.bf16.msra.mxu0 %v2671
    %3609 = vmatpush.bf16.msra.mxu0 %v2663
    %3610 = vmatpush.bf16.msra.mxu0 %v2655
    %3611 = vmatpush.bf16.msra.mxu0 %v2647
    %3612 = vmatpush.bf16.msra.mxu0 %v2639
    %3613 = vmatpush.bf16.msra.mxu0 %v2631
    %3614 = vmatpush.bf16.msra.mxu0 %v2623
    %3615 = vmatpush.bf16.msra.mxu0 %v2615
    %3616 = vmatmul.bf16.gmra.mxu0 %v112
    %v3617 = vpop.f32.mrf.mxu0
    %v3618 = vadd.f32 %v3605, %v3617
    %v3619 = vpop.f32.mrf.mxu0
    %3620 = vdwg.mxu0
    %3621 = vmatpush.bf16.msra.mxu0 %v2224
    %3622 = vmatpush.bf16.msra.mxu0 %v2216
    %3623 = vmatpush.bf16.msra.mxu0 %v2208
    %3624 = vmatpush.bf16.msra.mxu0 %v2200
    %3625 = vmatpush.bf16.msra.mxu0 %v2192
    %3626 = vmatpush.bf16.msra.mxu0 %v2184
    %3627 = vmatpush.bf16.msra.mxu0 %v2176
    %3628 = vmatpush.bf16.msra.mxu0 %v2168
    %3629 = vmatmul.bf16.gmra.mxu0 %v105
    %v3630 = vpop.f32.mrf.mxu0
    %v3631 = vadd.f32 %v3193, %v3630
    %v3632 = vpop.f32.mrf.mxu0
    %3633 = vdwg.mxu0
    %3634 = vmatpush.bf16.msra.mxu0 %v2288
    %3635 = vmatpush.bf16.msra.mxu0 %v2280
    %3636 = vmatpush.bf16.msra.mxu0 %v2272
    %3637 = vmatpush.bf16.msra.mxu0 %v2264
    %3638 = vmatpush.bf16.msra.mxu0 %v2256
    %3639 = vmatpush.bf16.msra.mxu0 %v2248
    %3640 = vmatpush.bf16.msra.mxu0 %v2240
    %3641 = vmatpush.bf16.msra.mxu0 %v2232
    %3642 = vmatmul.bf16.gmra.mxu0 %v106
    %v3643 = vpop.f32.mrf.mxu0
    %v3644 = vadd.f32 %v3631, %v3643
    %v3645 = vpop.f32.mrf.mxu0
    %3646 = vdwg.mxu0
    %3647 = vmatpush.bf16.msra.mxu0 %v2352
    %3648 = vmatpush.bf16.msra.mxu0 %v2344
    %3649 = vmatpush.bf16.msra.mxu0 %v2336
    %3650 = vmatpush.bf16.msra.mxu0 %v2328
    %3651 = vmatpush.bf16.msra.mxu0 %v2320
    %3652 = vmatpush.bf16.msra.mxu0 %v2312
    %3653 = vmatpush.bf16.msra.mxu0 %v2304
    %3654 = vmatpush.bf16.msra.mxu0 %v2296
    %3655 = vmatmul.bf16.gmra.mxu0 %v107
    %v3656 = vpop.f32.mrf.mxu0
    %v3657 = vadd.f32 %v3644, %v3656
    %v3658 = vpop.f32.mrf.mxu0
    %3659 = vdwg.mxu0
    %3660 = vmatpush.bf16.msra.mxu0 %v2416
    %3661 = vmatpush.bf16.msra.mxu0 %v2408
    %3662 = vmatpush.bf16.msra.mxu0 %v2400
    %3663 = vmatpush.bf16.msra.mxu0 %v2392
    %3664 = vmatpush.bf16.msra.mxu0 %v2384
    %3665 = vmatpush.bf16.msra.mxu0 %v2376
    %3666 = vmatpush.bf16.msra.mxu0 %v2368
    %3667 = vmatpush.bf16.msra.mxu0 %v2360
    %3668 = vmatmul.bf16.gmra.mxu0 %v108
    %v3669 = vpop.f32.mrf.mxu0
    %v3670 = vadd.f32 %v3657, %v3669
    %v3671 = vpop.f32.mrf.mxu0
    %3672 = vdwg.mxu0
    %3673 = vmatpush.bf16.msra.mxu0 %v2480
    %3674 = vmatpush.bf16.msra.mxu0 %v2472
    %3675 = vmatpush.bf16.msra.mxu0 %v2464
    %3676 = vmatpush.bf16.msra.mxu0 %v2456
    %3677 = vmatpush.bf16.msra.mxu0 %v2448
    %3678 = vmatpush.bf16.msra.mxu0 %v2440
    %3679 = vmatpush.bf16.msra.mxu0 %v2432
    %3680 = vmatpush.bf16.msra.mxu0 %v2424
    %3681 = vmatmul.bf16.gmra.mxu0 %v109
    %v3682 = vpop.f32.mrf.mxu0
    %v3683 = vadd.f32 %v3670, %v3682
    %v3684 = vpop.f32.mrf.mxu0
    %3685 = vdwg.mxu0
    %3686 = vmatpush.bf16.msra.mxu0 %v2544
    %3687 = vmatpush.bf16.msra.mxu0 %v2536
    %3688 = vmatpush.bf16.msra.mxu0 %v2528
    %3689 = vmatpush.bf16.msra.mxu0 %v2520
    %3690 = vmatpush.bf16.msra.mxu0 %v2512
    %3691 = vmatpush.bf16.msra.mxu0 %v2504
    %3692 = vmatpush.bf16.msra.mxu0 %v2496
    %3693 = vmatpush.bf16.msra.mxu0 %v2488
    %3694 = vmatmul.bf16.gmra.mxu0 %v110
    %v3695 = vpop.f32.mrf.mxu0
    %v3696 = vadd.f32 %v3683, %v3695
    %v3697 = vpop.f32.mrf.mxu0
    %3698 = vdwg.mxu0
    %3699 = vmatpush.bf16.msra.mxu0 %v2608
    %3700 = vmatpush.bf16.msra.mxu0 %v2600
    %3701 = vmatpush.bf16.msra.mxu0 %v2592
    %3702 = vmatpush.bf16.msra.mxu0 %v2584
    %3703 = vmatpush.bf16.msra.mxu0 %v2576
    %3704 = vmatpush.bf16.msra.mxu0 %v2568
    %3705 = vmatpush.bf16.msra.mxu0 %v2560
    %3706 = vmatpush.bf16.msra.mxu0 %v2552
    %3707 = vmatmul.bf16.gmra.mxu0 %v111
    %v3708 = vpop.f32.mrf.mxu0
    %v3709 = vadd.f32 %v3696, %v3708
    %v3710 = vpop.f32.mrf.mxu0
    %3711 = vdwg.mxu0
    %3712 = vmatpush.bf16.msra.mxu0 %v2672
    %3713 = vmatpush.bf16.msra.mxu0 %v2664
    %3714 = vmatpush.bf16.msra.mxu0 %v2656
    %3715 = vmatpush.bf16.msra.mxu0 %v2648
    %3716 = vmatpush.bf16.msra.mxu0 %v2640
    %3717 = vmatpush.bf16.msra.mxu0 %v2632
    %3718 = vmatpush.bf16.msra.mxu0 %v2624
    %3719 = vmatpush.bf16.msra.mxu0 %v2616
    %3720 = vmatmul.bf16.gmra.mxu0 %v112
    %v3721 = vpop.f32.mrf.mxu0
    %v3722 = vadd.f32 %v3709, %v3721
    %v3723 = vpop.f32.mrf.mxu0
    %3724 = vdwg.mxu0
    %3725 = vmatpush.bf16.msra.mxu0 %v2225
    %3726 = vmatpush.bf16.msra.mxu0 %v2217
    %3727 = vmatpush.bf16.msra.mxu0 %v2209
    %3728 = vmatpush.bf16.msra.mxu0 %v2201
    %3729 = vmatpush.bf16.msra.mxu0 %v2193
    %3730 = vmatpush.bf16.msra.mxu0 %v2185
    %3731 = vmatpush.bf16.msra.mxu0 %v2177
    %3732 = vmatpush.bf16.msra.mxu0 %v2169
    %3733 = vmatmul.bf16.gmra.mxu0 %v105
    %v3734 = vpop.f32.mrf.mxu0
    %v3735 = vadd.f32 %v3194, %v3734
    %v3736 = vpop.f32.mrf.mxu0
    %3737 = vdwg.mxu0
    %3738 = vmatpush.bf16.msra.mxu0 %v2289
    %3739 = vmatpush.bf16.msra.mxu0 %v2281
    %3740 = vmatpush.bf16.msra.mxu0 %v2273
    %3741 = vmatpush.bf16.msra.mxu0 %v2265
    %3742 = vmatpush.bf16.msra.mxu0 %v2257
    %3743 = vmatpush.bf16.msra.mxu0 %v2249
    %3744 = vmatpush.bf16.msra.mxu0 %v2241
    %3745 = vmatpush.bf16.msra.mxu0 %v2233
    %3746 = vmatmul.bf16.gmra.mxu0 %v106
    %v3747 = vpop.f32.mrf.mxu0
    %v3748 = vadd.f32 %v3735, %v3747
    %v3749 = vpop.f32.mrf.mxu0
    %3750 = vdwg.mxu0
    %3751 = vmatpush.bf16.msra.mxu0 %v2353
    %3752 = vmatpush.bf16.msra.mxu0 %v2345
    %3753 = vmatpush.bf16.msra.mxu0 %v2337
    %3754 = vmatpush.bf16.msra.mxu0 %v2329
    %3755 = vmatpush.bf16.msra.mxu0 %v2321
    %3756 = vmatpush.bf16.msra.mxu0 %v2313
    %3757 = vmatpush.bf16.msra.mxu0 %v2305
    %3758 = vmatpush.bf16.msra.mxu0 %v2297
    %3759 = vmatmul.bf16.gmra.mxu0 %v107
    %v3760 = vpop.f32.mrf.mxu0
    %v3761 = vadd.f32 %v3748, %v3760
    %v3762 = vpop.f32.mrf.mxu0
    %3763 = vdwg.mxu0
    %3764 = vmatpush.bf16.msra.mxu0 %v2417
    %3765 = vmatpush.bf16.msra.mxu0 %v2409
    %3766 = vmatpush.bf16.msra.mxu0 %v2401
    %3767 = vmatpush.bf16.msra.mxu0 %v2393
    %3768 = vmatpush.bf16.msra.mxu0 %v2385
    %3769 = vmatpush.bf16.msra.mxu0 %v2377
    %3770 = vmatpush.bf16.msra.mxu0 %v2369
    %3771 = vmatpush.bf16.msra.mxu0 %v2361
    %3772 = vmatmul.bf16.gmra.mxu0 %v108
    %v3773 = vpop.f32.mrf.mxu0
    %v3774 = vadd.f32 %v3761, %v3773
    %v3775 = vpop.f32.mrf.mxu0
    %3776 = vdwg.mxu0
    %3777 = vmatpush.bf16.msra.mxu0 %v2481
    %3778 = vmatpush.bf16.msra.mxu0 %v2473
    %3779 = vmatpush.bf16.msra.mxu0 %v2465
    %3780 = vmatpush.bf16.msra.mxu0 %v2457
    %3781 = vmatpush.bf16.msra.mxu0 %v2449
    %3782 = vmatpush.bf16.msra.mxu0 %v2441
    %3783 = vmatpush.bf16.msra.mxu0 %v2433
    %3784 = vmatpush.bf16.msra.mxu0 %v2425
    %3785 = vmatmul.bf16.gmra.mxu0 %v109
    %v3786 = vpop.f32.mrf.mxu0
    %v3787 = vadd.f32 %v3774, %v3786
    %v3788 = vpop.f32.mrf.mxu0
    %3789 = vdwg.mxu0
    %3790 = vmatpush.bf16.msra.mxu0 %v2545
    %3791 = vmatpush.bf16.msra.mxu0 %v2537
    %3792 = vmatpush.bf16.msra.mxu0 %v2529
    %3793 = vmatpush.bf16.msra.mxu0 %v2521
    %3794 = vmatpush.bf16.msra.mxu0 %v2513
    %3795 = vmatpush.bf16.msra.mxu0 %v2505
    %3796 = vmatpush.bf16.msra.mxu0 %v2497
    %3797 = vmatpush.bf16.msra.mxu0 %v2489
    %3798 = vmatmul.bf16.gmra.mxu0 %v110
    %v3799 = vpop.f32.mrf.mxu0
    %v3800 = vadd.f32 %v3787, %v3799
    %v3801 = vpop.f32.mrf.mxu0
    %3802 = vdwg.mxu0
    %3803 = vmatpush.bf16.msra.mxu0 %v2609
    %3804 = vmatpush.bf16.msra.mxu0 %v2601
    %3805 = vmatpush.bf16.msra.mxu0 %v2593
    %3806 = vmatpush.bf16.msra.mxu0 %v2585
    %3807 = vmatpush.bf16.msra.mxu0 %v2577
    %3808 = vmatpush.bf16.msra.mxu0 %v2569
    %3809 = vmatpush.bf16.msra.mxu0 %v2561
    %3810 = vmatpush.bf16.msra.mxu0 %v2553
    %3811 = vmatmul.bf16.gmra.mxu0 %v111
    %v3812 = vpop.f32.mrf.mxu0
    %v3813 = vadd.f32 %v3800, %v3812
    %v3814 = vpop.f32.mrf.mxu0
    %3815 = vdwg.mxu0
    %3816 = vmatpush.bf16.msra.mxu0 %v2673
    %3817 = vmatpush.bf16.msra.mxu0 %v2665
    %3818 = vmatpush.bf16.msra.mxu0 %v2657
    %3819 = vmatpush.bf16.msra.mxu0 %v2649
    %3820 = vmatpush.bf16.msra.mxu0 %v2641
    %3821 = vmatpush.bf16.msra.mxu0 %v2633
    %3822 = vmatpush.bf16.msra.mxu0 %v2625
    %3823 = vmatpush.bf16.msra.mxu0 %v2617
    %3824 = vmatmul.bf16.gmra.mxu0 %v112
    %v3825 = vpop.f32.mrf.mxu0
    %v3826 = vadd.f32 %v3813, %v3825
    %v3827 = vpop.f32.mrf.mxu0
    %3828 = vdwg.mxu0
    %3829 = vmatpush.bf16.msra.mxu0 %v2226
    %3830 = vmatpush.bf16.msra.mxu0 %v2218
    %3831 = vmatpush.bf16.msra.mxu0 %v2210
    %3832 = vmatpush.bf16.msra.mxu0 %v2202
    %3833 = vmatpush.bf16.msra.mxu0 %v2194
    %3834 = vmatpush.bf16.msra.mxu0 %v2186
    %3835 = vmatpush.bf16.msra.mxu0 %v2178
    %3836 = vmatpush.bf16.msra.mxu0 %v2170
    %3837 = vmatmul.bf16.gmra.mxu0 %v105
    %v3838 = vpop.f32.mrf.mxu0
    %v3839 = vadd.f32 %v3195, %v3838
    %v3840 = vpop.f32.mrf.mxu0
    %3841 = vdwg.mxu0
    %3842 = vmatpush.bf16.msra.mxu0 %v2290
    %3843 = vmatpush.bf16.msra.mxu0 %v2282
    %3844 = vmatpush.bf16.msra.mxu0 %v2274
    %3845 = vmatpush.bf16.msra.mxu0 %v2266
    %3846 = vmatpush.bf16.msra.mxu0 %v2258
    %3847 = vmatpush.bf16.msra.mxu0 %v2250
    %3848 = vmatpush.bf16.msra.mxu0 %v2242
    %3849 = vmatpush.bf16.msra.mxu0 %v2234
    %3850 = vmatmul.bf16.gmra.mxu0 %v106
    %v3851 = vpop.f32.mrf.mxu0
    %v3852 = vadd.f32 %v3839, %v3851
    %v3853 = vpop.f32.mrf.mxu0
    %3854 = vdwg.mxu0
    %3855 = vmatpush.bf16.msra.mxu0 %v2354
    %3856 = vmatpush.bf16.msra.mxu0 %v2346
    %3857 = vmatpush.bf16.msra.mxu0 %v2338
    %3858 = vmatpush.bf16.msra.mxu0 %v2330
    %3859 = vmatpush.bf16.msra.mxu0 %v2322
    %3860 = vmatpush.bf16.msra.mxu0 %v2314
    %3861 = vmatpush.bf16.msra.mxu0 %v2306
    %3862 = vmatpush.bf16.msra.mxu0 %v2298
    %3863 = vmatmul.bf16.gmra.mxu0 %v107
    %v3864 = vpop.f32.mrf.mxu0
    %v3865 = vadd.f32 %v3852, %v3864
    %v3866 = vpop.f32.mrf.mxu0
    %3867 = vdwg.mxu0
    %3868 = vmatpush.bf16.msra.mxu0 %v2418
    %3869 = vmatpush.bf16.msra.mxu0 %v2410
    %3870 = vmatpush.bf16.msra.mxu0 %v2402
    %3871 = vmatpush.bf16.msra.mxu0 %v2394
    %3872 = vmatpush.bf16.msra.mxu0 %v2386
    %3873 = vmatpush.bf16.msra.mxu0 %v2378
    %3874 = vmatpush.bf16.msra.mxu0 %v2370
    %3875 = vmatpush.bf16.msra.mxu0 %v2362
    %3876 = vmatmul.bf16.gmra.mxu0 %v108
    %v3877 = vpop.f32.mrf.mxu0
    %v3878 = vadd.f32 %v3865, %v3877
    %v3879 = vpop.f32.mrf.mxu0
    %3880 = vdwg.mxu0
    %3881 = vmatpush.bf16.msra.mxu0 %v2482
    %3882 = vmatpush.bf16.msra.mxu0 %v2474
    %3883 = vmatpush.bf16.msra.mxu0 %v2466
    %3884 = vmatpush.bf16.msra.mxu0 %v2458
    %3885 = vmatpush.bf16.msra.mxu0 %v2450
    %3886 = vmatpush.bf16.msra.mxu0 %v2442
    %3887 = vmatpush.bf16.msra.mxu0 %v2434
    %3888 = vmatpush.bf16.msra.mxu0 %v2426
    %3889 = vmatmul.bf16.gmra.mxu0 %v109
    %v3890 = vpop.f32.mrf.mxu0
    %v3891 = vadd.f32 %v3878, %v3890
    %v3892 = vpop.f32.mrf.mxu0
    %3893 = vdwg.mxu0
    %3894 = vmatpush.bf16.msra.mxu0 %v2546
    %3895 = vmatpush.bf16.msra.mxu0 %v2538
    %3896 = vmatpush.bf16.msra.mxu0 %v2530
    %3897 = vmatpush.bf16.msra.mxu0 %v2522
    %3898 = vmatpush.bf16.msra.mxu0 %v2514
    %3899 = vmatpush.bf16.msra.mxu0 %v2506
    %3900 = vmatpush.bf16.msra.mxu0 %v2498
    %3901 = vmatpush.bf16.msra.mxu0 %v2490
    %3902 = vmatmul.bf16.gmra.mxu0 %v110
    %v3903 = vpop.f32.mrf.mxu0
    %v3904 = vadd.f32 %v3891, %v3903
    %v3905 = vpop.f32.mrf.mxu0
    %3906 = vdwg.mxu0
    %3907 = vmatpush.bf16.msra.mxu0 %v2610
    %3908 = vmatpush.bf16.msra.mxu0 %v2602
    %3909 = vmatpush.bf16.msra.mxu0 %v2594
    %3910 = vmatpush.bf16.msra.mxu0 %v2586
    %3911 = vmatpush.bf16.msra.mxu0 %v2578
    %3912 = vmatpush.bf16.msra.mxu0 %v2570
    %3913 = vmatpush.bf16.msra.mxu0 %v2562
    %3914 = vmatpush.bf16.msra.mxu0 %v2554
    %3915 = vmatmul.bf16.gmra.mxu0 %v111
    %v3916 = vpop.f32.mrf.mxu0
    %v3917 = vadd.f32 %v3904, %v3916
    %v3918 = vpop.f32.mrf.mxu0
    %3919 = vdwg.mxu0
    %3920 = vmatpush.bf16.msra.mxu0 %v2674
    %3921 = vmatpush.bf16.msra.mxu0 %v2666
    %3922 = vmatpush.bf16.msra.mxu0 %v2658
    %3923 = vmatpush.bf16.msra.mxu0 %v2650
    %3924 = vmatpush.bf16.msra.mxu0 %v2642
    %3925 = vmatpush.bf16.msra.mxu0 %v2634
    %3926 = vmatpush.bf16.msra.mxu0 %v2626
    %3927 = vmatpush.bf16.msra.mxu0 %v2618
    %3928 = vmatmul.bf16.gmra.mxu0 %v112
    %v3929 = vpop.f32.mrf.mxu0
    %v3930 = vadd.f32 %v3917, %v3929
    %v3931 = vpop.f32.mrf.mxu0
    %3932 = vdwg.mxu0
    %3933 = vmatpush.bf16.msra.mxu0 %v2227
    %3934 = vmatpush.bf16.msra.mxu0 %v2219
    %3935 = vmatpush.bf16.msra.mxu0 %v2211
    %3936 = vmatpush.bf16.msra.mxu0 %v2203
    %3937 = vmatpush.bf16.msra.mxu0 %v2195
    %3938 = vmatpush.bf16.msra.mxu0 %v2187
    %3939 = vmatpush.bf16.msra.mxu0 %v2179
    %3940 = vmatpush.bf16.msra.mxu0 %v2171
    %3941 = vmatmul.bf16.gmra.mxu0 %v105
    %v3942 = vpop.f32.mrf.mxu0
    %v3943 = vadd.f32 %v3196, %v3942
    %v3944 = vpop.f32.mrf.mxu0
    %3945 = vdwg.mxu0
    %3946 = vmatpush.bf16.msra.mxu0 %v2291
    %3947 = vmatpush.bf16.msra.mxu0 %v2283
    %3948 = vmatpush.bf16.msra.mxu0 %v2275
    %3949 = vmatpush.bf16.msra.mxu0 %v2267
    %3950 = vmatpush.bf16.msra.mxu0 %v2259
    %3951 = vmatpush.bf16.msra.mxu0 %v2251
    %3952 = vmatpush.bf16.msra.mxu0 %v2243
    %3953 = vmatpush.bf16.msra.mxu0 %v2235
    %3954 = vmatmul.bf16.gmra.mxu0 %v106
    %v3955 = vpop.f32.mrf.mxu0
    %v3956 = vadd.f32 %v3943, %v3955
    %v3957 = vpop.f32.mrf.mxu0
    %3958 = vdwg.mxu0
    %3959 = vmatpush.bf16.msra.mxu0 %v2355
    %3960 = vmatpush.bf16.msra.mxu0 %v2347
    %3961 = vmatpush.bf16.msra.mxu0 %v2339
    %3962 = vmatpush.bf16.msra.mxu0 %v2331
    %3963 = vmatpush.bf16.msra.mxu0 %v2323
    %3964 = vmatpush.bf16.msra.mxu0 %v2315
    %3965 = vmatpush.bf16.msra.mxu0 %v2307
    %3966 = vmatpush.bf16.msra.mxu0 %v2299
    %3967 = vmatmul.bf16.gmra.mxu0 %v107
    %v3968 = vpop.f32.mrf.mxu0
    %v3969 = vadd.f32 %v3956, %v3968
    %v3970 = vpop.f32.mrf.mxu0
    %3971 = vdwg.mxu0
    %3972 = vmatpush.bf16.msra.mxu0 %v2419
    %3973 = vmatpush.bf16.msra.mxu0 %v2411
    %3974 = vmatpush.bf16.msra.mxu0 %v2403
    %3975 = vmatpush.bf16.msra.mxu0 %v2395
    %3976 = vmatpush.bf16.msra.mxu0 %v2387
    %3977 = vmatpush.bf16.msra.mxu0 %v2379
    %3978 = vmatpush.bf16.msra.mxu0 %v2371
    %3979 = vmatpush.bf16.msra.mxu0 %v2363
    %3980 = vmatmul.bf16.gmra.mxu0 %v108
    %v3981 = vpop.f32.mrf.mxu0
    %v3982 = vadd.f32 %v3969, %v3981
    %v3983 = vpop.f32.mrf.mxu0
    %3984 = vdwg.mxu0
    %3985 = vmatpush.bf16.msra.mxu0 %v2483
    %3986 = vmatpush.bf16.msra.mxu0 %v2475
    %3987 = vmatpush.bf16.msra.mxu0 %v2467
    %3988 = vmatpush.bf16.msra.mxu0 %v2459
    %3989 = vmatpush.bf16.msra.mxu0 %v2451
    %3990 = vmatpush.bf16.msra.mxu0 %v2443
    %3991 = vmatpush.bf16.msra.mxu0 %v2435
    %3992 = vmatpush.bf16.msra.mxu0 %v2427
    %3993 = vmatmul.bf16.gmra.mxu0 %v109
    %v3994 = vpop.f32.mrf.mxu0
    %v3995 = vadd.f32 %v3982, %v3994
    %v3996 = vpop.f32.mrf.mxu0
    %3997 = vdwg.mxu0
    %3998 = vmatpush.bf16.msra.mxu0 %v2547
    %3999 = vmatpush.bf16.msra.mxu0 %v2539
    %4000 = vmatpush.bf16.msra.mxu0 %v2531
    %4001 = vmatpush.bf16.msra.mxu0 %v2523
    %4002 = vmatpush.bf16.msra.mxu0 %v2515
    %4003 = vmatpush.bf16.msra.mxu0 %v2507
    %4004 = vmatpush.bf16.msra.mxu0 %v2499
    %4005 = vmatpush.bf16.msra.mxu0 %v2491
    %4006 = vmatmul.bf16.gmra.mxu0 %v110
    %v4007 = vpop.f32.mrf.mxu0
    %v4008 = vadd.f32 %v3995, %v4007
    %v4009 = vpop.f32.mrf.mxu0
    %4010 = vdwg.mxu0
    %4011 = vmatpush.bf16.msra.mxu0 %v2611
    %4012 = vmatpush.bf16.msra.mxu0 %v2603
    %4013 = vmatpush.bf16.msra.mxu0 %v2595
    %4014 = vmatpush.bf16.msra.mxu0 %v2587
    %4015 = vmatpush.bf16.msra.mxu0 %v2579
    %4016 = vmatpush.bf16.msra.mxu0 %v2571
    %4017 = vmatpush.bf16.msra.mxu0 %v2563
    %4018 = vmatpush.bf16.msra.mxu0 %v2555
    %4019 = vmatmul.bf16.gmra.mxu0 %v111
    %v4020 = vpop.f32.mrf.mxu0
    %v4021 = vadd.f32 %v4008, %v4020
    %v4022 = vpop.f32.mrf.mxu0
    %4023 = vdwg.mxu0
    %4024 = vmatpush.bf16.msra.mxu0 %v2675
    %4025 = vmatpush.bf16.msra.mxu0 %v2667
    %4026 = vmatpush.bf16.msra.mxu0 %v2659
    %4027 = vmatpush.bf16.msra.mxu0 %v2651
    %4028 = vmatpush.bf16.msra.mxu0 %v2643
    %4029 = vmatpush.bf16.msra.mxu0 %v2635
    %4030 = vmatpush.bf16.msra.mxu0 %v2627
    %4031 = vmatpush.bf16.msra.mxu0 %v2619
    %4032 = vmatmul.bf16.gmra.mxu0 %v112
    %v4033 = vpop.f32.mrf.mxu0
    %v4034 = vadd.f32 %v4021, %v4033
    %v4035 = vpop.f32.mrf.mxu0
    %4036 = vdwg.mxu0
    %v4037 = vtanh.pop %v3306
    %v4038 = vtanh.pop %v3410
    %v4039 = vtanh.pop %v3514
    %v4040 = vtanh.pop %v3618
    %v4041 = vtanh.pop %v3722
    %v4042 = vtanh.pop %v3826
    %v4043 = vtanh.pop %v3930
    %v4044 = vtanh.pop %v4034
    %v4053 = vrot.slane %v4038, 7
    %v4054 = vrot.slane %v4039, 6
    %v4055 = vrot.slane %v4040, 5
    %v4056 = vrot.slane %v4041, 4
    %v4057 = vrot.slane %v4042, 3
    %v4058 = vrot.slane %v4043, 2
    %v4059 = vrot.slane %v4044, 1
    %vm4060 = vcmask 1040384
    %v4061 = vsel %vm4060, %v4037, %v4053
    %vm4062 = vcmask 1042434
    %v4063 = vsel %vm4062, %v4054, %v4055
    %vm4064 = vcmask 1041408
    %v4065 = vsel %vm4064, %v4061, %v4063
    %vm4066 = vcmask 1044484
    %v4067 = vsel %vm4066, %v4056, %v4057
    %vm4068 = vcmask 1046534
    %v4069 = vsel %vm4068, %v4058, %v4059
    %vm4070 = vcmask 1045508
    %v4071 = vsel %vm4070, %v4067, %v4069
    %vm4072 = vcmask 1043456
    %v4073 = vsel %vm4072, %v4065, %v4071
    %4075 = vst [vmem:[%s6] sm:$0xff] %v4073
    %v4076 = vld [vmem:[%s1 + $0x8] sm:$0x3]
    %v4078 = vperm.slane %v4076, 0
    %v4079 = vperm.slane %v4076, 1
    %v4082 = vpack.c.bf16 %v4078, %v4078
    %v4083 = vpack.c.bf16 %v4079, %v4079
    %v4084 = vld [vmem:[#allocation5] sm:$0xff]
    %v4085 = vld [vmem:[#allocation5 + $0x8] sm:$0xff]
    %v4086 = vld [vmem:[#allocation5 + $0x10] sm:$0xff]
    %v4087 = vld [vmem:[#allocation5 + $0x18] sm:$0xff]
    %v4088 = vld [vmem:[#allocation5 + $0x20] sm:$0xff]
    %v4089 = vld [vmem:[#allocation5 + $0x28] sm:$0xff]
    %v4090 = vld [vmem:[#allocation5 + $0x30] sm:$0xff]
    %v4091 = vld [vmem:[#allocation5 + $0x38] sm:$0xff]
    %v4092 = vld [vmem:[#allocation5 + $0x40] sm:$0xff]
    %v4093 = vld [vmem:[#allocation5 + $0x48] sm:$0xff]
    %v4094 = vld [vmem:[#allocation5 + $0x50] sm:$0xff]
    %v4095 = vld [vmem:[#allocation5 + $0x58] sm:$0xff]
    %v4096 = vld [vmem:[#allocation5 + $0x60] sm:$0xff]
    %v4097 = vld [vmem:[#allocation5 + $0x68] sm:$0xff]
    %v4098 = vld [vmem:[#allocation5 + $0x70] sm:$0xff]
    %v4099 = vld [vmem:[#allocation5 + $0x78] sm:$0xff]
    %v4100 = vld [vmem:[#allocation5 + $0x80] sm:$0xff]
    %v4101 = vld [vmem:[#allocation5 + $0x88] sm:$0xff]
    %v4102 = vld [vmem:[#allocation5 + $0x90] sm:$0xff]
    %v4103 = vld [vmem:[#allocation5 + $0x98] sm:$0xff]
    %v4104 = vld [vmem:[#allocation5 + $0xa0] sm:$0xff]
    %v4105 = vld [vmem:[#allocation5 + $0xa8] sm:$0xff]
    %v4106 = vld [vmem:[#allocation5 + $0xb0] sm:$0xff]
    %v4107 = vld [vmem:[#allocation5 + $0xb8] sm:$0xff]
    %v4108 = vld [vmem:[#allocation5 + $0xc0] sm:$0xff]
    %v4109 = vld [vmem:[#allocation5 + $0xc8] sm:$0xff]
    %v4110 = vld [vmem:[#allocation5 + $0xd0] sm:$0xff]
    %v4111 = vld [vmem:[#allocation5 + $0xd8] sm:$0xff]
    %v4112 = vld [vmem:[#allocation5 + $0xe0] sm:$0xff]
    %v4113 = vld [vmem:[#allocation5 + $0xe8] sm:$0xff]
    %v4114 = vld [vmem:[#allocation5 + $0xf0] sm:$0xff]
    %v4115 = vld [vmem:[#allocation5 + $0xf8] sm:$0xff]
    %v4116 = vld [vmem:[#allocation8 + $0x8] sm:$0x3]
    %v4117 = vmul.f32 %v626, %v4116
    %v4150 = vunpack.c.l.b16 %v4084
    %v4151 = vunpack.c.h.b16 %v4084
    %v4152 = vunpack.c.l.b16 %v4085
    %v4153 = vunpack.c.h.b16 %v4085
    %v4154 = vunpack.c.l.b16 %v4086
    %v4155 = vunpack.c.h.b16 %v4086
    %v4156 = vunpack.c.l.b16 %v4087
    %v4157 = vunpack.c.h.b16 %v4087
    %v4158 = vunpack.c.l.b16 %v4088
    %v4159 = vunpack.c.h.b16 %v4088
    %v4160 = vunpack.c.l.b16 %v4089
    %v4161 = vunpack.c.h.b16 %v4089
    %v4162 = vunpack.c.l.b16 %v4090
    %v4163 = vunpack.c.h.b16 %v4090
    %v4164 = vunpack.c.l.b16 %v4091
    %v4165 = vunpack.c.h.b16 %v4091
    %v4166 = vunpack.c.l.b16 %v4092
    %v4167 = vunpack.c.h.b16 %v4092
    %v4168 = vunpack.c.l.b16 %v4093
    %v4169 = vunpack.c.h.b16 %v4093
    %v4170 = vunpack.c.l.b16 %v4094
    %v4171 = vunpack.c.h.b16 %v4094
    %v4172 = vunpack.c.l.b16 %v4095
    %v4173 = vunpack.c.h.b16 %v4095
    %v4174 = vunpack.c.l.b16 %v4096
    %v4175 = vunpack.c.h.b16 %v4096
    %v4176 = vunpack.c.l.b16 %v4097
    %v4177 = vunpack.c.h.b16 %v4097
    %v4178 = vunpack.c.l.b16 %v4098
    %v4179 = vunpack.c.h.b16 %v4098
    %v4180 = vunpack.c.l.b16 %v4099
    %v4181 = vunpack.c.h.b16 %v4099
    %v4182 = vunpack.c.l.b16 %v4100
    %v4183 = vunpack.c.h.b16 %v4100
    %v4184 = vunpack.c.l.b16 %v4101
    %v4185 = vunpack.c.h.b16 %v4101
    %v4186 = vunpack.c.l.b16 %v4102
    %v4187 = vunpack.c.h.b16 %v4102
    %v4188 = vunpack.c.l.b16 %v4103
    %v4189 = vunpack.c.h.b16 %v4103
    %v4190 = vunpack.c.l.b16 %v4104
    %v4191 = vunpack.c.h.b16 %v4104
    %v4192 = vunpack.c.l.b16 %v4105
    %v4193 = vunpack.c.h.b16 %v4105
    %v4194 = vunpack.c.l.b16 %v4106
    %v4195 = vunpack.c.h.b16 %v4106
    %v4196 = vunpack.c.l.b16 %v4107
    %v4197 = vunpack.c.h.b16 %v4107
    %v4198 = vunpack.c.l.b16 %v4108
    %v4199 = vunpack.c.h.b16 %v4108
    %v4200 = vunpack.c.l.b16 %v4109
    %v4201 = vunpack.c.h.b16 %v4109
    %v4202 = vunpack.c.l.b16 %v4110
    %v4203 = vunpack.c.h.b16 %v4110
    %v4204 = vunpack.c.l.b16 %v4111
    %v4205 = vunpack.c.h.b16 %v4111
    %v4206 = vunpack.c.l.b16 %v4112
    %v4207 = vunpack.c.h.b16 %v4112
    %v4208 = vunpack.c.l.b16 %v4113
    %v4209 = vunpack.c.h.b16 %v4113
    %v4210 = vunpack.c.l.b16 %v4114
    %v4211 = vunpack.c.h.b16 %v4114
    %v4212 = vunpack.c.l.b16 %v4115
    %v4213 = vunpack.c.h.b16 %v4115
    %v4214 = vpack.c.b16 %v4152, %v4150
    %v4215 = vpack.c.b16 %v4153, %v4151
    %v4216 = vpack.c.b16 %v4156, %v4154
    %v4217 = vpack.c.b16 %v4157, %v4155
    %v4218 = vpack.c.b16 %v4160, %v4158
    %v4219 = vpack.c.b16 %v4161, %v4159
    %v4220 = vpack.c.b16 %v4164, %v4162
    %v4221 = vpack.c.b16 %v4165, %v4163
    %v4222 = vpack.c.b16 %v4168, %v4166
    %v4223 = vpack.c.b16 %v4169, %v4167
    %v4224 = vpack.c.b16 %v4172, %v4170
    %v4225 = vpack.c.b16 %v4173, %v4171
    %v4226 = vpack.c.b16 %v4176, %v4174
    %v4227 = vpack.c.b16 %v4177, %v4175
    %v4228 = vpack.c.b16 %v4180, %v4178
    %v4229 = vpack.c.b16 %v4181, %v4179
    %v4230 = vpack.c.b16 %v4184, %v4182
    %v4231 = vpack.c.b16 %v4185, %v4183
    %v4232 = vpack.c.b16 %v4188, %v4186
    %v4233 = vpack.c.b16 %v4189, %v4187
    %v4234 = vpack.c.b16 %v4192, %v4190
    %v4235 = vpack.c.b16 %v4193, %v4191
    %v4236 = vpack.c.b16 %v4196, %v4194
    %v4237 = vpack.c.b16 %v4197, %v4195
    %v4238 = vpack.c.b16 %v4200, %v4198
    %v4239 = vpack.c.b16 %v4201, %v4199
    %v4240 = vpack.c.b16 %v4204, %v4202
    %v4241 = vpack.c.b16 %v4205, %v4203
    %v4242 = vpack.c.b16 %v4208, %v4206
    %v4243 = vpack.c.b16 %v4209, %v4207
    %v4244 = vpack.c.b16 %v4212, %v4210
    %v4245 = vpack.c.b16 %v4213, %v4211
    %v4279 = vperm.slane %v4117, 0
    %v4280 = vperm.slane %v4117, 1
    %4283 = vmatpush.bf16.msra.mxu0 %v4228
    %4284 = vmatpush.bf16.msra.mxu0 %v4226
    %4285 = vmatpush.bf16.msra.mxu0 %v4224
    %4286 = vmatpush.bf16.msra.mxu0 %v4222
    %4287 = vmatpush.bf16.msra.mxu0 %v4220
    %4288 = vmatpush.bf16.msra.mxu0 %v4218
    %4289 = vmatpush.bf16.msra.mxu0 %v4216
    %4290 = vmatpush.bf16.msra.mxu0 %v4214
    %4291 = vmatmul.bf16.gmra.mxu0 %v4082
    %v4292 = vpop.f32.mrf.mxu0
    %v4293 = vadd.f32 %v4279, %v4292
    %v4294 = vpop.f32.mrf.mxu0
    %4295 = vdwg.mxu0
    %4296 = vmatpush.bf16.msra.mxu0 %v4244
    %4297 = vmatpush.bf16.msra.mxu0 %v4242
    %4298 = vmatpush.bf16.msra.mxu0 %v4240
    %4299 = vmatpush.bf16.msra.mxu0 %v4238
    %4300 = vmatpush.bf16.msra.mxu0 %v4236
    %4301 = vmatpush.bf16.msra.mxu0 %v4234
    %4302 = vmatpush.bf16.msra.mxu0 %v4232
    %4303 = vmatpush.bf16.msra.mxu0 %v4230
    %4304 = vmatmul.bf16.gmra.mxu0 %v4083
    %v4305 = vpop.f32.mrf.mxu0
    %v4306 = vadd.f32 %v4293, %v4305
    %v4307 = vpop.f32.mrf.mxu0
    %4308 = vdwg.mxu0
    %4309 = vmatpush.bf16.msra.mxu0 %v4229
    %4310 = vmatpush.bf16.msra.mxu0 %v4227
    %4311 = vmatpush.bf16.msra.mxu0 %v4225
    %4312 = vmatpush.bf16.msra.mxu0 %v4223
    %4313 = vmatpush.bf16.msra.mxu0 %v4221
    %4314 = vmatpush.bf16.msra.mxu0 %v4219
    %4315 = vmatpush.bf16.msra.mxu0 %v4217
    %4316 = vmatpush.bf16.msra.mxu0 %v4215
    %4317 = vmatmul.bf16.gmra.mxu0 %v4082
    %v4318 = vpop.f32.mrf.mxu0
    %v4319 = vadd.f32 %v4280, %v4318
    %v4320 = vpop.f32.mrf.mxu0
    %4321 = vdwg.mxu0
    %4322 = vmatpush.bf16.msra.mxu0 %v4245
    %4323 = vmatpush.bf16.msra.mxu0 %v4243
    %4324 = vmatpush.bf16.msra.mxu0 %v4241
    %4325 = vmatpush.bf16.msra.mxu0 %v4239
    %4326 = vmatpush.bf16.msra.mxu0 %v4237
    %4327 = vmatpush.bf16.msra.mxu0 %v4235
    %4328 = vmatpush.bf16.msra.mxu0 %v4233
    %4329 = vmatpush.bf16.msra.mxu0 %v4231
    %4330 = vmatmul.bf16.gmra.mxu0 %v4083
    %v4331 = vpop.f32.mrf.mxu0
    %v4332 = vadd.f32 %v4319, %v4331
    %v4333 = vpop.f32.mrf.mxu0
    %4334 = vdwg.mxu0
    %v4335 = vtanh.pop %v4306
    %v4336 = vtanh.pop %v4332
    %v4339 = vrot.slane %v4336, 7
    %v4340 = vsel %vm4060, %v4335, %v4339
    %v4342 = vlaneseq
    %vm4343 = vcmp.ge.s32.totalorder %v4342, 0
    %vm4344 = vcmp.lt.s32.totalorder %v4342, 256
    %vm4345 = vmand %vm4343, %vm4344
    %4346 = vst.msk [vmem:[%s6 + $0x8] sm:$0x3] %vm4345, %v4340
    %v4347 = vld [vmem:[%s1 + $0xa] sm:$0x1]
    %v4348 = vpack.c.bf16 %v4347, %v4347
    %v4349 = vld [vmem:[#allocation7] sm:$0xf]
    %v4350 = vld [vmem:[#allocation7 + $0x4] sm:$0xf]
    %v4351 = vld [vmem:[#allocation7 + $0x8] sm:$0xf]
    %v4352 = vld [vmem:[#allocation7 + $0xc] sm:$0xf]
    %v4353 = vld [vmem:[#allocation7 + $0x10] sm:$0xf]
    %v4354 = vld [vmem:[#allocation7 + $0x14] sm:$0xf]
    %v4355 = vld [vmem:[#allocation7 + $0x18] sm:$0xf]
    %v4356 = vld [vmem:[#allocation7 + $0x1c] sm:$0xf]
    %v4365 = vunpack.c.l.b16 %v4349
    %v4366 = vunpack.c.l.b16 %v4350
    %v4367 = vunpack.c.l.b16 %v4351
    %v4368 = vunpack.c.l.b16 %v4352
    %v4369 = vunpack.c.l.b16 %v4353
    %v4370 = vunpack.c.l.b16 %v4354
    %v4371 = vunpack.c.l.b16 %v4355
    %v4372 = vunpack.c.l.b16 %v4356
    %v4373 = vpack.c.b16 %v4366, %v4365
    %v4374 = vpack.c.b16 %v4368, %v4367
    %v4375 = vpack.c.b16 %v4370, %v4369
    %v4376 = vpack.c.b16 %v4372, %v4371
    %vm4381 = vcmask 523264
    %v4383 = vsel %vm4381, %v4348, 0
    %4385 = vmatpush.bf16.msra.mxu0 0
    %4386 = vmatpush.bf16.msra.mxu0 0
    %4387 = vmatpush.bf16.msra.mxu0 0
    %4388 = vmatpush.bf16.msra.mxu0 0
    %4389 = vmatpush.bf16.msra.mxu0 %v4376
    %4390 = vmatpush.bf16.msra.mxu0 %v4375
    %4391 = vmatpush.bf16.msra.mxu0 %v4374
    %4392 = vmatpush.bf16.msra.mxu0 %v4373
    %4393 = vmatmul.bf16.gmra.mxu0 %v4383
    %v4394 = vpop.f32.mrf.mxu0
    %v4395 = vadd.f32 0.0, %v4394
    %v4396 = vpop.f32.mrf.mxu0
    %4397 = vdwg.mxu0
    %v4398 = vld [vmem:[#allocation8 + $0xa] sm:$0x1]
    %v4399 = vmul.f32 %v626, %v4398
    %v4400 = vadd.f32 %v4395, %v4399
    %v4401 = vtanh.pop %v4400
    %vm4402 = vcmp.lt.s32.totalorder %v4342, 64
    %vm4403 = vmand %vm4343, %vm4402
    %4404 = vst.msk [vmem:[%s6 + $0xa] sm:$0x1] %vm4403, %v4401
    // Predicated region
    $region42: #{flat_fn.1} parent=1 // pred_check
      _
    $region43: #{flat_fn.1} parent=1 // pred_check_branch
      %4406 = sbr.rel (0) target = $region45
    $region44: #{flat_fn.1} parent=1 // pred_region
      _
    $region45: #{flat_fn.1} parent=1 // pred_fallthru
      _
    // Predicated region
    $region46: #{flat_fn.1} parent=1 // pred_check
      _
    $region47: #{flat_fn.1} parent=1 // pred_check_branch
      %4408 = sbr.rel (0) target = $region49
    $region48: #{flat_fn.1} parent=1 // pred_region
      _
    $region49: #{flat_fn.1} parent=1 // pred_fallthru
      _
    %4409 = vsyncpa [#allocation4], 1
    %4410 = vsyncpa [#allocation6], 1
    %4411 = vsyncpa [#allocation9], 1

</llo_original>
